<compile_context>
chip_gen: v6e
topology: v6e:2x2x1
jax: 0.10.0
libtpu: 0.0.40
codegen_flags: <defaults>
</compile_context>

<pallas_src>
import functools

import jax
import jax.numpy as jnp
from jax.experimental import pallas as pl
from jax.experimental.pallas import tpu as pltpu

BN_EPS = 1e-5


# --------------------------------------------------------------------------
# Kernel: all blocks fused, activation stays in VMEM/vregs across blocks.
# --------------------------------------------------------------------------
def _fastconv_list_kernel(x_ref, dw_ref, b1_ref, pw_ref, b2_ref,
                          aid_ref, acv_ref, b3_ref, o_ref, pad_ref,
                          *, size, use_final_conv):
    nb, H, W, C = x_ref.shape
    mid = C // 2
    HW = nb * H * W

    def mm(a, w):
        # cast the activation operand to the (pre-cast) weight dtype; f32 acc.
        if w.dtype != a.dtype:
            a = a.astype(w.dtype)
        return jnp.dot(a, w, preferred_element_type=jnp.float32)

    # Zero the persistent padded scratch once per grid step.  Only the
    # interior is rewritten inside the block loop, so the 1-px zero border is
    # shared by all `size` blocks (no per-block concatenate padding copies).
    pad_ref[...] = jnp.zeros_like(pad_ref)

    def block(blk, act):
        ident = act[..., :mid]                                # (nb, H, W, mid)

        # ---- depthwise 3x3 conv (BN1 scale pre-folded into dw) ----
        # store the conv half into the padded scratch, read 3 W-shifted views
        pad_ref[:, 1:H + 1, 1:W + 1, :] = act[..., mid:]
        dw = dw_ref[blk].astype(jnp.float32)                  # (9, mid)
        acc = jnp.zeros((nb, H, W, mid), jnp.float32)
        for dx in range(3):
            col = pad_ref[:, :, dx:dx + W, :]                 # (nb, H+2, W, mid)
            for dy in range(3):
                acc = acc + col[:, dy:dy + H, :, :] * dw[dy * 3 + dx]
        acc = jnp.maximum(acc + b1_ref[blk], 0.0)             # bias + ReLU1

        # ---- pointwise 1x1 conv (MXU), BN2 scale pre-folded ----
        y = mm(acc.reshape(HW, mid), pw_ref[blk])
        y = jnp.maximum(y + b2_ref[blk], 0.0)                 # (HW, mid)

        # ---- cat + channel_shuffle (+ final 1x1 conv + BN3) folded into two
        #      matmuls with row-permuted weights ----
        out = mm(ident.reshape(HW, mid), aid_ref[blk]) + mm(y, acv_ref[blk])
        if use_final_conv:
            out = jnp.maximum(out + b3_ref[blk], 0.0)
        return out.reshape(nb, H, W, C)

    act = x_ref[...].astype(jnp.float32)                      # (nb, H, W, C)
    if size <= 4:
        for blk in range(size):                               # static unroll
            act = block(blk, act)
    else:
        act = jax.lax.fori_loop(0, size, block, act)          # bounded live ranges

    o_ref[...] = act.astype(o_ref.dtype)


# --------------------------------------------------------------------------
# Wrapper helpers: weight folding / stacking, VMEM sizing, batch tiling.
# --------------------------------------------------------------------------
def _prepare_stacked_params(block_params, C, use_final_conv, mxu_dtype):
    """Fold BN scales into conv weights, fold channel-shuffle into the final
    1x1 conv's rows, cast MXU weights to mxu_dtype, stack on a `size` axis."""
    mid = C // 2
    wdt = jnp.float32 if mxu_dtype is None else mxu_dtype
    dw, b1, pw, b2, aid, acv, b3 = [], [], [], [], [], [], []
    rows = jnp.arange(mid)
    # exact 0/1 shuffle permutation; kept f32 so the identity half stays
    # bit-exact when use_final_conv=False, even with mxu_dtype=bf16.
    p_id = jnp.zeros((mid, C), jnp.float32).at[rows, 2 * rows].set(1.0)
    p_cv = jnp.zeros((mid, C), jnp.float32).at[rows, 2 * rows + 1].set(1.0)
    for p in block_params:
        s1 = p["bn1_s"].astype(jnp.float32)
        s2 = p["bn2_s"].astype(jnp.float32)
        dw.append(p["dw"].astype(jnp.float32) * s1[None, :])   # VPU path: f32
        b1.append(p["bn1_b"].astype(jnp.float32))
        pw.append((p["pw"].astype(jnp.float32) * s2[None, :]).astype(wdt))
        b2.append(p["bn2_b"].astype(jnp.float32))
        if use_final_conv:
            fin = p["fin"].astype(jnp.float32) * p["bn3_s"].astype(jnp.float32)[None, :]
            # shuffled input channel 2*i = identity[i], 2*i+1 = conv[i]
            aid.append(fin[0::2, :].astype(wdt))               # (mid, C)
            acv.append(fin[1::2, :].astype(wdt))               # (mid, C)
            b3.append(p["bn3_b"].astype(jnp.float32))
        else:
            aid.append(p_id)
            acv.append(p_cv)
            b3.append(jnp.zeros((C,), jnp.float32))
    st = lambda xs: jnp.stack(xs, axis=0)
    return dict(dw=st(dw), b1=st(b1), pw=st(pw), b2=st(b2),
                aid=st(aid), acv=st(acv), b3=st(b3))


def _vmem_limit_bytes():
    """~70% of this generation's physical VMEM (v5e/v6e 128 MiB -> ~90 MiB,
    v7x 64 MiB -> ~45 MiB); safe fallback if the query is unavailable."""
    phys = 64 << 20
    try:
        info = pltpu.get_tpu_info()
        phys = int(getattr(info, "vmem_capacity_bytes", phys)) or phys
    except Exception:
        pass
    return max(32 << 20, min(int(phys * 0.70), phys - (8 << 20)))


def _pick_batch_block(N, H, W, C, x_itemsize, weight_bytes, vmem_limit):
    """Largest divisor of N fitting the VMEM budget, clamped so the grid has
    at least 2 steps (megacore split on v7x + pipeline overlap everywhere)."""
    mid = C // 2
    per_nb = (4 * H * W * C * x_itemsize          # double-buffered in + out blocks
              + (H + 2) * (W + 2) * mid * 4        # padded depthwise scratch
              + 6 * H * W * C * 4)                 # live f32 intermediates / block
    budget = int(0.6 * vmem_limit) - 2 * weight_bytes
    nb_cap = max(1, N // 2)
    for d in range(nb_cap, 0, -1):
        if N % d == 0 and d * per_nb <= budget:
            return d
    return 1


def fastconv_list_forward(x_nchw, block_params, *, use_final_conv=True,
                          batch_block=None, mxu_dtype=jnp.bfloat16):
    """FastConvList forward. Input/output are NCHW (PyTorch convention)."""
    N, C, H, W = x_nchw.shape
    assert C % 2 == 0, "FastConvBlock requires an even channel count"
    mid = C // 2
    size = len(block_params)

    x = jnp.transpose(x_nchw, (0, 2, 3, 1))           # NCHW -> NHWC, once
    sp = _prepare_stacked_params(block_params, C, use_final_conv, mxu_dtype)

    vmem_limit = _vmem_limit_bytes()
    if batch_block is None:
        weight_bytes = sum(int(v.size) * v.dtype.itemsize for v in sp.values())
        batch_block = _pick_batch_block(N, H, W, C, x.dtype.itemsize,
                                        weight_bytes, vmem_limit)
    nb = batch_block
    assert N % nb == 0

    kernel = functools.partial(_fastconv_list_kernel, size=size,
                               use_final_conv=use_final_conv)

    def bcast(shape):
        return pl.BlockSpec(shape, lambda n: (0,) * len(shape))

    out_nhwc = pl.pallas_call(
        kernel,
        out_shape=jax.ShapeDtypeStruct((N, H, W, C), x_nchw.dtype),
        grid=(N // nb,),
        in_specs=[
            pl.BlockSpec((nb, H, W, C), lambda n: (n, 0, 0, 0)),
            bcast((size, 9, mid)),        # dw   (BN1 folded, f32)
            bcast((size, mid)),           # b1
            bcast((size, mid, mid)),      # pw   (BN2 folded)
            bcast((size, mid)),           # b2
            bcast((size, mid, C)),        # aid  (shuffle + BN3 folded)
            bcast((size, mid, C)),        # acv
            bcast((size, C)),             # b3
        ],
        out_specs=pl.BlockSpec((nb, H, W, C), lambda n: (n, 0, 0, 0)),
        scratch_shapes=[pltpu.VMEM((nb, H + 2, W + 2, mid), jnp.float32)],
        compiler_params=pltpu.CompilerParams(
            dimension_semantics=("parallel",),
            vmem_limit_bytes=vmem_limit),
    )(x, sp["dw"], sp["b1"], sp["pw"], sp["b2"], sp["aid"], sp["acv"], sp["b3"])

    return jnp.transpose(out_nhwc, (0, 3, 1, 2))      # back to NCHW, once


# --------------------------------------------------------------------------
# Deterministic init matching FastConvBlock._initialize_weights().
# --------------------------------------------------------------------------
def init_fastconv_list_params(key, in_channels, size, use_final_conv=True,
                              dtype=jnp.float32):
    """Conv weights: kaiming_normal_(fan_out, relu) -> std=sqrt(2/fan_out).
    Layouts: depthwise (9, mid) tap-major; 1x1 convs as (in, out).
    BN (eval): gamma=1, beta=0, mean=0, var=1 -> scale=1/sqrt(1+eps), bias=0."""
    C = in_channels
    mid = C // 2
    bn_scale = 1.0 / (1.0 + BN_EPS) ** 0.5
    blocks = []
    for _ in range(size):
        key, k_dw, k_pw, k_fin = jax.random.split(key, 4)
        p = {
            "dw": jax.random.normal(k_dw, (9, mid), dtype) * (2.0 / 9.0) ** 0.5,
            "pw": jax.random.normal(k_pw, (mid, mid), dtype) * (2.0 / mid) ** 0.5,
            "bn1_s": jnp.full((mid,), bn_scale, dtype),
            "bn1_b": jnp.zeros((mid,), dtype),
            "bn2_s": jnp.full((mid,), bn_scale, dtype),
            "bn2_b": jnp.zeros((mid,), dtype),
        }
        if use_final_conv:
            p["fin"] = jax.random.normal(k_fin, (C, C), dtype) * (2.0 / C) ** 0.5
            p["bn3_s"] = jnp.full((C,), bn_scale, dtype)
            p["bn3_b"] = jnp.zeros((C,), dtype)
        blocks.append(p)
    return blocks


# ---------------- pure-JAX reference (correctness check only) ----------------
def _block_ref(x_nchw, p, use_final_conv=True):
    N, C, H, W = x_nchw.shape
    mid = C // 2
    x = jnp.transpose(x_nchw, (0, 2, 3, 1)).astype(jnp.float32)
    ident, conv = x[..., :mid], x[..., mid:]
    dw = p["dw"].astype(jnp.float32).reshape(3, 3, mid)[:, :, None, :]  # HWIO
    conv = jax.lax.conv_general_dilated(
        conv, dw, window_strides=(1, 1), padding=((1, 1), (1, 1)),
        dimension_numbers=("NHWC", "HWIO", "NHWC"), feature_group_count=mid)
    conv = jnp.maximum(conv * p["bn1_s"] + p["bn1_b"], 0.0)
    conv = conv @ p["pw"].astype(jnp.float32)
    conv = jnp.maximum(conv * p["bn2_s"] + p["bn2_b"], 0.0)
    out = jnp.stack([ident, conv], axis=-1).reshape(N, H, W, C)  # shuffle(g=2)
    if use_final_conv:
        out = out @ p["fin"].astype(jnp.float32)
        out = jnp.maximum(out * p["bn3_s"] + p["bn3_b"], 0.0)
    return jnp.transpose(out, (0, 3, 1, 2)).astype(x_nchw.dtype)


if __name__ == "__main__":
    N, C, H, W = 2, 4, 16, 16
    SIZE = 2                      # FastConvList(in_channels=4, size=2)

    key = jax.random.PRNGKey(0)
    kx, kp1, kp2 = jax.random.split(key, 3)
    x = jax.random.normal(kx, (N, C, H, W), jnp.float32)

    # (use_final_conv, param_key, mxu_dtype, atol, rtol)
    configs = [
        (True,  kp1, None,         1e-4, 1e-4),   # exact f32 path
        (True,  kp1, jnp.bfloat16, 5e-2, 5e-2),   # default bf16 MXU path
        (False, kp2, None,         1e-4, 1e-4),   # shuffle-only path (exact)
    ]

    ok = True
    for use_final_conv, kp, mxu_dtype, atol, rtol in configs:
        params = init_fastconv_list_params(kp, C, SIZE,
                                           use_final_conv=use_final_conv)
        out = fastconv_list_forward(x, params, use_final_conv=use_final_conv,
                                    mxu_dtype=mxu_dtype)
        out = jax.block_until_ready(out)

        ref = x
        for p in params:
            ref = _block_ref(ref, p, use_final_conv)

        assert out.shape == (N, C, H, W), out.shape
        if not jnp.allclose(out, ref, atol=atol, rtol=rtol):
            ok = False
            max_err = float(jnp.max(jnp.abs(out - ref)))
            print(f"mismatch (use_final_conv={use_final_conv}, "
                  f"mxu_dtype={mxu_dtype}): max_err={max_err}")

    if ok:
        print("KERNEL_OK")
</pallas_src>

<mosaic_0001>
module attributes {stable_mosaic.version = 11 : i64} {
  func.func @_fastconv_list_kernel(%arg0: i32, %arg1: memref<1x16x16x4xf32, #tpu.memory_space<vmem>>, %arg2: memref<2x9x2xf32, #tpu.memory_space<vmem>>, %arg3: memref<2x2xf32, #tpu.memory_space<vmem>>, %arg4: memref<2x2x2xf32, #tpu.memory_space<vmem>>, %arg5: memref<2x2xf32, #tpu.memory_space<vmem>>, %arg6: memref<2x2x4xf32, #tpu.memory_space<vmem>>, %arg7: memref<2x2x4xf32, #tpu.memory_space<vmem>>, %arg8: memref<2x4xf32, #tpu.memory_space<vmem>>, %arg9: memref<1x16x16x4xf32, #tpu.memory_space<vmem>>, %arg10: memref<1x18x18x2xf32, #tpu.memory_space<vmem>>) attributes {dimension_semantics = [#tpu.dimension_semantics<parallel>], iteration_bounds = array<i64: 2>, scalar_prefetch = 0 : i64, scratch_operands = 1 : i64, tpu.core_type = #tpu.core_type<tc>, window_params = [{transform_indices = @transform_0, window_bounds = array<i64: 1, 16, 16, 4>}, {pipeline_mode = #tpu.pipeline_mode<synchronous>, transform_indices = @transform_1, window_bounds = array<i64: 2, 9, 2>}, {pipeline_mode = #tpu.pipeline_mode<synchronous>, transform_indices = @transform_2, window_bounds = array<i64: 2, 2>}, {pipeline_mode = #tpu.pipeline_mode<synchronous>, transform_indices = @transform_3, window_bounds = array<i64: 2, 2, 2>}, {pipeline_mode = #tpu.pipeline_mode<synchronous>, transform_indices = @transform_4, window_bounds = array<i64: 2, 2>}, {pipeline_mode = #tpu.pipeline_mode<synchronous>, transform_indices = @transform_5, window_bounds = array<i64: 2, 2, 4>}, {pipeline_mode = #tpu.pipeline_mode<synchronous>, transform_indices = @transform_6, window_bounds = array<i64: 2, 2, 4>}, {pipeline_mode = #tpu.pipeline_mode<synchronous>, transform_indices = @transform_7, window_bounds = array<i64: 2, 4>}, {transform_indices = @transform_8, window_bounds = array<i64: 1, 16, 16, 4>}]} {
    %cst = arith.constant 0.000000e+00 : f32
    %0 = vector.broadcast %cst : f32 to vector<1x18x18x2xf32>
    %c0 = arith.constant 0 : index
    %c0_0 = arith.constant 0 : index
    %c0_1 = arith.constant 0 : index
    %c0_2 = arith.constant 0 : index
    %1 = vector.load %arg10[%c0, %c0_0, %c0_1, %c0_2] : memref<1x18x18x2xf32, #tpu.memory_space<vmem>>, vector<1x18x18x2xf32>
    tpu.vector_store %arg10[%c0, %c0_0, %c0_1, %c0_2], %0 {strides = array<i32>} : memref<1x18x18x2xf32, #tpu.memory_space<vmem>>, vector<1x18x18x2xf32>,
    %c0_3 = arith.constant 0 : index
    %c0_4 = arith.constant 0 : index
    %c0_5 = arith.constant 0 : index
    %c0_6 = arith.constant 0 : index
    %2 = vector.load %arg1[%c0_3, %c0_4, %c0_5, %c0_6] : memref<1x16x16x4xf32, #tpu.memory_space<vmem>>, vector<1x16x16x4xf32>
    %3 = vector.extract_strided_slice %2 {offsets = [0, 0, 0, 0], sizes = [1, 16, 16, 2], strides = [1, 1, 1, 1]} : vector<1x16x16x4xf32> to vector<1x16x16x2xf32>
    %4 = vector.extract_strided_slice %2 {offsets = [0, 0, 0, 2], sizes = [1, 16, 16, 2], strides = [1, 1, 1, 1]} : vector<1x16x16x4xf32> to vector<1x16x16x2xf32>
    %c0_7 = arith.constant 0 : index
    %c1 = arith.constant 1 : index
    %c1_8 = arith.constant 1 : index
    %c0_9 = arith.constant 0 : index
    %5 = vector.load %arg10[%c0_7, %c1, %c1_8, %c0_9] : memref<1x18x18x2xf32, #tpu.memory_space<vmem>>, vector<1x16x16x2xf32>
    tpu.vector_store %arg10[%c0_7, %c1, %c1_8, %c0_9], %4 {strides = array<i32>} : memref<1x18x18x2xf32, #tpu.memory_space<vmem>>, vector<1x16x16x2xf32>,
    %c0_10 = arith.constant 0 : index
    %c0_11 = arith.constant 0 : index
    %c0_12 = arith.constant 0 : index
    %6 = vector.load %arg2[%c0_10, %c0_11, %c0_12] : memref<2x9x2xf32, #tpu.memory_space<vmem>>, vector<1x9x2xf32>
    %7 = vector.shape_cast %6 : vector<1x9x2xf32> to vector<9x2xf32>
    %cst_13 = arith.constant 0.000000e+00 : f32
    %8 = vector.broadcast %cst_13 : f32 to vector<1x16x16x2xf32>
    %c0_14 = arith.constant 0 : index
    %c0_15 = arith.constant 0 : index
    %c0_16 = arith.constant 0 : index
    %c0_17 = arith.constant 0 : index
    %9 = vector.load %arg10[%c0_14, %c0_15, %c0_16, %c0_17] : memref<1x18x18x2xf32, #tpu.memory_space<vmem>>, vector<1x18x16x2xf32>
    %10 = vector.extract_strided_slice %9 {offsets = [0, 0, 0, 0], sizes = [1, 16, 16, 2], strides = [1, 1, 1, 1]} : vector<1x18x16x2xf32> to vector<1x16x16x2xf32>
    %11 = vector.extract_strided_slice %7 {offsets = [0, 0], sizes = [1, 2], strides = [1, 1]} : vector<9x2xf32> to vector<1x2xf32>
    %12 = vector.shape_cast %11 : vector<1x2xf32> to vector<2xf32>
    %13 = vector.shape_cast %12 : vector<2xf32> to vector<1x1x1x2xf32>
    %14 = vector.broadcast %13 : vector<1x1x1x2xf32> to vector<1x16x16x2xf32>
    %15 = arith.mulf %10, %14 : vector<1x16x16x2xf32>
    %16 = arith.addf %8, %15 : vector<1x16x16x2xf32>
    %17 = vector.extract_strided_slice %9 {offsets = [0, 1, 0, 0], sizes = [1, 16, 16, 2], strides = [1, 1, 1, 1]} : vector<1x18x16x2xf32> to vector<1x16x16x2xf32>
    %18 = vector.extract_strided_slice %7 {offsets = [3, 0], sizes = [1, 2], strides = [1, 1]} : vector<9x2xf32> to vector<1x2xf32>
    %19 = vector.shape_cast %18 : vector<1x2xf32> to vector<2xf32>
    %20 = vector.shape_cast %19 : vector<2xf32> to vector<1x1x1x2xf32>
    %21 = vector.broadcast %20 : vector<1x1x1x2xf32> to vector<1x16x16x2xf32>
    %22 = arith.mulf %17, %21 : vector<1x16x16x2xf32>
    %23 = arith.addf %16, %22 : vector<1x16x16x2xf32>
    %24 = vector.extract_strided_slice %9 {offsets = [0, 2, 0, 0], sizes = [1, 16, 16, 2], strides = [1, 1, 1, 1]} : vector<1x18x16x2xf32> to vector<1x16x16x2xf32>
    %25 = vector.extract_strided_slice %7 {offsets = [6, 0], sizes = [1, 2], strides = [1, 1]} : vector<9x2xf32> to vector<1x2xf32>
    %26 = vector.shape_cast %25 : vector<1x2xf32> to vector<2xf32>
    %27 = vector.shape_cast %26 : vector<2xf32> to vector<1x1x1x2xf32>
    %28 = vector.broadcast %27 : vector<1x1x1x2xf32> to vector<1x16x16x2xf32>
    %29 = arith.mulf %24, %28 : vector<1x16x16x2xf32>
    %30 = arith.addf %23, %29 : vector<1x16x16x2xf32>
    %c0_18 = arith.constant 0 : index
    %c0_19 = arith.constant 0 : index
    %c1_20 = arith.constant 1 : index
    %c0_21 = arith.constant 0 : index
    %31 = vector.load %arg10[%c0_18, %c0_19, %c1_20, %c0_21] : memref<1x18x18x2xf32, #tpu.memory_space<vmem>>, vector<1x18x16x2xf32>
    %32 = vector.extract_strided_slice %31 {offsets = [0, 0, 0, 0], sizes = [1, 16, 16, 2], strides = [1, 1, 1, 1]} : vector<1x18x16x2xf32> to vector<1x16x16x2xf32>
    %33 = vector.extract_strided_slice %7 {offsets = [1, 0], sizes = [1, 2], strides = [1, 1]} : vector<9x2xf32> to vector<1x2xf32>
    %34 = vector.shape_cast %33 : vector<1x2xf32> to vector<2xf32>
    %35 = vector.shape_cast %34 : vector<2xf32> to vector<1x1x1x2xf32>
    %36 = vector.broadcast %35 : vector<1x1x1x2xf32> to vector<1x16x16x2xf32>
    %37 = arith.mulf %32, %36 : vector<1x16x16x2xf32>
    %38 = arith.addf %30, %37 : vector<1x16x16x2xf32>
    %39 = vector.extract_strided_slice %31 {offsets = [0, 1, 0, 0], sizes = [1, 16, 16, 2], strides = [1, 1, 1, 1]} : vector<1x18x16x2xf32> to vector<1x16x16x2xf32>
    %40 = vector.extract_strided_slice %7 {offsets = [4, 0], sizes = [1, 2], strides = [1, 1]} : vector<9x2xf32> to vector<1x2xf32>
    %41 = vector.shape_cast %40 : vector<1x2xf32> to vector<2xf32>
    %42 = vector.shape_cast %41 : vector<2xf32> to vector<1x1x1x2xf32>
    %43 = vector.broadcast %42 : vector<1x1x1x2xf32> to vector<1x16x16x2xf32>
    %44 = arith.mulf %39, %43 : vector<1x16x16x2xf32>
    %45 = arith.addf %38, %44 : vector<1x16x16x2xf32>
    %46 = vector.extract_strided_slice %31 {offsets = [0, 2, 0, 0], sizes = [1, 16, 16, 2], strides = [1, 1, 1, 1]} : vector<1x18x16x2xf32> to vector<1x16x16x2xf32>
    %47 = vector.extract_strided_slice %7 {offsets = [7, 0], sizes = [1, 2], strides = [1, 1]} : vector<9x2xf32> to vector<1x2xf32>
    %48 = vector.shape_cast %47 : vector<1x2xf32> to vector<2xf32>
    %49 = vector.shape_cast %48 : vector<2xf32> to vector<1x1x1x2xf32>
    %50 = vector.broadcast %49 : vector<1x1x1x2xf32> to vector<1x16x16x2xf32>
    %51 = arith.mulf %46, %50 : vector<1x16x16x2xf32>
    %52 = arith.addf %45, %51 : vector<1x16x16x2xf32>
    %c0_22 = arith.constant 0 : index
    %c0_23 = arith.constant 0 : index
    %c2 = arith.constant 2 : index
    %c0_24 = arith.constant 0 : index
    %53 = vector.load %arg10[%c0_22, %c0_23, %c2, %c0_24] : memref<1x18x18x2xf32, #tpu.memory_space<vmem>>, vector<1x18x16x2xf32>
    %54 = vector.extract_strided_slice %53 {offsets = [0, 0, 0, 0], sizes = [1, 16, 16, 2], strides = [1, 1, 1, 1]} : vector<1x18x16x2xf32> to vector<1x16x16x2xf32>
    %55 = vector.extract_strided_slice %7 {offsets = [2, 0], sizes = [1, 2], strides = [1, 1]} : vector<9x2xf32> to vector<1x2xf32>
    %56 = vector.shape_cast %55 : vector<1x2xf32> to vector<2xf32>
    %57 = vector.shape_cast %56 : vector<2xf32> to vector<1x1x1x2xf32>
    %58 = vector.broadcast %57 : vector<1x1x1x2xf32> to vector<1x16x16x2xf32>
    %59 = arith.mulf %54, %58 : vector<1x16x16x2xf32>
    %60 = arith.addf %52, %59 : vector<1x16x16x2xf32>
    %61 = vector.extract_strided_slice %53 {offsets = [0, 1, 0, 0], sizes = [1, 16, 16, 2], strides = [1, 1, 1, 1]} : vector<1x18x16x2xf32> to vector<1x16x16x2xf32>
    %62 = vector.extract_strided_slice %7 {offsets = [5, 0], sizes = [1, 2], strides = [1, 1]} : vector<9x2xf32> to vector<1x2xf32>
    %63 = vector.shape_cast %62 : vector<1x2xf32> to vector<2xf32>
    %64 = vector.shape_cast %63 : vector<2xf32> to vector<1x1x1x2xf32>
    %65 = vector.broadcast %64 : vector<1x1x1x2xf32> to vector<1x16x16x2xf32>
    %66 = arith.mulf %61, %65 : vector<1x16x16x2xf32>
    %67 = arith.addf %60, %66 : vector<1x16x16x2xf32>
    %68 = vector.extract_strided_slice %53 {offsets = [0, 2, 0, 0], sizes = [1, 16, 16, 2], strides = [1, 1, 1, 1]} : vector<1x18x16x2xf32> to vector<1x16x16x2xf32>
    %69 = vector.extract_strided_slice %7 {offsets = [8, 0], sizes = [1, 2], strides = [1, 1]} : vector<9x2xf32> to vector<1x2xf32>
    %70 = vector.shape_cast %69 : vector<1x2xf32> to vector<2xf32>
    %71 = vector.shape_cast %70 : vector<2xf32> to vector<1x1x1x2xf32>
    %72 = vector.broadcast %71 : vector<1x1x1x2xf32> to vector<1x16x16x2xf32>
    %73 = arith.mulf %68, %72 : vector<1x16x16x2xf32>
    %74 = arith.addf %67, %73 : vector<1x16x16x2xf32>
    %c0_25 = arith.constant 0 : index
    %c0_26 = arith.constant 0 : index
    %75 = vector.load %arg3[%c0_25, %c0_26] : memref<2x2xf32, #tpu.memory_space<vmem>>, vector<1x2xf32>
    %76 = vector.shape_cast %75 : vector<1x2xf32> to vector<2xf32>
    %77 = vector.shape_cast %76 : vector<2xf32> to vector<1x1x1x2xf32>
    %78 = vector.broadcast %77 : vector<1x1x1x2xf32> to vector<1x16x16x2xf32>
    %79 = arith.addf %74, %78 : vector<1x16x16x2xf32>
    %cst_27 = arith.constant 0.000000e+00 : f32
    %80 = vector.broadcast %cst_27 : f32 to vector<1x16x16x2xf32>
    %81 = arith.maximumf %79, %80 : vector<1x16x16x2xf32>
    %82 = vector.shape_cast %81 : vector<1x16x16x2xf32> to vector<256x2xf32>
    %c0_28 = arith.constant 0 : index
    %c0_29 = arith.constant 0 : index
    %c0_30 = arith.constant 0 : index
    %83 = vector.load %arg4[%c0_28, %c0_29, %c0_30] : memref<2x2x2xf32, #tpu.memory_space<vmem>>, vector<1x2x2xf32>
    %84 = vector.shape_cast %83 : vector<1x2x2xf32> to vector<2x2xf32>
    %cst_31 = arith.constant dense<0.000000e+00> : vector<256x2xf32>
    %85 = tpu.matmul %82, %84, %cst_31 {dimension_numbers = #tpu.dot_dimension_numbers<[1], [0], [0], [1], [0, 0, 1, 1], [], []>} : vector<256x2xf32>, vector<2x2xf32>, vector<256x2xf32> -> vector<256x2xf32>
    %c0_32 = arith.constant 0 : index
    %c0_33 = arith.constant 0 : index
    %86 = vector.load %arg5[%c0_32, %c0_33] : memref<2x2xf32, #tpu.memory_space<vmem>>, vector<1x2xf32>
    %87 = vector.shape_cast %86 : vector<1x2xf32> to vector<2xf32>
    %88 = vector.shape_cast %87 : vector<2xf32> to vector<1x2xf32>
    %89 = vector.broadcast %88 : vector<1x2xf32> to vector<256x2xf32>
    %90 = arith.addf %85, %89 : vector<256x2xf32>
    %cst_34 = arith.constant 0.000000e+00 : f32
    %91 = vector.broadcast %cst_34 : f32 to vector<256x2xf32>
    %92 = arith.maximumf %90, %91 : vector<256x2xf32>
    %93 = vector.shape_cast %3 : vector<1x16x16x2xf32> to vector<256x2xf32>
    %c0_35 = arith.constant 0 : index
    %c0_36 = arith.constant 0 : index
    %c0_37 = arith.constant 0 : index
    %94 = vector.load %arg6[%c0_35, %c0_36, %c0_37] : memref<2x2x4xf32, #tpu.memory_space<vmem>>, vector<1x2x4xf32>
    %95 = vector.shape_cast %94 : vector<1x2x4xf32> to vector<2x4xf32>
    %cst_38 = arith.constant dense<0.000000e+00> : vector<256x4xf32>
    %96 = tpu.matmul %93, %95, %cst_38 {dimension_numbers = #tpu.dot_dimension_numbers<[1], [0], [0], [1], [0, 0, 1, 1], [], []>} : vector<256x2xf32>, vector<2x4xf32>, vector<256x4xf32> -> vector<256x4xf32>
    %c0_39 = arith.constant 0 : index
    %c0_40 = arith.constant 0 : index
    %c0_41 = arith.constant 0 : index
    %97 = vector.load %arg7[%c0_39, %c0_40, %c0_41] : memref<2x2x4xf32, #tpu.memory_space<vmem>>, vector<1x2x4xf32>
    %98 = vector.shape_cast %97 : vector<1x2x4xf32> to vector<2x4xf32>
    %cst_42 = arith.constant dense<0.000000e+00> : vector<256x4xf32>
    %99 = tpu.matmul %92, %98, %cst_42 {dimension_numbers = #tpu.dot_dimension_numbers<[1], [0], [0], [1], [0, 0, 1, 1], [], []>} : vector<256x2xf32>, vector<2x4xf32>, vector<256x4xf32> -> vector<256x4xf32>
    %100 = arith.addf %96, %99 : vector<256x4xf32>
    %c0_43 = arith.constant 0 : index
    %c0_44 = arith.constant 0 : index
    %101 = vector.load %arg8[%c0_43, %c0_44] : memref<2x4xf32, #tpu.memory_space<vmem>>, vector<1x4xf32>
    %102 = vector.shape_cast %101 : vector<1x4xf32> to vector<4xf32>
    %103 = vector.shape_cast %102 : vector<4xf32> to vector<1x4xf32>
    %104 = vector.broadcast %103 : vector<1x4xf32> to vector<256x4xf32>
    %105 = arith.addf %100, %104 : vector<256x4xf32>
    %cst_45 = arith.constant 0.000000e+00 : f32
    %106 = vector.broadcast %cst_45 : f32 to vector<256x4xf32>
    %107 = arith.maximumf %105, %106 : vector<256x4xf32>
    %108 = vector.shape_cast %107 : vector<256x4xf32> to vector<1x16x16x4xf32>
    %109 = vector.extract_strided_slice %108 {offsets = [0, 0, 0, 0], sizes = [1, 16, 16, 2], strides = [1, 1, 1, 1]} : vector<1x16x16x4xf32> to vector<1x16x16x2xf32>
    %110 = vector.extract_strided_slice %108 {offsets = [0, 0, 0, 2], sizes = [1, 16, 16, 2], strides = [1, 1, 1, 1]} : vector<1x16x16x4xf32> to vector<1x16x16x2xf32>
    %c0_46 = arith.constant 0 : index
    %c1_47 = arith.constant 1 : index
    %c1_48 = arith.constant 1 : index
    %c0_49 = arith.constant 0 : index
    %111 = vector.load %arg10[%c0_46, %c1_47, %c1_48, %c0_49] : memref<1x18x18x2xf32, #tpu.memory_space<vmem>>, vector<1x16x16x2xf32>
    tpu.vector_store %arg10[%c0_46, %c1_47, %c1_48, %c0_49], %110 {strides = array<i32>} : memref<1x18x18x2xf32, #tpu.memory_space<vmem>>, vector<1x16x16x2xf32>,
    %c1_50 = arith.constant 1 : index
    %c0_51 = arith.constant 0 : index
    %c0_52 = arith.constant 0 : index
    %112 = vector.load %arg2[%c1_50, %c0_51, %c0_52] : memref<2x9x2xf32, #tpu.memory_space<vmem>>, vector<1x9x2xf32>
    %113 = vector.shape_cast %112 : vector<1x9x2xf32> to vector<9x2xf32>
    %cst_53 = arith.constant 0.000000e+00 : f32
    %114 = vector.broadcast %cst_53 : f32 to vector<1x16x16x2xf32>
    %c0_54 = arith.constant 0 : index
    %c0_55 = arith.constant 0 : index
    %c0_56 = arith.constant 0 : index
    %c0_57 = arith.constant 0 : index
    %115 = vector.load %arg10[%c0_54, %c0_55, %c0_56, %c0_57] : memref<1x18x18x2xf32, #tpu.memory_space<vmem>>, vector<1x18x16x2xf32>
    %116 = vector.extract_strided_slice %115 {offsets = [0, 0, 0, 0], sizes = [1, 16, 16, 2], strides = [1, 1, 1, 1]} : vector<1x18x16x2xf32> to vector<1x16x16x2xf32>
    %117 = vector.extract_strided_slice %113 {offsets = [0, 0], sizes = [1, 2], strides = [1, 1]} : vector<9x2xf32> to vector<1x2xf32>
    %118 = vector.shape_cast %117 : vector<1x2xf32> to vector<2xf32>
    %119 = vector.shape_cast %118 : vector<2xf32> to vector<1x1x1x2xf32>
    %120 = vector.broadcast %119 : vector<1x1x1x2xf32> to vector<1x16x16x2xf32>
    %121 = arith.mulf %116, %120 : vector<1x16x16x2xf32>
    %122 = arith.addf %114, %121 : vector<1x16x16x2xf32>
    %123 = vector.extract_strided_slice %115 {offsets = [0, 1, 0, 0], sizes = [1, 16, 16, 2], strides = [1, 1, 1, 1]} : vector<1x18x16x2xf32> to vector<1x16x16x2xf32>
    %124 = vector.extract_strided_slice %113 {offsets = [3, 0], sizes = [1, 2], strides = [1, 1]} : vector<9x2xf32> to vector<1x2xf32>
    %125 = vector.shape_cast %124 : vector<1x2xf32> to vector<2xf32>
    %126 = vector.shape_cast %125 : vector<2xf32> to vector<1x1x1x2xf32>
    %127 = vector.broadcast %126 : vector<1x1x1x2xf32> to vector<1x16x16x2xf32>
    %128 = arith.mulf %123, %127 : vector<1x16x16x2xf32>
    %129 = arith.addf %122, %128 : vector<1x16x16x2xf32>
    %130 = vector.extract_strided_slice %115 {offsets = [0, 2, 0, 0], sizes = [1, 16, 16, 2], strides = [1, 1, 1, 1]} : vector<1x18x16x2xf32> to vector<1x16x16x2xf32>
    %131 = vector.extract_strided_slice %113 {offsets = [6, 0], sizes = [1, 2], strides = [1, 1]} : vector<9x2xf32> to vector<1x2xf32>
    %132 = vector.shape_cast %131 : vector<1x2xf32> to vector<2xf32>
    %133 = vector.shape_cast %132 : vector<2xf32> to vector<1x1x1x2xf32>
    %134 = vector.broadcast %133 : vector<1x1x1x2xf32> to vector<1x16x16x2xf32>
    %135 = arith.mulf %130, %134 : vector<1x16x16x2xf32>
    %136 = arith.addf %129, %135 : vector<1x16x16x2xf32>
    %c0_58 = arith.constant 0 : index
    %c0_59 = arith.constant 0 : index
    %c1_60 = arith.constant 1 : index
    %c0_61 = arith.constant 0 : index
    %137 = vector.load %arg10[%c0_58, %c0_59, %c1_60, %c0_61] : memref<1x18x18x2xf32, #tpu.memory_space<vmem>>, vector<1x18x16x2xf32>
    %138 = vector.extract_strided_slice %137 {offsets = [0, 0, 0, 0], sizes = [1, 16, 16, 2], strides = [1, 1, 1, 1]} : vector<1x18x16x2xf32> to vector<1x16x16x2xf32>
    %139 = vector.extract_strided_slice %113 {offsets = [1, 0], sizes = [1, 2], strides = [1, 1]} : vector<9x2xf32> to vector<1x2xf32>
    %140 = vector.shape_cast %139 : vector<1x2xf32> to vector<2xf32>
    %141 = vector.shape_cast %140 : vector<2xf32> to vector<1x1x1x2xf32>
    %142 = vector.broadcast %141 : vector<1x1x1x2xf32> to vector<1x16x16x2xf32>
    %143 = arith.mulf %138, %142 : vector<1x16x16x2xf32>
    %144 = arith.addf %136, %143 : vector<1x16x16x2xf32>
    %145 = vector.extract_strided_slice %137 {offsets = [0, 1, 0, 0], sizes = [1, 16, 16, 2], strides = [1, 1, 1, 1]} : vector<1x18x16x2xf32> to vector<1x16x16x2xf32>
    %146 = vector.extract_strided_slice %113 {offsets = [4, 0], sizes = [1, 2], strides = [1, 1]} : vector<9x2xf32> to vector<1x2xf32>
    %147 = vector.shape_cast %146 : vector<1x2xf32> to vector<2xf32>
    %148 = vector.shape_cast %147 : vector<2xf32> to vector<1x1x1x2xf32>
    %149 = vector.broadcast %148 : vector<1x1x1x2xf32> to vector<1x16x16x2xf32>
    %150 = arith.mulf %145, %149 : vector<1x16x16x2xf32>
    %151 = arith.addf %144, %150 : vector<1x16x16x2xf32>
    %152 = vector.extract_strided_slice %137 {offsets = [0, 2, 0, 0], sizes = [1, 16, 16, 2], strides = [1, 1, 1, 1]} : vector<1x18x16x2xf32> to vector<1x16x16x2xf32>
    %153 = vector.extract_strided_slice %113 {offsets = [7, 0], sizes = [1, 2], strides = [1, 1]} : vector<9x2xf32> to vector<1x2xf32>
    %154 = vector.shape_cast %153 : vector<1x2xf32> to vector<2xf32>
    %155 = vector.shape_cast %154 : vector<2xf32> to vector<1x1x1x2xf32>
    %156 = vector.broadcast %155 : vector<1x1x1x2xf32> to vector<1x16x16x2xf32>
    %157 = arith.mulf %152, %156 : vector<1x16x16x2xf32>
    %158 = arith.addf %151, %157 : vector<1x16x16x2xf32>
    %c0_62 = arith.constant 0 : index
    %c0_63 = arith.constant 0 : index
    %c2_64 = arith.constant 2 : index
    %c0_65 = arith.constant 0 : index
    %159 = vector.load %arg10[%c0_62, %c0_63, %c2_64, %c0_65] : memref<1x18x18x2xf32, #tpu.memory_space<vmem>>, vector<1x18x16x2xf32>
    %160 = vector.extract_strided_slice %159 {offsets = [0, 0, 0, 0], sizes = [1, 16, 16, 2], strides = [1, 1, 1, 1]} : vector<1x18x16x2xf32> to vector<1x16x16x2xf32>
    %161 = vector.extract_strided_slice %113 {offsets = [2, 0], sizes = [1, 2], strides = [1, 1]} : vector<9x2xf32> to vector<1x2xf32>
    %162 = vector.shape_cast %161 : vector<1x2xf32> to vector<2xf32>
    %163 = vector.shape_cast %162 : vector<2xf32> to vector<1x1x1x2xf32>
    %164 = vector.broadcast %163 : vector<1x1x1x2xf32> to vector<1x16x16x2xf32>
    %165 = arith.mulf %160, %164 : vector<1x16x16x2xf32>
    %166 = arith.addf %158, %165 : vector<1x16x16x2xf32>
    %167 = vector.extract_strided_slice %159 {offsets = [0, 1, 0, 0], sizes = [1, 16, 16, 2], strides = [1, 1, 1, 1]} : vector<1x18x16x2xf32> to vector<1x16x16x2xf32>
    %168 = vector.extract_strided_slice %113 {offsets = [5, 0], sizes = [1, 2], strides = [1, 1]} : vector<9x2xf32> to vector<1x2xf32>
    %169 = vector.shape_cast %168 : vector<1x2xf32> to vector<2xf32>
    %170 = vector.shape_cast %169 : vector<2xf32> to vector<1x1x1x2xf32>
    %171 = vector.broadcast %170 : vector<1x1x1x2xf32> to vector<1x16x16x2xf32>
    %172 = arith.mulf %167, %171 : vector<1x16x16x2xf32>
    %173 = arith.addf %166, %172 : vector<1x16x16x2xf32>
    %174 = vector.extract_strided_slice %159 {offsets = [0, 2, 0, 0], sizes = [1, 16, 16, 2], strides = [1, 1, 1, 1]} : vector<1x18x16x2xf32> to vector<1x16x16x2xf32>
    %175 = vector.extract_strided_slice %113 {offsets = [8, 0], sizes = [1, 2], strides = [1, 1]} : vector<9x2xf32> to vector<1x2xf32>
    %176 = vector.shape_cast %175 : vector<1x2xf32> to vector<2xf32>
    %177 = vector.shape_cast %176 : vector<2xf32> to vector<1x1x1x2xf32>
    %178 = vector.broadcast %177 : vector<1x1x1x2xf32> to vector<1x16x16x2xf32>
    %179 = arith.mulf %174, %178 : vector<1x16x16x2xf32>
    %180 = arith.addf %173, %179 : vector<1x16x16x2xf32>
    %c1_66 = arith.constant 1 : index
    %c0_67 = arith.constant 0 : index
    %181 = vector.load %arg3[%c1_66, %c0_67] : memref<2x2xf32, #tpu.memory_space<vmem>>, vector<1x2xf32>
    %182 = vector.shape_cast %181 : vector<1x2xf32> to vector<2xf32>
    %183 = vector.shape_cast %182 : vector<2xf32> to vector<1x1x1x2xf32>
    %184 = vector.broadcast %183 : vector<1x1x1x2xf32> to vector<1x16x16x2xf32>
    %185 = arith.addf %180, %184 : vector<1x16x16x2xf32>
    %cst_68 = arith.constant 0.000000e+00 : f32
    %186 = vector.broadcast %cst_68 : f32 to vector<1x16x16x2xf32>
    %187 = arith.maximumf %185, %186 : vector<1x16x16x2xf32>
    %188 = vector.shape_cast %187 : vector<1x16x16x2xf32> to vector<256x2xf32>
    %c1_69 = arith.constant 1 : index
    %c0_70 = arith.constant 0 : index
    %c0_71 = arith.constant 0 : index
    %189 = vector.load %arg4[%c1_69, %c0_70, %c0_71] : memref<2x2x2xf32, #tpu.memory_space<vmem>>, vector<1x2x2xf32>
    %190 = vector.shape_cast %189 : vector<1x2x2xf32> to vector<2x2xf32>
    %cst_72 = arith.constant dense<0.000000e+00> : vector<256x2xf32>
    %191 = tpu.matmul %188, %190, %cst_72 {dimension_numbers = #tpu.dot_dimension_numbers<[1], [0], [0], [1], [0, 0, 1, 1], [], []>} : vector<256x2xf32>, vector<2x2xf32>, vector<256x2xf32> -> vector<256x2xf32>
    %c1_73 = arith.constant 1 : index
    %c0_74 = arith.constant 0 : index
    %192 = vector.load %arg5[%c1_73, %c0_74] : memref<2x2xf32, #tpu.memory_space<vmem>>, vector<1x2xf32>
    %193 = vector.shape_cast %192 : vector<1x2xf32> to vector<2xf32>
    %194 = vector.shape_cast %193 : vector<2xf32> to vector<1x2xf32>
    %195 = vector.broadcast %194 : vector<1x2xf32> to vector<256x2xf32>
    %196 = arith.addf %191, %195 : vector<256x2xf32>
    %cst_75 = arith.constant 0.000000e+00 : f32
    %197 = vector.broadcast %cst_75 : f32 to vector<256x2xf32>
    %198 = arith.maximumf %196, %197 : vector<256x2xf32>
    %199 = vector.shape_cast %109 : vector<1x16x16x2xf32> to vector<256x2xf32>
    %c1_76 = arith.constant 1 : index
    %c0_77 = arith.constant 0 : index
    %c0_78 = arith.constant 0 : index
    %200 = vector.load %arg6[%c1_76, %c0_77, %c0_78] : memref<2x2x4xf32, #tpu.memory_space<vmem>>, vector<1x2x4xf32>
    %201 = vector.shape_cast %200 : vector<1x2x4xf32> to vector<2x4xf32>
    %cst_79 = arith.constant dense<0.000000e+00> : vector<256x4xf32>
    %202 = tpu.matmul %199, %201, %cst_79 {dimension_numbers = #tpu.dot_dimension_numbers<[1], [0], [0], [1], [0, 0, 1, 1], [], []>} : vector<256x2xf32>, vector<2x4xf32>, vector<256x4xf32> -> vector<256x4xf32>
    %c1_80 = arith.constant 1 : index
    %c0_81 = arith.constant 0 : index
    %c0_82 = arith.constant 0 : index
    %203 = vector.load %arg7[%c1_80, %c0_81, %c0_82] : memref<2x2x4xf32, #tpu.memory_space<vmem>>, vector<1x2x4xf32>
    %204 = vector.shape_cast %203 : vector<1x2x4xf32> to vector<2x4xf32>
    %cst_83 = arith.constant dense<0.000000e+00> : vector<256x4xf32>
    %205 = tpu.matmul %198, %204, %cst_83 {dimension_numbers = #tpu.dot_dimension_numbers<[1], [0], [0], [1], [0, 0, 1, 1], [], []>} : vector<256x2xf32>, vector<2x4xf32>, vector<256x4xf32> -> vector<256x4xf32>
    %206 = arith.addf %202, %205 : vector<256x4xf32>
    %c1_84 = arith.constant 1 : index
    %c0_85 = arith.constant 0 : index
    %207 = vector.load %arg8[%c1_84, %c0_85] : memref<2x4xf32, #tpu.memory_space<vmem>>, vector<1x4xf32>
    %208 = vector.shape_cast %207 : vector<1x4xf32> to vector<4xf32>
    %209 = vector.shape_cast %208 : vector<4xf32> to vector<1x4xf32>
    %210 = vector.broadcast %209 : vector<1x4xf32> to vector<256x4xf32>
    %211 = arith.addf %206, %210 : vector<256x4xf32>
    %cst_86 = arith.constant 0.000000e+00 : f32
    %212 = vector.broadcast %cst_86 : f32 to vector<256x4xf32>
    %213 = arith.maximumf %211, %212 : vector<256x4xf32>
    %214 = vector.shape_cast %213 : vector<256x4xf32> to vector<1x16x16x4xf32>
    %c0_87 = arith.constant 0 : index
    %c0_88 = arith.constant 0 : index
    %c0_89 = arith.constant 0 : index
    %c0_90 = arith.constant 0 : index
    %215 = vector.load %arg9[%c0_87, %c0_88, %c0_89, %c0_90] : memref<1x16x16x4xf32, #tpu.memory_space<vmem>>, vector<1x16x16x4xf32>
    tpu.vector_store %arg9[%c0_87, %c0_88, %c0_89, %c0_90], %214 {strides = array<i32>} : memref<1x16x16x4xf32, #tpu.memory_space<vmem>>, vector<1x16x16x4xf32>,
    return
  }
  func.func @transform_0(%arg0: i32) -> (i32, i32, i32, i32) {
    %c0_i32 = arith.constant 0 : i32
    %c0_i32_0 = arith.constant 0 : i32
    %c0_i32_1 = arith.constant 0 : i32
    %c0_i32_2 = arith.constant 0 : i32
    return %arg0, %c0_i32, %c0_i32_0, %c0_i32_1 : i32, i32, i32, i32
  }
  func.func @transform_1(%arg0: i32) -> (i32, i32, i32) {
    %c0_i32 = arith.constant 0 : i32
    %c0_i32_0 = arith.constant 0 : i32
    %c0_i32_1 = arith.constant 0 : i32
    %c0_i32_2 = arith.constant 0 : i32
    return %c0_i32, %c0_i32_0, %c0_i32_1 : i32, i32, i32
  }
  func.func @transform_2(%arg0: i32) -> (i32, i32) {
    %c0_i32 = arith.constant 0 : i32
    %c0_i32_0 = arith.constant 0 : i32
    %c0_i32_1 = arith.constant 0 : i32
    return %c0_i32, %c0_i32_0 : i32, i32
  }
  func.func @transform_3(%arg0: i32) -> (i32, i32, i32) {
    %c0_i32 = arith.constant 0 : i32
    %c0_i32_0 = arith.constant 0 : i32
    %c0_i32_1 = arith.constant 0 : i32
    %c0_i32_2 = arith.constant 0 : i32
    return %c0_i32, %c0_i32_0, %c0_i32_1 : i32, i32, i32
  }
  func.func @transform_4(%arg0: i32) -> (i32, i32) {
    %c0_i32 = arith.constant 0 : i32
    %c0_i32_0 = arith.constant 0 : i32
    %c0_i32_1 = arith.constant 0 : i32
    return %c0_i32, %c0_i32_0 : i32, i32
  }
  func.func @transform_5(%arg0: i32) -> (i32, i32, i32) {
    %c0_i32 = arith.constant 0 : i32
    %c0_i32_0 = arith.constant 0 : i32
    %c0_i32_1 = arith.constant 0 : i32
    %c0_i32_2 = arith.constant 0 : i32
    return %c0_i32, %c0_i32_0, %c0_i32_1 : i32, i32, i32
  }
  func.func @transform_6(%arg0: i32) -> (i32, i32, i32) {
    %c0_i32 = arith.constant 0 : i32
    %c0_i32_0 = arith.constant 0 : i32
    %c0_i32_1 = arith.constant 0 : i32
    %c0_i32_2 = arith.constant 0 : i32
    return %c0_i32, %c0_i32_0, %c0_i32_1 : i32, i32, i32
  }
  func.func @transform_7(%arg0: i32) -> (i32, i32) {
    %c0_i32 = arith.constant 0 : i32
    %c0_i32_0 = arith.constant 0 : i32
    %c0_i32_1 = arith.constant 0 : i32
    return %c0_i32, %c0_i32_0 : i32, i32
  }
  func.func @transform_8(%arg0: i32) -> (i32, i32, i32, i32) {
    %c0_i32 = arith.constant 0 : i32
    %c0_i32_0 = arith.constant 0 : i32
    %c0_i32_1 = arith.constant 0 : i32
    %c0_i32_2 = arith.constant 0 : i32
    return %arg0, %c0_i32, %c0_i32_0, %c0_i32_1 : i32, i32, i32, i32
  }
}

</mosaic_0001>

<llo_original>
// kernel: tpu_custom_call.1
$region0: #{tpu_custom_call.1}
  #allocation0 [shape = 'u32[]', space=smem, size = 0x4, offset = 0x4, fixed_abs, tag = 'smem constant byte address 0x4 - core index']
  #allocation1 [shape = 'u32[144,128]{1,0:T(1,128)}', space=vmem, size = 0x12000, scoped, tag = 'internal scratch']
  #allocation2 [shape = 'f32[1,18,18,2]{3,2,1,0:T(8,128)}', space=vmem, size = 0x36000, scoped, tag = 'scratch operand']
  %s0 = inlined_call_operand.vmem [shape: f32[2,16,16,4], index: 0, kind: input, shape index: {}]
  %s1 = inlined_call_operand.vmem [shape: f32[2,9,2], index: 1, kind: input, shape index: {}]
  %s2 = inlined_call_operand.vmem [shape: f32[2,2], index: 2, kind: input, shape index: {}]
  %s3 = inlined_call_operand.vmem [shape: f32[2,2,2], index: 3, kind: input, shape index: {}]
  %s4 = inlined_call_operand.vmem [shape: f32[2,2], index: 4, kind: input, shape index: {}]
  %s5 = inlined_call_operand.vmem [shape: f32[2,2,4], index: 5, kind: input, shape index: {}]
  %s6 = inlined_call_operand.vmem [shape: f32[2,2,4], index: 6, kind: input, shape index: {}]
  %s7 = inlined_call_operand.vmem [shape: f32[2,4], index: 7, kind: input, shape index: {}]
  %s8 = inlined_call_operand.vmem [shape: f32[2,16,16,4], index: 8, kind: output, shape index: {}]
  %s9 = sld [smem:[#allocation0]]
  $region65: #{tpu_custom_call.1} parent=0
    _
  %s11 = ssub.s32 1, %s9
  %s12 = scalar_select 0, %s11, %s9
  loop: start=0, step=1, limit=4
  $region2: #{tpu_custom_call.1} parent=0 // loop_pre_header
    _
  $region3: #{tpu_custom_call.1} parent=0 // loop_header
    %s14 = sphi 0, %s18
    %p15 = scmp.ge.s32.totalorder %s14, 4
    %s24 = sphi 0, %s26
    %s27 = sphi 0, %s24
    %s28 = sphi 0, %s27
    %s44 = sphi 0, %s28
    %s48 = sphi 0, %s48
    %s50 = sphi 0, %s48
    %s51 = sphi 0, %s50
    %s65 = sphi 0, %s51
    %s69 = sphi 0, %s69
    %s71 = sphi 0, %s69
    %s72 = sphi 0, %s71
    %s86 = sphi 0, %s72
    %s90 = sphi 0, %s90
    %s92 = sphi 0, %s90
    %s93 = sphi 0, %s92
    %s107 = sphi 0, %s93
    %s111 = sphi 0, %s111
    %s113 = sphi 0, %s111
    %s114 = sphi 0, %s113
    %s128 = sphi 0, %s114
    %s132 = sphi 0, %s132
    %s134 = sphi 0, %s132
    %s135 = sphi 0, %s134
    %s149 = sphi 0, %s135
    %s153 = sphi 0, %s153
    %s155 = sphi 0, %s153
    %s156 = sphi 0, %s155
    %s170 = sphi 0, %s156
    %s174 = sphi 0, %s174
    %s176 = sphi 0, %s174
    %s177 = sphi 0, %s176
    %s191 = sphi 0, %s177
    %s197 = sphi 0, %s199
    %s200 = sphi 0, %s197
    %s201 = sphi 0, %s200
    %s217 = sphi 0, %s201
  $region4: #{tpu_custom_call.1} parent=0 // loop_header_branch
    %17 = sbr.rel (%p15) target = $region8
  $region5: #{tpu_custom_call.1} parent=0 // loop_body
    %s19 = ssub.s32 %s14, 1
    %s20 = ssub.s32 %s14, 2
    %s21 = sadd.s32 %s14, 1
    %s22 = ssub.s32 %s14, %s21
    %p23 = scmp.eq.s32.totalorder %s22, 0
    %s25 = sadd.s32 %s24, 1
    %s26 = scalar_select %p23, %s24, %s25
    %p29 = pneg %p23
    %p30 = scmp.eq.s32.totalorder %s14, 1
    %p31 = por %p29, %p30
    %p32 = scmp.ne.s32.totalorder %s24, %s27
    %p33 = scmp.eq.s32.totalorder %s14, 0
    %p34 = por %p32, %p33
    %p35 = scmp.ne.s32.totalorder %s24, %s27
    %p36 = scmp.eq.s32.totalorder %s19, 1
    %p37 = por %p35, %p36
    %p38 = scmp.ne.s32.totalorder %s27, %s28
    %p39 = scmp.eq.s32.totalorder %s19, 0
    %p40 = por %p38, %p39
    %p41 = scmp.ne.s32.totalorder %s27, %s28
    %p42 = scmp.eq.s32.totalorder %s20, 1
    %p43 = por %p41, %p42
    %p45 = scmp.ne.s32.totalorder %s28, %s44
    %p46 = scmp.eq.s32.totalorder %s20, 0
    %p47 = por %p45, %p46
    %s49 = sadd.s32 %s48, 1
    %p52 = scmp.eq.s32.totalorder %s14, 1
    %p53 = scmp.ne.s32.totalorder %s48, %s50
    %p54 = scmp.eq.s32.totalorder %s14, 0
    %p55 = por %p53, %p54
    %p56 = scmp.ne.s32.totalorder %s48, %s50
    %p57 = scmp.eq.s32.totalorder %s19, 1
    %p58 = por %p56, %p57
    %p59 = scmp.ne.s32.totalorder %s50, %s51
    %p60 = scmp.eq.s32.totalorder %s19, 0
    %p61 = por %p59, %p60
    %p62 = scmp.ne.s32.totalorder %s50, %s51
    %p63 = scmp.eq.s32.totalorder %s20, 1
    %p64 = por %p62, %p63
    %p66 = scmp.ne.s32.totalorder %s51, %s65
    %p67 = scmp.eq.s32.totalorder %s20, 0
    %p68 = por %p66, %p67
    %s70 = sadd.s32 %s69, 1
    %p73 = scmp.eq.s32.totalorder %s14, 1
    %p74 = scmp.ne.s32.totalorder %s69, %s71
    %p75 = scmp.eq.s32.totalorder %s14, 0
    %p76 = por %p74, %p75
    %p77 = scmp.ne.s32.totalorder %s69, %s71
    %p78 = scmp.eq.s32.totalorder %s19, 1
    %p79 = por %p77, %p78
    %p80 = scmp.ne.s32.totalorder %s71, %s72
    %p81 = scmp.eq.s32.totalorder %s19, 0
    %p82 = por %p80, %p81
    %p83 = scmp.ne.s32.totalorder %s71, %s72
    %p84 = scmp.eq.s32.totalorder %s20, 1
    %p85 = por %p83, %p84
    %p87 = scmp.ne.s32.totalorder %s72, %s86
    %p88 = scmp.eq.s32.totalorder %s20, 0
    %p89 = por %p87, %p88
    %s91 = sadd.s32 %s90, 1
    %p94 = scmp.eq.s32.totalorder %s14, 1
    %p95 = scmp.ne.s32.totalorder %s90, %s92
    %p96 = scmp.eq.s32.totalorder %s14, 0
    %p97 = por %p95, %p96
    %p98 = scmp.ne.s32.totalorder %s90, %s92
    %p99 = scmp.eq.s32.totalorder %s19, 1
    %p100 = por %p98, %p99
    %p101 = scmp.ne.s32.totalorder %s92, %s93
    %p102 = scmp.eq.s32.totalorder %s19, 0
    %p103 = por %p101, %p102
    %p104 = scmp.ne.s32.totalorder %s92, %s93
    %p105 = scmp.eq.s32.totalorder %s20, 1
    %p106 = por %p104, %p105
    %p108 = scmp.ne.s32.totalorder %s93, %s107
    %p109 = scmp.eq.s32.totalorder %s20, 0
    %p110 = por %p108, %p109
    %s112 = sadd.s32 %s111, 1
    %p115 = scmp.eq.s32.totalorder %s14, 1
    %p116 = scmp.ne.s32.totalorder %s111, %s113
    %p117 = scmp.eq.s32.totalorder %s14, 0
    %p118 = por %p116, %p117
    %p119 = scmp.ne.s32.totalorder %s111, %s113
    %p120 = scmp.eq.s32.totalorder %s19, 1
    %p121 = por %p119, %p120
    %p122 = scmp.ne.s32.totalorder %s113, %s114
    %p123 = scmp.eq.s32.totalorder %s19, 0
    %p124 = por %p122, %p123
    %p125 = scmp.ne.s32.totalorder %s113, %s114
    %p126 = scmp.eq.s32.totalorder %s20, 1
    %p127 = por %p125, %p126
    %p129 = scmp.ne.s32.totalorder %s114, %s128
    %p130 = scmp.eq.s32.totalorder %s20, 0
    %p131 = por %p129, %p130
    %s133 = sadd.s32 %s132, 1
    %p136 = scmp.eq.s32.totalorder %s14, 1
    %p137 = scmp.ne.s32.totalorder %s132, %s134
    %p138 = scmp.eq.s32.totalorder %s14, 0
    %p139 = por %p137, %p138
    %p140 = scmp.ne.s32.totalorder %s132, %s134
    %p141 = scmp.eq.s32.totalorder %s19, 1
    %p142 = por %p140, %p141
    %p143 = scmp.ne.s32.totalorder %s134, %s135
    %p144 = scmp.eq.s32.totalorder %s19, 0
    %p145 = por %p143, %p144
    %p146 = scmp.ne.s32.totalorder %s134, %s135
    %p147 = scmp.eq.s32.totalorder %s20, 1
    %p148 = por %p146, %p147
    %p150 = scmp.ne.s32.totalorder %s135, %s149
    %p151 = scmp.eq.s32.totalorder %s20, 0
    %p152 = por %p150, %p151
    %s154 = sadd.s32 %s153, 1
    %p157 = scmp.eq.s32.totalorder %s14, 1
    %p158 = scmp.ne.s32.totalorder %s153, %s155
    %p159 = scmp.eq.s32.totalorder %s14, 0
    %p160 = por %p158, %p159
    %p161 = scmp.ne.s32.totalorder %s153, %s155
    %p162 = scmp.eq.s32.totalorder %s19, 1
    %p163 = por %p161, %p162
    %p164 = scmp.ne.s32.totalorder %s155, %s156
    %p165 = scmp.eq.s32.totalorder %s19, 0
    %p166 = por %p164, %p165
    %p167 = scmp.ne.s32.totalorder %s155, %s156
    %p168 = scmp.eq.s32.totalorder %s20, 1
    %p169 = por %p167, %p168
    %p171 = scmp.ne.s32.totalorder %s156, %s170
    %p172 = scmp.eq.s32.totalorder %s20, 0
    %p173 = por %p171, %p172
    %s175 = sadd.s32 %s174, 1
    %p178 = scmp.eq.s32.totalorder %s14, 1
    %p179 = scmp.ne.s32.totalorder %s174, %s176
    %p180 = scmp.eq.s32.totalorder %s14, 0
    %p181 = por %p179, %p180
    %p182 = scmp.ne.s32.totalorder %s174, %s176
    %p183 = scmp.eq.s32.totalorder %s19, 1
    %p184 = por %p182, %p183
    %p185 = scmp.ne.s32.totalorder %s176, %s177
    %p186 = scmp.eq.s32.totalorder %s19, 0
    %p187 = por %p185, %p186
    %p188 = scmp.ne.s32.totalorder %s176, %s177
    %p189 = scmp.eq.s32.totalorder %s20, 1
    %p190 = por %p188, %p189
    %p192 = scmp.ne.s32.totalorder %s177, %s191
    %p193 = scmp.eq.s32.totalorder %s20, 0
    %p194 = por %p192, %p193
    %s195 = ssub.s32 %s14, %s21
    %p196 = scmp.eq.s32.totalorder %s195, 0
    %s198 = sadd.s32 %s197, 1
    %s199 = scalar_select %p196, %s197, %s198
    %p202 = pneg %p196
    %p203 = scmp.eq.s32.totalorder %s14, 1
    %p204 = por %p202, %p203
    %p205 = scmp.ne.s32.totalorder %s197, %s200
    %p206 = scmp.eq.s32.totalorder %s14, 0
    %p207 = por %p205, %p206
    %p208 = scmp.ne.s32.totalorder %s197, %s200
    %p209 = scmp.eq.s32.totalorder %s19, 1
    %p210 = por %p208, %p209
    %p211 = scmp.ne.s32.totalorder %s200, %s201
    %p212 = scmp.eq.s32.totalorder %s19, 0
    %p213 = por %p211, %p212
    %p214 = scmp.ne.s32.totalorder %s200, %s201
    %p215 = scmp.eq.s32.totalorder %s20, 1
    %p216 = por %p214, %p215
    %p218 = scmp.ne.s32.totalorder %s201, %s217
    %p219 = scmp.eq.s32.totalorder %s20, 0
    %p220 = por %p218, %p219
    %p221 = scmp.le.s32.totalorder 1, %s14
    %p222 = scmp.lt.s32.totalorder %s14, 3
    %p223 = pnand %p221, %p222
    %p224 = pneg %p223
    // Predicated region
    $region9: #{tpu_custom_call.1} parent=5 // pred_check
      _
    $region10: #{tpu_custom_call.1} parent=5 // pred_check_branch
      %226 = sbr.rel (%p223) target = $region12
    $region11: #{tpu_custom_call.1} parent=5 // pred_region
      %s227 = ssub.s32 %s14, 1
      // Predicated region
      $region13: #{tpu_custom_call.1} parent=11 // pred_check
        %p228 = pneg %p61
      $region14: #{tpu_custom_call.1} parent=11 // pred_check_branch
        %230 = sbr.rel (%p228) target = $region16
      $region15: #{tpu_custom_call.1} parent=11 // pred_region
        _
      $region16: #{tpu_custom_call.1} parent=11 // pred_fallthru
        _
      // Predicated region
      $region17: #{tpu_custom_call.1} parent=11 // pred_check
        %p231 = pneg %p82
      $region18: #{tpu_custom_call.1} parent=11 // pred_check_branch
        %233 = sbr.rel (%p231) target = $region20
      $region19: #{tpu_custom_call.1} parent=11 // pred_region
        _
      $region20: #{tpu_custom_call.1} parent=11 // pred_fallthru
        _
      // Predicated region
      $region21: #{tpu_custom_call.1} parent=11 // pred_check
        %p234 = pneg %p103
      $region22: #{tpu_custom_call.1} parent=11 // pred_check_branch
        %236 = sbr.rel (%p234) target = $region24
      $region23: #{tpu_custom_call.1} parent=11 // pred_region
        _
      $region24: #{tpu_custom_call.1} parent=11 // pred_fallthru
        _
      // Predicated region
      $region25: #{tpu_custom_call.1} parent=11 // pred_check
        %p237 = pneg %p124
      $region26: #{tpu_custom_call.1} parent=11 // pred_check_branch
        %239 = sbr.rel (%p237) target = $region28
      $region27: #{tpu_custom_call.1} parent=11 // pred_region
        _
      $region28: #{tpu_custom_call.1} parent=11 // pred_fallthru
        _
      // Predicated region
      $region29: #{tpu_custom_call.1} parent=11 // pred_check
        %p240 = pneg %p145
      $region30: #{tpu_custom_call.1} parent=11 // pred_check_branch
        %242 = sbr.rel (%p240) target = $region32
      $region31: #{tpu_custom_call.1} parent=11 // pred_region
        _
      $region32: #{tpu_custom_call.1} parent=11 // pred_fallthru
        _
      // Predicated region
      $region33: #{tpu_custom_call.1} parent=11 // pred_check
        %p243 = pneg %p166
      $region34: #{tpu_custom_call.1} parent=11 // pred_check_branch
        %245 = sbr.rel (%p243) target = $region36
      $region35: #{tpu_custom_call.1} parent=11 // pred_region
        _
      $region36: #{tpu_custom_call.1} parent=11 // pred_fallthru
        _
      // Predicated region
      $region37: #{tpu_custom_call.1} parent=11 // pred_check
        %p246 = pneg %p187
      $region38: #{tpu_custom_call.1} parent=11 // pred_check_branch
        %248 = sbr.rel (%p246) target = $region40
      $region39: #{tpu_custom_call.1} parent=11 // pred_region
        _
      $region40: #{tpu_custom_call.1} parent=11 // pred_fallthru
        _
    $region12: #{tpu_custom_call.1} parent=5 // pred_fallthru
      _
    %p249 = scmp.lt.s32.totalorder %s14, 2
    // Predicated region
    $region41: #{tpu_custom_call.1} parent=5 // pred_check
      %p250 = pneg %p249
    $region42: #{tpu_custom_call.1} parent=5 // pred_check_branch
      %252 = sbr.rel (%p250) target = $region44
    $region43: #{tpu_custom_call.1} parent=5 // pred_region
      // Predicated region
      $region45: #{tpu_custom_call.1} parent=43 // pred_check
        %p253 = pneg %p34
      $region46: #{tpu_custom_call.1} parent=43 // pred_check_branch
        %255 = sbr.rel (%p253) target = $region48
      $region47: #{tpu_custom_call.1} parent=43 // pred_region
        %p256 = scmp.lt.s32.totalorder %s14, 1
        %s257 = scalar_select %p256, %s14, 1
        %s258 = smul.addr %s257, 32
        %s259 = smul.addr %s258, 8
        %s260 = scalar_lea.vmem %s0, %s259
      $region48: #{tpu_custom_call.1} parent=43 // pred_fallthru
        _
    $region44: #{tpu_custom_call.1} parent=5 // pred_fallthru
      _
    %p261 = scmp.le.s32.totalorder 1, %s14
    %p262 = scmp.lt.s32.totalorder %s14, 3
    %p263 = pnand %p261, %p262
    %p264 = pneg %p263
    // Predicated region
    $region49: #{tpu_custom_call.1} parent=5 // pred_check
      _
    $region50: #{tpu_custom_call.1} parent=5 // pred_check_branch
      %266 = sbr.rel (%p263) target = $region52
    $region51: #{tpu_custom_call.1} parent=5 // pred_region
      %s267 = ssub.s32 %s14, 1
      %p268 = scmp.lt.s32.totalorder %s19, 1
      %s269 = scalar_select %p268, %s19, 1
      %s270 = smul.addr %s269, 32
      %s271 = smul.addr %s270, 8
      %s272 = scalar_lea.vmem %s0, %s271
      %p273 = pneg %p40
      %p274 = pneg %p37
      %p275 = pneg %p61
      %p276 = pneg %p58
      %p277 = pneg %p82
      %p278 = pneg %p79
      %p279 = pneg %p103
      %p280 = pneg %p100
      %p281 = pneg %p124
      %p282 = pneg %p121
      %p283 = pneg %p145
      %p284 = pneg %p142
      %p285 = pneg %p166
      %p286 = pneg %p163
      %p287 = pneg %p187
      %p288 = pneg %p184
      %p289 = pneg %p213
      %p290 = pneg %p210
      %p291 = scmp.lt.s32.totalorder %s19, 1
      %s292 = scalar_select %p291, %s19, 1
      %s293 = smul.addr %s292, 32
      %s294 = smul.addr %s293, 8
      %s295 = scalar_lea.vmem %s8, %s294
      %p296 = scmp.lt.s32.totalorder %s19, 1
      %s297 = scalar_select %p296, %s19, 1
      %s298 = smul.addr %s297, 32
      %s299 = smul.addr %s298, 8
      %s300 = scalar_lea.vmem %s0, %s299
      %p301 = scmp.lt.s32.totalorder %s19, 1
      %s302 = scalar_select %p301, %s19, 1
      %s303 = smul.addr %s302, 32
      %s304 = smul.addr %s303, 8
      %s305 = scalar_lea.vmem %s8, %s304
      %vm306 = vcmask 15360
      %307 = vst.msk [vmem:[#allocation2] sm:$0xff] %vm306, 0.0
      %308 = vst.msk [vmem:[#allocation2 + $0x8] sm:$0xff] %vm306, 0.0
      %vm309 = vcmask 9216
      %310 = vst.msk [vmem:[#allocation2 + $0x10] sm:$0x3] %vm309, 0.0
      %311 = vst.msk [vmem:[#allocation2 + $0x18] sm:$0xff] %vm306, 0.0
      %312 = vst.msk [vmem:[#allocation2 + $0x20] sm:$0xff] %vm306, 0.0
      %313 = vst.msk [vmem:[#allocation2 + $0x28] sm:$0x3] %vm309, 0.0
      %314 = vst.msk [vmem:[#allocation2 + $0x30] sm:$0xff] %vm306, 0.0
      %315 = vst.msk [vmem:[#allocation2 + $0x38] sm:$0xff] %vm306, 0.0
      %316 = vst.msk [vmem:[#allocation2 + $0x40] sm:$0x3] %vm309, 0.0
      %317 = vst.msk [vmem:[#allocation2 + $0x48] sm:$0xff] %vm306, 0.0
      %318 = vst.msk [vmem:[#allocation2 + $0x50] sm:$0xff] %vm306, 0.0
      %319 = vst.msk [vmem:[#allocation2 + $0x58] sm:$0x3] %vm309, 0.0
      %320 = vst.msk [vmem:[#allocation2 + $0x60] sm:$0xff] %vm306, 0.0
      %321 = vst.msk [vmem:[#allocation2 + $0x68] sm:$0xff] %vm306, 0.0
      %322 = vst.msk [vmem:[#allocation2 + $0x70] sm:$0x3] %vm309, 0.0
      %323 = vst.msk [vmem:[#allocation2 + $0x78] sm:$0xff] %vm306, 0.0
      %324 = vst.msk [vmem:[#allocation2 + $0x80] sm:$0xff] %vm306, 0.0
      %325 = vst.msk [vmem:[#allocation2 + $0x88] sm:$0x3] %vm309, 0.0
      %326 = vst.msk [vmem:[#allocation2 + $0x90] sm:$0xff] %vm306, 0.0
      %327 = vst.msk [vmem:[#allocation2 + $0x98] sm:$0xff] %vm306, 0.0
      %328 = vst.msk [vmem:[#allocation2 + $0xa0] sm:$0x3] %vm309, 0.0
      %329 = vst.msk [vmem:[#allocation2 + $0xa8] sm:$0xff] %vm306, 0.0
      %330 = vst.msk [vmem:[#allocation2 + $0xb0] sm:$0xff] %vm306, 0.0
      %331 = vst.msk [vmem:[#allocation2 + $0xb8] sm:$0x3] %vm309, 0.0
      %332 = vst.msk [vmem:[#allocation2 + $0xc0] sm:$0xff] %vm306, 0.0
      %333 = vst.msk [vmem:[#allocation2 + $0xc8] sm:$0xff] %vm306, 0.0
      %334 = vst.msk [vmem:[#allocation2 + $0xd0] sm:$0x3] %vm309, 0.0
      %335 = vst.msk [vmem:[#allocation2 + $0xd8] sm:$0xff] %vm306, 0.0
      %336 = vst.msk [vmem:[#allocation2 + $0xe0] sm:$0xff] %vm306, 0.0
      %337 = vst.msk [vmem:[#allocation2 + $0xe8] sm:$0x3] %vm309, 0.0
      %338 = vst.msk [vmem:[#allocation2 + $0xf0] sm:$0xff] %vm306, 0.0
      %339 = vst.msk [vmem:[#allocation2 + $0xf8] sm:$0xff] %vm306, 0.0
      %340 = vst.msk [vmem:[#allocation2 + $0x100] sm:$0x3] %vm309, 0.0
      %341 = vst.msk [vmem:[#allocation2 + $0x108] sm:$0xff] %vm306, 0.0
      %342 = vst.msk [vmem:[#allocation2 + $0x110] sm:$0xff] %vm306, 0.0
      %343 = vst.msk [vmem:[#allocation2 + $0x118] sm:$0x3] %vm309, 0.0
      %344 = vst.msk [vmem:[#allocation2 + $0x120] sm:$0xff] %vm306, 0.0
      %345 = vst.msk [vmem:[#allocation2 + $0x128] sm:$0xff] %vm306, 0.0
      %346 = vst.msk [vmem:[#allocation2 + $0x130] sm:$0x3] %vm309, 0.0
      %347 = vst.msk [vmem:[#allocation2 + $0x138] sm:$0xff] %vm306, 0.0
      %348 = vst.msk [vmem:[#allocation2 + $0x140] sm:$0xff] %vm306, 0.0
      %349 = vst.msk [vmem:[#allocation2 + $0x148] sm:$0x3] %vm309, 0.0
      %350 = vst.msk [vmem:[#allocation2 + $0x150] sm:$0xff] %vm306, 0.0
      %351 = vst.msk [vmem:[#allocation2 + $0x158] sm:$0xff] %vm306, 0.0
      %352 = vst.msk [vmem:[#allocation2 + $0x160] sm:$0x3] %vm309, 0.0
      %353 = vst.msk [vmem:[#allocation2 + $0x168] sm:$0xff] %vm306, 0.0
      %354 = vst.msk [vmem:[#allocation2 + $0x170] sm:$0xff] %vm306, 0.0
      %355 = vst.msk [vmem:[#allocation2 + $0x178] sm:$0x3] %vm309, 0.0
      %356 = vst.msk [vmem:[#allocation2 + $0x180] sm:$0xff] %vm306, 0.0
      %357 = vst.msk [vmem:[#allocation2 + $0x188] sm:$0xff] %vm306, 0.0
      %358 = vst.msk [vmem:[#allocation2 + $0x190] sm:$0x3] %vm309, 0.0
      %359 = vst.msk [vmem:[#allocation2 + $0x198] sm:$0xff] %vm306, 0.0
      %360 = vst.msk [vmem:[#allocation2 + $0x1a0] sm:$0xff] %vm306, 0.0
      %361 = vst.msk [vmem:[#allocation2 + $0x1a8] sm:$0x3] %vm309, 0.0
      %v362 = vld [vmem:[%s300] sm:$0xff]
      %v363 = vld [vmem:[%s300 + $0x8] sm:$0xff]
      %v364 = vld [vmem:[%s300 + $0x10] sm:$0xff]
      %v365 = vld [vmem:[%s300 + $0x18] sm:$0xff]
      %v366 = vld [vmem:[%s300 + $0x20] sm:$0xff]
      %v367 = vld [vmem:[%s300 + $0x28] sm:$0xff]
      %v368 = vld [vmem:[%s300 + $0x30] sm:$0xff]
      %v369 = vld [vmem:[%s300 + $0x38] sm:$0xff]
      %v370 = vld [vmem:[%s300 + $0x40] sm:$0xff]
      %v371 = vld [vmem:[%s300 + $0x48] sm:$0xff]
      %v372 = vld [vmem:[%s300 + $0x50] sm:$0xff]
      %v373 = vld [vmem:[%s300 + $0x58] sm:$0xff]
      %v374 = vld [vmem:[%s300 + $0x60] sm:$0xff]
      %v375 = vld [vmem:[%s300 + $0x68] sm:$0xff]
      %v376 = vld [vmem:[%s300 + $0x70] sm:$0xff]
      %v377 = vld [vmem:[%s300 + $0x78] sm:$0xff]
      %v378 = vld [vmem:[%s300 + $0x80] sm:$0xff]
      %v379 = vld [vmem:[%s300 + $0x88] sm:$0xff]
      %v380 = vld [vmem:[%s300 + $0x90] sm:$0xff]
      %v381 = vld [vmem:[%s300 + $0x98] sm:$0xff]
      %v382 = vld [vmem:[%s300 + $0xa0] sm:$0xff]
      %v383 = vld [vmem:[%s300 + $0xa8] sm:$0xff]
      %v384 = vld [vmem:[%s300 + $0xb0] sm:$0xff]
      %v385 = vld [vmem:[%s300 + $0xb8] sm:$0xff]
      %v386 = vld [vmem:[%s300 + $0xc0] sm:$0xff]
      %v387 = vld [vmem:[%s300 + $0xc8] sm:$0xff]
      %v388 = vld [vmem:[%s300 + $0xd0] sm:$0xff]
      %v389 = vld [vmem:[%s300 + $0xd8] sm:$0xff]
      %v390 = vld [vmem:[%s300 + $0xe0] sm:$0xff]
      %v391 = vld [vmem:[%s300 + $0xe8] sm:$0xff]
      %v392 = vld [vmem:[%s300 + $0xf0] sm:$0xff]
      %v393 = vld [vmem:[%s300 + $0xf8] sm:$0xff]
      %426 = vrot.lane.b32.xlu0 %v362, 126
      %v427 = vpop.permute.xlu0 %426
      %428 = vrot.lane.b32.xlu0 %v363, 126
      %v429 = vpop.permute.xlu0 %428
      %430 = vrot.lane.b32.xlu0 %v364, 126
      %v431 = vpop.permute.xlu0 %430
      %432 = vrot.lane.b32.xlu0 %v365, 126
      %v433 = vpop.permute.xlu0 %432
      %434 = vrot.lane.b32.xlu0 %v366, 126
      %v435 = vpop.permute.xlu0 %434
      %436 = vrot.lane.b32.xlu0 %v367, 126
      %v437 = vpop.permute.xlu0 %436
      %438 = vrot.lane.b32.xlu0 %v368, 126
      %v439 = vpop.permute.xlu0 %438
      %440 = vrot.lane.b32.xlu0 %v369, 126
      %v441 = vpop.permute.xlu0 %440
      %442 = vrot.lane.b32.xlu0 %v370, 126
      %v443 = vpop.permute.xlu0 %442
      %444 = vrot.lane.b32.xlu0 %v371, 126
      %v445 = vpop.permute.xlu0 %444
      %446 = vrot.lane.b32.xlu0 %v372, 126
      %v447 = vpop.permute.xlu0 %446
      %448 = vrot.lane.b32.xlu0 %v373, 126
      %v449 = vpop.permute.xlu0 %448
      %450 = vrot.lane.b32.xlu0 %v374, 126
      %v451 = vpop.permute.xlu0 %450
      %452 = vrot.lane.b32.xlu0 %v375, 126
      %v453 = vpop.permute.xlu0 %452
      %454 = vrot.lane.b32.xlu0 %v376, 126
      %v455 = vpop.permute.xlu0 %454
      %456 = vrot.lane.b32.xlu0 %v377, 126
      %v457 = vpop.permute.xlu0 %456
      %458 = vrot.lane.b32.xlu0 %v378, 126
      %v459 = vpop.permute.xlu0 %458
      %460 = vrot.lane.b32.xlu0 %v379, 126
      %v461 = vpop.permute.xlu0 %460
      %462 = vrot.lane.b32.xlu0 %v380, 126
      %v463 = vpop.permute.xlu0 %462
      %464 = vrot.lane.b32.xlu0 %v381, 126
      %v465 = vpop.permute.xlu0 %464
      %466 = vrot.lane.b32.xlu0 %v382, 126
      %v467 = vpop.permute.xlu0 %466
      %468 = vrot.lane.b32.xlu0 %v383, 126
      %v469 = vpop.permute.xlu0 %468
      %470 = vrot.lane.b32.xlu0 %v384, 126
      %v471 = vpop.permute.xlu0 %470
      %472 = vrot.lane.b32.xlu0 %v385, 126
      %v473 = vpop.permute.xlu0 %472
      %474 = vrot.lane.b32.xlu0 %v386, 126
      %v475 = vpop.permute.xlu0 %474
      %476 = vrot.lane.b32.xlu0 %v387, 126
      %v477 = vpop.permute.xlu0 %476
      %478 = vrot.lane.b32.xlu0 %v388, 126
      %v479 = vpop.permute.xlu0 %478
      %480 = vrot.lane.b32.xlu0 %v389, 126
      %v481 = vpop.permute.xlu0 %480
      %482 = vrot.lane.b32.xlu0 %v390, 126
      %v483 = vpop.permute.xlu0 %482
      %484 = vrot.lane.b32.xlu0 %v391, 126
      %v485 = vpop.permute.xlu0 %484
      %486 = vrot.lane.b32.xlu0 %v392, 126
      %v487 = vpop.permute.xlu0 %486
      %488 = vrot.lane.b32.xlu0 %v393, 126
      %v489 = vpop.permute.xlu0 %488
      %s522 = scalar_lea.vmem [#allocation2], 24
      %523 = vst.msk [vmem:[%s522 + $0x1] sm:$0xff] %vm306, %v427
      %524 = vst.msk [vmem:[%s522 + $0x9] sm:$0xff] %vm306, %v429
      %525 = vst.msk [vmem:[%s522 + $0x19] sm:$0xff] %vm306, %v431
      %526 = vst.msk [vmem:[%s522 + $0x21] sm:$0xff] %vm306, %v433
      %527 = vst.msk [vmem:[%s522 + $0x31] sm:$0xff] %vm306, %v435
      %528 = vst.msk [vmem:[%s522 + $0x39] sm:$0xff] %vm306, %v437
      %529 = vst.msk [vmem:[%s522 + $0x49] sm:$0xff] %vm306, %v439
      %530 = vst.msk [vmem:[%s522 + $0x51] sm:$0xff] %vm306, %v441
      %531 = vst.msk [vmem:[%s522 + $0x61] sm:$0xff] %vm306, %v443
      %532 = vst.msk [vmem:[%s522 + $0x69] sm:$0xff] %vm306, %v445
      %533 = vst.msk [vmem:[%s522 + $0x79] sm:$0xff] %vm306, %v447
      %534 = vst.msk [vmem:[%s522 + $0x81] sm:$0xff] %vm306, %v449
      %535 = vst.msk [vmem:[%s522 + $0x91] sm:$0xff] %vm306, %v451
      %536 = vst.msk [vmem:[%s522 + $0x99] sm:$0xff] %vm306, %v453
      %537 = vst.msk [vmem:[%s522 + $0xa9] sm:$0xff] %vm306, %v455
      %538 = vst.msk [vmem:[%s522 + $0xb1] sm:$0xff] %vm306, %v457
      %539 = vst.msk [vmem:[%s522 + $0xc1] sm:$0xff] %vm306, %v459
      %540 = vst.msk [vmem:[%s522 + $0xc9] sm:$0xff] %vm306, %v461
      %541 = vst.msk [vmem:[%s522 + $0xd9] sm:$0xff] %vm306, %v463
      %542 = vst.msk [vmem:[%s522 + $0xe1] sm:$0xff] %vm306, %v465
      %543 = vst.msk [vmem:[%s522 + $0xf1] sm:$0xff] %vm306, %v467
      %544 = vst.msk [vmem:[%s522 + $0xf9] sm:$0xff] %vm306, %v469
      %545 = vst.msk [vmem:[%s522 + $0x109] sm:$0xff] %vm306, %v471
      %546 = vst.msk [vmem:[%s522 + $0x111] sm:$0xff] %vm306, %v473
      %547 = vst.msk [vmem:[%s522 + $0x121] sm:$0xff] %vm306, %v475
      %548 = vst.msk [vmem:[%s522 + $0x129] sm:$0xff] %vm306, %v477
      %549 = vst.msk [vmem:[%s522 + $0x139] sm:$0xff] %vm306, %v479
      %550 = vst.msk [vmem:[%s522 + $0x141] sm:$0xff] %vm306, %v481
      %551 = vst.msk [vmem:[%s522 + $0x151] sm:$0xff] %vm306, %v483
      %552 = vst.msk [vmem:[%s522 + $0x159] sm:$0xff] %vm306, %v485
      %553 = vst.msk [vmem:[%s522 + $0x169] sm:$0xff] %vm306, %v487
      %554 = vst.msk [vmem:[%s522 + $0x171] sm:$0xff] %vm306, %v489
      %v555 = vld [vmem:[%s1] sm:$0xff]
      %v556 = vld [vmem:[%s1 + $0x8] sm:$0x1]
      %v557 = vld [vmem:[#allocation2] sm:$0xff]
      %v558 = vld [vmem:[#allocation2 + $0x8] sm:$0xff]
      %v559 = vld [vmem:[#allocation2 + $0x18] sm:$0xff]
      %v560 = vld [vmem:[#allocation2 + $0x20] sm:$0xff]
      %v561 = vld [vmem:[#allocation2 + $0x30] sm:$0xff]
      %v562 = vld [vmem:[#allocation2 + $0x38] sm:$0xff]
      %v563 = vld [vmem:[#allocation2 + $0x48] sm:$0xff]
      %v564 = vld [vmem:[#allocation2 + $0x50] sm:$0xff]
      %v565 = vld [vmem:[#allocation2 + $0x60] sm:$0xff]
      %v566 = vld [vmem:[#allocation2 + $0x68] sm:$0xff]
      %v567 = vld [vmem:[#allocation2 + $0x78] sm:$0xff]
      %v568 = vld [vmem:[#allocation2 + $0x80] sm:$0xff]
      %v569 = vld [vmem:[#allocation2 + $0x90] sm:$0xff]
      %v570 = vld [vmem:[#allocation2 + $0x98] sm:$0xff]
      %v571 = vld [vmem:[#allocation2 + $0xa8] sm:$0xff]
      %v572 = vld [vmem:[#allocation2 + $0xb0] sm:$0xff]
      %v573 = vld [vmem:[#allocation2 + $0xc0] sm:$0xff]
      %v574 = vld [vmem:[#allocation2 + $0xc8] sm:$0xff]
      %v575 = vld [vmem:[#allocation2 + $0xd8] sm:$0xff]
      %v576 = vld [vmem:[#allocation2 + $0xe0] sm:$0xff]
      %v577 = vld [vmem:[#allocation2 + $0xf0] sm:$0xff]
      %v578 = vld [vmem:[#allocation2 + $0xf8] sm:$0xff]
      %v579 = vld [vmem:[#allocation2 + $0x108] sm:$0xff]
      %v580 = vld [vmem:[#allocation2 + $0x110] sm:$0xff]
      %v581 = vld [vmem:[#allocation2 + $0x120] sm:$0xff]
      %v582 = vld [vmem:[#allocation2 + $0x128] sm:$0xff]
      %v583 = vld [vmem:[#allocation2 + $0x138] sm:$0xff]
      %v584 = vld [vmem:[#allocation2 + $0x140] sm:$0xff]
      %v585 = vld [vmem:[#allocation2 + $0x150] sm:$0xff]
      %v586 = vld [vmem:[#allocation2 + $0x158] sm:$0xff]
      %v587 = vld [vmem:[#allocation2 + $0x168] sm:$0xff]
      %v588 = vld [vmem:[#allocation2 + $0x170] sm:$0xff]
      %v589 = vld [vmem:[#allocation2 + $0x180] sm:$0xff]
      %v590 = vld [vmem:[#allocation2 + $0x188] sm:$0xff]
      %v591 = vld [vmem:[#allocation2 + $0x198] sm:$0xff]
      %v592 = vld [vmem:[#allocation2 + $0x1a0] sm:$0xff]
      %v593 = vlaneseq
      %v594 = vshrl.u32 %v593, 7
      %v595 = vsub.s32 0, %v594
      %v596 = vrot.slane %v555, %v595
      %v597 = vmul.f32 %v557, %v596
      %v598 = vmul.f32 %v558, %v596
      %v599 = vmul.f32 %v559, %v596
      %v600 = vmul.f32 %v560, %v596
      %v601 = vmul.f32 %v561, %v596
      %v602 = vmul.f32 %v562, %v596
      %v603 = vmul.f32 %v563, %v596
      %v604 = vmul.f32 %v564, %v596
      %v605 = vmul.f32 %v565, %v596
      %v606 = vmul.f32 %v566, %v596
      %v607 = vmul.f32 %v567, %v596
      %v608 = vmul.f32 %v568, %v596
      %v609 = vmul.f32 %v569, %v596
      %v610 = vmul.f32 %v570, %v596
      %v611 = vmul.f32 %v571, %v596
      %v612 = vmul.f32 %v572, %v596
      %v613 = vmul.f32 %v573, %v596
      %v614 = vmul.f32 %v574, %v596
      %v615 = vmul.f32 %v575, %v596
      %v616 = vmul.f32 %v576, %v596
      %v617 = vmul.f32 %v577, %v596
      %v618 = vmul.f32 %v578, %v596
      %v619 = vmul.f32 %v579, %v596
      %v620 = vmul.f32 %v580, %v596
      %v621 = vmul.f32 %v581, %v596
      %v622 = vmul.f32 %v582, %v596
      %v623 = vmul.f32 %v583, %v596
      %v624 = vmul.f32 %v584, %v596
      %v625 = vmul.f32 %v585, %v596
      %v626 = vmul.f32 %v586, %v596
      %v627 = vmul.f32 %v587, %v596
      %v628 = vmul.f32 %v588, %v596
      %v629 = vadd.f32 %v597, 0.0
      %v630 = vadd.f32 %v598, 0.0
      %v631 = vadd.f32 %v599, 0.0
      %v632 = vadd.f32 %v600, 0.0
      %v633 = vadd.f32 %v601, 0.0
      %v634 = vadd.f32 %v602, 0.0
      %v635 = vadd.f32 %v603, 0.0
      %v636 = vadd.f32 %v604, 0.0
      %v637 = vadd.f32 %v605, 0.0
      %v638 = vadd.f32 %v606, 0.0
      %v639 = vadd.f32 %v607, 0.0
      %v640 = vadd.f32 %v608, 0.0
      %v641 = vadd.f32 %v609, 0.0
      %v642 = vadd.f32 %v610, 0.0
      %v643 = vadd.f32 %v611, 0.0
      %v644 = vadd.f32 %v612, 0.0
      %v645 = vadd.f32 %v613, 0.0
      %v646 = vadd.f32 %v614, 0.0
      %v647 = vadd.f32 %v615, 0.0
      %v648 = vadd.f32 %v616, 0.0
      %v649 = vadd.f32 %v617, 0.0
      %v650 = vadd.f32 %v618, 0.0
      %v651 = vadd.f32 %v619, 0.0
      %v652 = vadd.f32 %v620, 0.0
      %v653 = vadd.f32 %v621, 0.0
      %v654 = vadd.f32 %v622, 0.0
      %v655 = vadd.f32 %v623, 0.0
      %v656 = vadd.f32 %v624, 0.0
      %v657 = vadd.f32 %v625, 0.0
      %v658 = vadd.f32 %v626, 0.0
      %v659 = vadd.f32 %v627, 0.0
      %v660 = vadd.f32 %v628, 0.0
      %v661 = vlaneseq
      %v662 = vshrl.u32 %v661, 7
      %v663 = vsub.s32 3, %v662
      %v664 = vrot.slane %v555, %v663
      %v665 = vmul.f32 %v559, %v664
      %v666 = vmul.f32 %v560, %v664
      %v667 = vmul.f32 %v561, %v664
      %v668 = vmul.f32 %v562, %v664
      %v669 = vmul.f32 %v563, %v664
      %v670 = vmul.f32 %v564, %v664
      %v671 = vmul.f32 %v565, %v664
      %v672 = vmul.f32 %v566, %v664
      %v673 = vmul.f32 %v567, %v664
      %v674 = vmul.f32 %v568, %v664
      %v675 = vmul.f32 %v569, %v664
      %v676 = vmul.f32 %v570, %v664
      %v677 = vmul.f32 %v571, %v664
      %v678 = vmul.f32 %v572, %v664
      %v679 = vmul.f32 %v573, %v664
      %v680 = vmul.f32 %v574, %v664
      %v681 = vmul.f32 %v575, %v664
      %v682 = vmul.f32 %v576, %v664
      %v683 = vmul.f32 %v577, %v664
      %v684 = vmul.f32 %v578, %v664
      %v685 = vmul.f32 %v579, %v664
      %v686 = vmul.f32 %v580, %v664
      %v687 = vmul.f32 %v581, %v664
      %v688 = vmul.f32 %v582, %v664
      %v689 = vmul.f32 %v583, %v664
      %v690 = vmul.f32 %v584, %v664
      %v691 = vmul.f32 %v585, %v664
      %v692 = vmul.f32 %v586, %v664
      %v693 = vmul.f32 %v587, %v664
      %v694 = vmul.f32 %v588, %v664
      %v695 = vmul.f32 %v589, %v664
      %v696 = vmul.f32 %v590, %v664
      %v697 = vadd.f32 %v629, %v665
      %v698 = vadd.f32 %v630, %v666
      %v699 = vadd.f32 %v631, %v667
      %v700 = vadd.f32 %v632, %v668
      %v701 = vadd.f32 %v633, %v669
      %v702 = vadd.f32 %v634, %v670
      %v703 = vadd.f32 %v635, %v671
      %v704 = vadd.f32 %v636, %v672
      %v705 = vadd.f32 %v637, %v673
      %v706 = vadd.f32 %v638, %v674
      %v707 = vadd.f32 %v639, %v675
      %v708 = vadd.f32 %v640, %v676
      %v709 = vadd.f32 %v641, %v677
      %v710 = vadd.f32 %v642, %v678
      %v711 = vadd.f32 %v643, %v679
      %v712 = vadd.f32 %v644, %v680
      %v713 = vadd.f32 %v645, %v681
      %v714 = vadd.f32 %v646, %v682
      %v715 = vadd.f32 %v647, %v683
      %v716 = vadd.f32 %v648, %v684
      %v717 = vadd.f32 %v649, %v685
      %v718 = vadd.f32 %v650, %v686
      %v719 = vadd.f32 %v651, %v687
      %v720 = vadd.f32 %v652, %v688
      %v721 = vadd.f32 %v653, %v689
      %v722 = vadd.f32 %v654, %v690
      %v723 = vadd.f32 %v655, %v691
      %v724 = vadd.f32 %v656, %v692
      %v725 = vadd.f32 %v657, %v693
      %v726 = vadd.f32 %v658, %v694
      %v727 = vadd.f32 %v659, %v695
      %v728 = vadd.f32 %v660, %v696
      %v729 = vlaneseq
      %v730 = vshrl.u32 %v729, 7
      %v731 = vsub.s32 6, %v730
      %v732 = vrot.slane %v555, %v731
      %v733 = vmul.f32 %v561, %v732
      %v734 = vmul.f32 %v562, %v732
      %v735 = vmul.f32 %v563, %v732
      %v736 = vmul.f32 %v564, %v732
      %v737 = vmul.f32 %v565, %v732
      %v738 = vmul.f32 %v566, %v732
      %v739 = vmul.f32 %v567, %v732
      %v740 = vmul.f32 %v568, %v732
      %v741 = vmul.f32 %v569, %v732
      %v742 = vmul.f32 %v570, %v732
      %v743 = vmul.f32 %v571, %v732
      %v744 = vmul.f32 %v572, %v732
      %v745 = vmul.f32 %v573, %v732
      %v746 = vmul.f32 %v574, %v732
      %v747 = vmul.f32 %v575, %v732
      %v748 = vmul.f32 %v576, %v732
      %v749 = vmul.f32 %v577, %v732
      %v750 = vmul.f32 %v578, %v732
      %v751 = vmul.f32 %v579, %v732
      %v752 = vmul.f32 %v580, %v732
      %v753 = vmul.f32 %v581, %v732
      %v754 = vmul.f32 %v582, %v732
      %v755 = vmul.f32 %v583, %v732
      %v756 = vmul.f32 %v584, %v732
      %v757 = vmul.f32 %v585, %v732
      %v758 = vmul.f32 %v586, %v732
      %v759 = vmul.f32 %v587, %v732
      %v760 = vmul.f32 %v588, %v732
      %v761 = vmul.f32 %v589, %v732
      %v762 = vmul.f32 %v590, %v732
      %v763 = vmul.f32 %v591, %v732
      %v764 = vmul.f32 %v592, %v732
      %v765 = vadd.f32 %v697, %v733
      %v766 = vadd.f32 %v698, %v734
      %v767 = vadd.f32 %v699, %v735
      %v768 = vadd.f32 %v700, %v736
      %v769 = vadd.f32 %v701, %v737
      %v770 = vadd.f32 %v702, %v738
      %v771 = vadd.f32 %v703, %v739
      %v772 = vadd.f32 %v704, %v740
      %v773 = vadd.f32 %v705, %v741
      %v774 = vadd.f32 %v706, %v742
      %v775 = vadd.f32 %v707, %v743
      %v776 = vadd.f32 %v708, %v744
      %v777 = vadd.f32 %v709, %v745
      %v778 = vadd.f32 %v710, %v746
      %v779 = vadd.f32 %v711, %v747
      %v780 = vadd.f32 %v712, %v748
      %v781 = vadd.f32 %v713, %v749
      %v782 = vadd.f32 %v714, %v750
      %v783 = vadd.f32 %v715, %v751
      %v784 = vadd.f32 %v716, %v752
      %v785 = vadd.f32 %v717, %v753
      %v786 = vadd.f32 %v718, %v754
      %v787 = vadd.f32 %v719, %v755
      %v788 = vadd.f32 %v720, %v756
      %v789 = vadd.f32 %v721, %v757
      %v790 = vadd.f32 %v722, %v758
      %v791 = vadd.f32 %v723, %v759
      %v792 = vadd.f32 %v724, %v760
      %v793 = vadd.f32 %v725, %v761
      %v794 = vadd.f32 %v726, %v762
      %v795 = vadd.f32 %v727, %v763
      %v796 = vadd.f32 %v728, %v764
      %v797 = vld [vmem:[#allocation2 + $0x1] sm:$0xff]
      %v798 = vld [vmem:[#allocation2 + $0x9] sm:$0xff]
      %v799 = vld [vmem:[#allocation2 + $0x19] sm:$0xff]
      %v800 = vld [vmem:[#allocation2 + $0x21] sm:$0xff]
      %v801 = vld [vmem:[#allocation2 + $0x31] sm:$0xff]
      %v802 = vld [vmem:[#allocation2 + $0x39] sm:$0xff]
      %v803 = vld [vmem:[#allocation2 + $0x49] sm:$0xff]
      %v804 = vld [vmem:[#allocation2 + $0x51] sm:$0xff]
      %v805 = vld [vmem:[#allocation2 + $0x61] sm:$0xff]
      %v806 = vld [vmem:[#allocation2 + $0x69] sm:$0xff]
      %v807 = vld [vmem:[#allocation2 + $0x79] sm:$0xff]
      %v808 = vld [vmem:[#allocation2 + $0x81] sm:$0xff]
      %v809 = vld [vmem:[#allocation2 + $0x91] sm:$0xff]
      %v810 = vld [vmem:[#allocation2 + $0x99] sm:$0xff]
      %v811 = vld [vmem:[#allocation2 + $0xa9] sm:$0xff]
      %v812 = vld [vmem:[#allocation2 + $0xb1] sm:$0xff]
      %v813 = vld [vmem:[#allocation2 + $0xc1] sm:$0xff]
      %v814 = vld [vmem:[#allocation2 + $0xc9] sm:$0xff]
      %v815 = vld [vmem:[#allocation2 + $0xd9] sm:$0xff]
      %v816 = vld [vmem:[#allocation2 + $0xe1] sm:$0xff]
      %v817 = vld [vmem:[#allocation2 + $0xf1] sm:$0xff]
      %v818 = vld [vmem:[#allocation2 + $0xf9] sm:$0xff]
      %v819 = vld [vmem:[#allocation2 + $0x109] sm:$0xff]
      %v820 = vld [vmem:[#allocation2 + $0x111] sm:$0xff]
      %v821 = vld [vmem:[#allocation2 + $0x121] sm:$0xff]
      %v822 = vld [vmem:[#allocation2 + $0x129] sm:$0xff]
      %v823 = vld [vmem:[#allocation2 + $0x139] sm:$0xff]
      %v824 = vld [vmem:[#allocation2 + $0x141] sm:$0xff]
      %v825 = vld [vmem:[#allocation2 + $0x151] sm:$0xff]
      %v826 = vld [vmem:[#allocation2 + $0x159] sm:$0xff]
      %v827 = vld [vmem:[#allocation2 + $0x169] sm:$0xff]
      %v828 = vld [vmem:[#allocation2 + $0x171] sm:$0xff]
      %v829 = vld [vmem:[#allocation2 + $0x181] sm:$0xff]
      %v830 = vld [vmem:[#allocation2 + $0x189] sm:$0xff]
      %v831 = vld [vmem:[#allocation2 + $0x199] sm:$0xff]
      %v832 = vld [vmem:[#allocation2 + $0x1a1] sm:$0xff]
      %v833 = vlaneseq
      %v834 = vshrl.u32 %v833, 7
      %v835 = vsub.s32 1, %v834
      %v836 = vrot.slane %v555, %v835
      %v837 = vmul.f32 %v797, %v836
      %v838 = vmul.f32 %v798, %v836
      %v839 = vmul.f32 %v799, %v836
      %v840 = vmul.f32 %v800, %v836
      %v841 = vmul.f32 %v801, %v836
      %v842 = vmul.f32 %v802, %v836
      %v843 = vmul.f32 %v803, %v836
      %v844 = vmul.f32 %v804, %v836
      %v845 = vmul.f32 %v805, %v836
      %v846 = vmul.f32 %v806, %v836
      %v847 = vmul.f32 %v807, %v836
      %v848 = vmul.f32 %v808, %v836
      %v849 = vmul.f32 %v809, %v836
      %v850 = vmul.f32 %v810, %v836
      %v851 = vmul.f32 %v811, %v836
      %v852 = vmul.f32 %v812, %v836
      %v853 = vmul.f32 %v813, %v836
      %v854 = vmul.f32 %v814, %v836
      %v855 = vmul.f32 %v815, %v836
      %v856 = vmul.f32 %v816, %v836
      %v857 = vmul.f32 %v817, %v836
      %v858 = vmul.f32 %v818, %v836
      %v859 = vmul.f32 %v819, %v836
      %v860 = vmul.f32 %v820, %v836
      %v861 = vmul.f32 %v821, %v836
      %v862 = vmul.f32 %v822, %v836
      %v863 = vmul.f32 %v823, %v836
      %v864 = vmul.f32 %v824, %v836
      %v865 = vmul.f32 %v825, %v836
      %v866 = vmul.f32 %v826, %v836
      %v867 = vmul.f32 %v827, %v836
      %v868 = vmul.f32 %v828, %v836
      %v869 = vadd.f32 %v765, %v837
      %v870 = vadd.f32 %v766, %v838
      %v871 = vadd.f32 %v767, %v839
      %v872 = vadd.f32 %v768, %v840
      %v873 = vadd.f32 %v769, %v841
      %v874 = vadd.f32 %v770, %v842
      %v875 = vadd.f32 %v771, %v843
      %v876 = vadd.f32 %v772, %v844
      %v877 = vadd.f32 %v773, %v845
      %v878 = vadd.f32 %v774, %v846
      %v879 = vadd.f32 %v775, %v847
      %v880 = vadd.f32 %v776, %v848
      %v881 = vadd.f32 %v777, %v849
      %v882 = vadd.f32 %v778, %v850
      %v883 = vadd.f32 %v779, %v851
      %v884 = vadd.f32 %v780, %v852
      %v885 = vadd.f32 %v781, %v853
      %v886 = vadd.f32 %v782, %v854
      %v887 = vadd.f32 %v783, %v855
      %v888 = vadd.f32 %v784, %v856
      %v889 = vadd.f32 %v785, %v857
      %v890 = vadd.f32 %v786, %v858
      %v891 = vadd.f32 %v787, %v859
      %v892 = vadd.f32 %v788, %v860
      %v893 = vadd.f32 %v789, %v861
      %v894 = vadd.f32 %v790, %v862
      %v895 = vadd.f32 %v791, %v863
      %v896 = vadd.f32 %v792, %v864
      %v897 = vadd.f32 %v793, %v865
      %v898 = vadd.f32 %v794, %v866
      %v899 = vadd.f32 %v795, %v867
      %v900 = vadd.f32 %v796, %v868
      %v901 = vlaneseq
      %v902 = vshrl.u32 %v901, 7
      %v903 = vsub.s32 4, %v902
      %v904 = vrot.slane %v555, %v903
      %v905 = vmul.f32 %v799, %v904
      %v906 = vmul.f32 %v800, %v904
      %v907 = vmul.f32 %v801, %v904
      %v908 = vmul.f32 %v802, %v904
      %v909 = vmul.f32 %v803, %v904
      %v910 = vmul.f32 %v804, %v904
      %v911 = vmul.f32 %v805, %v904
      %v912 = vmul.f32 %v806, %v904
      %v913 = vmul.f32 %v807, %v904
      %v914 = vmul.f32 %v808, %v904
      %v915 = vmul.f32 %v809, %v904
      %v916 = vmul.f32 %v810, %v904
      %v917 = vmul.f32 %v811, %v904
      %v918 = vmul.f32 %v812, %v904
      %v919 = vmul.f32 %v813, %v904
      %v920 = vmul.f32 %v814, %v904
      %v921 = vmul.f32 %v815, %v904
      %v922 = vmul.f32 %v816, %v904
      %v923 = vmul.f32 %v817, %v904
      %v924 = vmul.f32 %v818, %v904
      %v925 = vmul.f32 %v819, %v904
      %v926 = vmul.f32 %v820, %v904
      %v927 = vmul.f32 %v821, %v904
      %v928 = vmul.f32 %v822, %v904
      %v929 = vmul.f32 %v823, %v904
      %v930 = vmul.f32 %v824, %v904
      %v931 = vmul.f32 %v825, %v904
      %v932 = vmul.f32 %v826, %v904
      %v933 = vmul.f32 %v827, %v904
      %v934 = vmul.f32 %v828, %v904
      %v935 = vmul.f32 %v829, %v904
      %v936 = vmul.f32 %v830, %v904
      %v937 = vadd.f32 %v869, %v905
      %v938 = vadd.f32 %v870, %v906
      %v939 = vadd.f32 %v871, %v907
      %v940 = vadd.f32 %v872, %v908
      %v941 = vadd.f32 %v873, %v909
      %v942 = vadd.f32 %v874, %v910
      %v943 = vadd.f32 %v875, %v911
      %v944 = vadd.f32 %v876, %v912
      %v945 = vadd.f32 %v877, %v913
      %v946 = vadd.f32 %v878, %v914
      %v947 = vadd.f32 %v879, %v915
      %v948 = vadd.f32 %v880, %v916
      %v949 = vadd.f32 %v881, %v917
      %v950 = vadd.f32 %v882, %v918
      %v951 = vadd.f32 %v883, %v919
      %v952 = vadd.f32 %v884, %v920
      %v953 = vadd.f32 %v885, %v921
      %v954 = vadd.f32 %v886, %v922
      %v955 = vadd.f32 %v887, %v923
      %v956 = vadd.f32 %v888, %v924
      %v957 = vadd.f32 %v889, %v925
      %v958 = vadd.f32 %v890, %v926
      %v959 = vadd.f32 %v891, %v927
      %v960 = vadd.f32 %v892, %v928
      %v961 = vadd.f32 %v893, %v929
      %v962 = vadd.f32 %v894, %v930
      %v963 = vadd.f32 %v895, %v931
      %v964 = vadd.f32 %v896, %v932
      %v965 = vadd.f32 %v897, %v933
      %v966 = vadd.f32 %v898, %v934
      %v967 = vadd.f32 %v899, %v935
      %v968 = vadd.f32 %v900, %v936
      %v969 = vlaneseq
      %v970 = vshrl.u32 %v969, 7
      %v971 = vsub.s32 7, %v970
      %v972 = vrot.slane %v555, %v971
      %v973 = vmul.f32 %v801, %v972
      %v974 = vmul.f32 %v802, %v972
      %v975 = vmul.f32 %v803, %v972
      %v976 = vmul.f32 %v804, %v972
      %v977 = vmul.f32 %v805, %v972
      %v978 = vmul.f32 %v806, %v972
      %v979 = vmul.f32 %v807, %v972
      %v980 = vmul.f32 %v808, %v972
      %v981 = vmul.f32 %v809, %v972
      %v982 = vmul.f32 %v810, %v972
      %v983 = vmul.f32 %v811, %v972
      %v984 = vmul.f32 %v812, %v972
      %v985 = vmul.f32 %v813, %v972
      %v986 = vmul.f32 %v814, %v972
      %v987 = vmul.f32 %v815, %v972
      %v988 = vmul.f32 %v816, %v972
      %v989 = vmul.f32 %v817, %v972
      %v990 = vmul.f32 %v818, %v972
      %v991 = vmul.f32 %v819, %v972
      %v992 = vmul.f32 %v820, %v972
      %v993 = vmul.f32 %v821, %v972
      %v994 = vmul.f32 %v822, %v972
      %v995 = vmul.f32 %v823, %v972
      %v996 = vmul.f32 %v824, %v972
      %v997 = vmul.f32 %v825, %v972
      %v998 = vmul.f32 %v826, %v972
      %v999 = vmul.f32 %v827, %v972
      %v1000 = vmul.f32 %v828, %v972
      %v1001 = vmul.f32 %v829, %v972
      %v1002 = vmul.f32 %v830, %v972
      %v1003 = vmul.f32 %v831, %v972
      %v1004 = vmul.f32 %v832, %v972
      %v1005 = vadd.f32 %v937, %v973
      %v1006 = vadd.f32 %v938, %v974
      %v1007 = vadd.f32 %v939, %v975
      %v1008 = vadd.f32 %v940, %v976
      %v1009 = vadd.f32 %v941, %v977
      %v1010 = vadd.f32 %v942, %v978
      %v1011 = vadd.f32 %v943, %v979
      %v1012 = vadd.f32 %v944, %v980
      %v1013 = vadd.f32 %v945, %v981
      %v1014 = vadd.f32 %v946, %v982
      %v1015 = vadd.f32 %v947, %v983
      %v1016 = vadd.f32 %v948, %v984
      %v1017 = vadd.f32 %v949, %v985
      %v1018 = vadd.f32 %v950, %v986
      %v1019 = vadd.f32 %v951, %v987
      %v1020 = vadd.f32 %v952, %v988
      %v1021 = vadd.f32 %v953, %v989
      %v1022 = vadd.f32 %v954, %v990
      %v1023 = vadd.f32 %v955, %v991
      %v1024 = vadd.f32 %v956, %v992
      %v1025 = vadd.f32 %v957, %v993
      %v1026 = vadd.f32 %v958, %v994
      %v1027 = vadd.f32 %v959, %v995
      %v1028 = vadd.f32 %v960, %v996
      %v1029 = vadd.f32 %v961, %v997
      %v1030 = vadd.f32 %v962, %v998
      %v1031 = vadd.f32 %v963, %v999
      %v1032 = vadd.f32 %v964, %v1000
      %v1033 = vadd.f32 %v965, %v1001
      %v1034 = vadd.f32 %v966, %v1002
      %v1035 = vadd.f32 %v967, %v1003
      %v1036 = vadd.f32 %v968, %v1004
      %v1037 = vld [vmem:[#allocation2 + $0x2] sm:$0xff]
      %v1038 = vld [vmem:[#allocation2 + $0xa] sm:$0xff]
      %v1039 = vld [vmem:[#allocation2 + $0x1a] sm:$0xff]
      %v1040 = vld [vmem:[#allocation2 + $0x22] sm:$0xff]
      %v1041 = vld [vmem:[#allocation2 + $0x32] sm:$0xff]
      %v1042 = vld [vmem:[#allocation2 + $0x3a] sm:$0xff]
      %v1043 = vld [vmem:[#allocation2 + $0x4a] sm:$0xff]
      %v1044 = vld [vmem:[#allocation2 + $0x52] sm:$0xff]
      %v1045 = vld [vmem:[#allocation2 + $0x62] sm:$0xff]
      %v1046 = vld [vmem:[#allocation2 + $0x6a] sm:$0xff]
      %v1047 = vld [vmem:[#allocation2 + $0x7a] sm:$0xff]
      %v1048 = vld [vmem:[#allocation2 + $0x82] sm:$0xff]
      %v1049 = vld [vmem:[#allocation2 + $0x92] sm:$0xff]
      %v1050 = vld [vmem:[#allocation2 + $0x9a] sm:$0xff]
      %v1051 = vld [vmem:[#allocation2 + $0xaa] sm:$0xff]
      %v1052 = vld [vmem:[#allocation2 + $0xb2] sm:$0xff]
      %v1053 = vld [vmem:[#allocation2 + $0xc2] sm:$0xff]
      %v1054 = vld [vmem:[#allocation2 + $0xca] sm:$0xff]
      %v1055 = vld [vmem:[#allocation2 + $0xda] sm:$0xff]
      %v1056 = vld [vmem:[#allocation2 + $0xe2] sm:$0xff]
      %v1057 = vld [vmem:[#allocation2 + $0xf2] sm:$0xff]
      %v1058 = vld [vmem:[#allocation2 + $0xfa] sm:$0xff]
      %v1059 = vld [vmem:[#allocation2 + $0x10a] sm:$0xff]
      %v1060 = vld [vmem:[#allocation2 + $0x112] sm:$0xff]
      %v1061 = vld [vmem:[#allocation2 + $0x122] sm:$0xff]
      %v1062 = vld [vmem:[#allocation2 + $0x12a] sm:$0xff]
      %v1063 = vld [vmem:[#allocation2 + $0x13a] sm:$0xff]
      %v1064 = vld [vmem:[#allocation2 + $0x142] sm:$0xff]
      %v1065 = vld [vmem:[#allocation2 + $0x152] sm:$0xff]
      %v1066 = vld [vmem:[#allocation2 + $0x15a] sm:$0xff]
      %v1067 = vld [vmem:[#allocation2 + $0x16a] sm:$0xff]
      %v1068 = vld [vmem:[#allocation2 + $0x172] sm:$0xff]
      %v1069 = vld [vmem:[#allocation2 + $0x182] sm:$0xff]
      %v1070 = vld [vmem:[#allocation2 + $0x18a] sm:$0xff]
      %v1071 = vld [vmem:[#allocation2 + $0x19a] sm:$0xff]
      %v1072 = vld [vmem:[#allocation2 + $0x1a2] sm:$0xff]
      %v1073 = vlaneseq
      %v1074 = vshrl.u32 %v1073, 7
      %v1075 = vsub.s32 2, %v1074
      %v1076 = vrot.slane %v555, %v1075
      %v1077 = vmul.f32 %v1037, %v1076
      %v1078 = vmul.f32 %v1038, %v1076
      %v1079 = vmul.f32 %v1039, %v1076
      %v1080 = vmul.f32 %v1040, %v1076
      %v1081 = vmul.f32 %v1041, %v1076
      %v1082 = vmul.f32 %v1042, %v1076
      %v1083 = vmul.f32 %v1043, %v1076
      %v1084 = vmul.f32 %v1044, %v1076
      %v1085 = vmul.f32 %v1045, %v1076
      %v1086 = vmul.f32 %v1046, %v1076
      %v1087 = vmul.f32 %v1047, %v1076
      %v1088 = vmul.f32 %v1048, %v1076
      %v1089 = vmul.f32 %v1049, %v1076
      %v1090 = vmul.f32 %v1050, %v1076
      %v1091 = vmul.f32 %v1051, %v1076
      %v1092 = vmul.f32 %v1052, %v1076
      %v1093 = vmul.f32 %v1053, %v1076
      %v1094 = vmul.f32 %v1054, %v1076
      %v1095 = vmul.f32 %v1055, %v1076
      %v1096 = vmul.f32 %v1056, %v1076
      %v1097 = vmul.f32 %v1057, %v1076
      %v1098 = vmul.f32 %v1058, %v1076
      %v1099 = vmul.f32 %v1059, %v1076
      %v1100 = vmul.f32 %v1060, %v1076
      %v1101 = vmul.f32 %v1061, %v1076
      %v1102 = vmul.f32 %v1062, %v1076
      %v1103 = vmul.f32 %v1063, %v1076
      %v1104 = vmul.f32 %v1064, %v1076
      %v1105 = vmul.f32 %v1065, %v1076
      %v1106 = vmul.f32 %v1066, %v1076
      %v1107 = vmul.f32 %v1067, %v1076
      %v1108 = vmul.f32 %v1068, %v1076
      %v1109 = vadd.f32 %v1005, %v1077
      %v1110 = vadd.f32 %v1006, %v1078
      %v1111 = vadd.f32 %v1007, %v1079
      %v1112 = vadd.f32 %v1008, %v1080
      %v1113 = vadd.f32 %v1009, %v1081
      %v1114 = vadd.f32 %v1010, %v1082
      %v1115 = vadd.f32 %v1011, %v1083
      %v1116 = vadd.f32 %v1012, %v1084
      %v1117 = vadd.f32 %v1013, %v1085
      %v1118 = vadd.f32 %v1014, %v1086
      %v1119 = vadd.f32 %v1015, %v1087
      %v1120 = vadd.f32 %v1016, %v1088
      %v1121 = vadd.f32 %v1017, %v1089
      %v1122 = vadd.f32 %v1018, %v1090
      %v1123 = vadd.f32 %v1019, %v1091
      %v1124 = vadd.f32 %v1020, %v1092
      %v1125 = vadd.f32 %v1021, %v1093
      %v1126 = vadd.f32 %v1022, %v1094
      %v1127 = vadd.f32 %v1023, %v1095
      %v1128 = vadd.f32 %v1024, %v1096
      %v1129 = vadd.f32 %v1025, %v1097
      %v1130 = vadd.f32 %v1026, %v1098
      %v1131 = vadd.f32 %v1027, %v1099
      %v1132 = vadd.f32 %v1028, %v1100
      %v1133 = vadd.f32 %v1029, %v1101
      %v1134 = vadd.f32 %v1030, %v1102
      %v1135 = vadd.f32 %v1031, %v1103
      %v1136 = vadd.f32 %v1032, %v1104
      %v1137 = vadd.f32 %v1033, %v1105
      %v1138 = vadd.f32 %v1034, %v1106
      %v1139 = vadd.f32 %v1035, %v1107
      %v1140 = vadd.f32 %v1036, %v1108
      %v1141 = vlaneseq
      %v1142 = vshrl.u32 %v1141, 7
      %v1143 = vsub.s32 5, %v1142
      %v1144 = vrot.slane %v555, %v1143
      %v1145 = vmul.f32 %v1039, %v1144
      %v1146 = vmul.f32 %v1040, %v1144
      %v1147 = vmul.f32 %v1041, %v1144
      %v1148 = vmul.f32 %v1042, %v1144
      %v1149 = vmul.f32 %v1043, %v1144
      %v1150 = vmul.f32 %v1044, %v1144
      %v1151 = vmul.f32 %v1045, %v1144
      %v1152 = vmul.f32 %v1046, %v1144
      %v1153 = vmul.f32 %v1047, %v1144
      %v1154 = vmul.f32 %v1048, %v1144
      %v1155 = vmul.f32 %v1049, %v1144
      %v1156 = vmul.f32 %v1050, %v1144
      %v1157 = vmul.f32 %v1051, %v1144
      %v1158 = vmul.f32 %v1052, %v1144
      %v1159 = vmul.f32 %v1053, %v1144
      %v1160 = vmul.f32 %v1054, %v1144
      %v1161 = vmul.f32 %v1055, %v1144
      %v1162 = vmul.f32 %v1056, %v1144
      %v1163 = vmul.f32 %v1057, %v1144
      %v1164 = vmul.f32 %v1058, %v1144
      %v1165 = vmul.f32 %v1059, %v1144
      %v1166 = vmul.f32 %v1060, %v1144
      %v1167 = vmul.f32 %v1061, %v1144
      %v1168 = vmul.f32 %v1062, %v1144
      %v1169 = vmul.f32 %v1063, %v1144
      %v1170 = vmul.f32 %v1064, %v1144
      %v1171 = vmul.f32 %v1065, %v1144
      %v1172 = vmul.f32 %v1066, %v1144
      %v1173 = vmul.f32 %v1067, %v1144
      %v1174 = vmul.f32 %v1068, %v1144
      %v1175 = vmul.f32 %v1069, %v1144
      %v1176 = vmul.f32 %v1070, %v1144
      %v1177 = vadd.f32 %v1109, %v1145
      %v1178 = vadd.f32 %v1110, %v1146
      %v1179 = vadd.f32 %v1111, %v1147
      %v1180 = vadd.f32 %v1112, %v1148
      %v1181 = vadd.f32 %v1113, %v1149
      %v1182 = vadd.f32 %v1114, %v1150
      %v1183 = vadd.f32 %v1115, %v1151
      %v1184 = vadd.f32 %v1116, %v1152
      %v1185 = vadd.f32 %v1117, %v1153
      %v1186 = vadd.f32 %v1118, %v1154
      %v1187 = vadd.f32 %v1119, %v1155
      %v1188 = vadd.f32 %v1120, %v1156
      %v1189 = vadd.f32 %v1121, %v1157
      %v1190 = vadd.f32 %v1122, %v1158
      %v1191 = vadd.f32 %v1123, %v1159
      %v1192 = vadd.f32 %v1124, %v1160
      %v1193 = vadd.f32 %v1125, %v1161
      %v1194 = vadd.f32 %v1126, %v1162
      %v1195 = vadd.f32 %v1127, %v1163
      %v1196 = vadd.f32 %v1128, %v1164
      %v1197 = vadd.f32 %v1129, %v1165
      %v1198 = vadd.f32 %v1130, %v1166
      %v1199 = vadd.f32 %v1131, %v1167
      %v1200 = vadd.f32 %v1132, %v1168
      %v1201 = vadd.f32 %v1133, %v1169
      %v1202 = vadd.f32 %v1134, %v1170
      %v1203 = vadd.f32 %v1135, %v1171
      %v1204 = vadd.f32 %v1136, %v1172
      %v1205 = vadd.f32 %v1137, %v1173
      %v1206 = vadd.f32 %v1138, %v1174
      %v1207 = vadd.f32 %v1139, %v1175
      %v1208 = vadd.f32 %v1140, %v1176
      %v1209 = vlaneseq
      %v1210 = vshrl.u32 %v1209, 7
      %v1211 = vsub.s32 0, %v1210
      %v1212 = vrot.slane %v556, %v1211
      %v1213 = vmul.f32 %v1041, %v1212
      %v1214 = vmul.f32 %v1042, %v1212
      %v1215 = vmul.f32 %v1043, %v1212
      %v1216 = vmul.f32 %v1044, %v1212
      %v1217 = vmul.f32 %v1045, %v1212
      %v1218 = vmul.f32 %v1046, %v1212
      %v1219 = vmul.f32 %v1047, %v1212
      %v1220 = vmul.f32 %v1048, %v1212
      %v1221 = vmul.f32 %v1049, %v1212
      %v1222 = vmul.f32 %v1050, %v1212
      %v1223 = vmul.f32 %v1051, %v1212
      %v1224 = vmul.f32 %v1052, %v1212
      %v1225 = vmul.f32 %v1053, %v1212
      %v1226 = vmul.f32 %v1054, %v1212
      %v1227 = vmul.f32 %v1055, %v1212
      %v1228 = vmul.f32 %v1056, %v1212
      %v1229 = vmul.f32 %v1057, %v1212
      %v1230 = vmul.f32 %v1058, %v1212
      %v1231 = vmul.f32 %v1059, %v1212
      %v1232 = vmul.f32 %v1060, %v1212
      %v1233 = vmul.f32 %v1061, %v1212
      %v1234 = vmul.f32 %v1062, %v1212
      %v1235 = vmul.f32 %v1063, %v1212
      %v1236 = vmul.f32 %v1064, %v1212
      %v1237 = vmul.f32 %v1065, %v1212
      %v1238 = vmul.f32 %v1066, %v1212
      %v1239 = vmul.f32 %v1067, %v1212
      %v1240 = vmul.f32 %v1068, %v1212
      %v1241 = vmul.f32 %v1069, %v1212
      %v1242 = vmul.f32 %v1070, %v1212
      %v1243 = vmul.f32 %v1071, %v1212
      %v1244 = vmul.f32 %v1072, %v1212
      %v1245 = vadd.f32 %v1177, %v1213
      %v1246 = vadd.f32 %v1178, %v1214
      %v1247 = vadd.f32 %v1179, %v1215
      %v1248 = vadd.f32 %v1180, %v1216
      %v1249 = vadd.f32 %v1181, %v1217
      %v1250 = vadd.f32 %v1182, %v1218
      %v1251 = vadd.f32 %v1183, %v1219
      %v1252 = vadd.f32 %v1184, %v1220
      %v1253 = vadd.f32 %v1185, %v1221
      %v1254 = vadd.f32 %v1186, %v1222
      %v1255 = vadd.f32 %v1187, %v1223
      %v1256 = vadd.f32 %v1188, %v1224
      %v1257 = vadd.f32 %v1189, %v1225
      %v1258 = vadd.f32 %v1190, %v1226
      %v1259 = vadd.f32 %v1191, %v1227
      %v1260 = vadd.f32 %v1192, %v1228
      %v1261 = vadd.f32 %v1193, %v1229
      %v1262 = vadd.f32 %v1194, %v1230
      %v1263 = vadd.f32 %v1195, %v1231
      %v1264 = vadd.f32 %v1196, %v1232
      %v1265 = vadd.f32 %v1197, %v1233
      %v1266 = vadd.f32 %v1198, %v1234
      %v1267 = vadd.f32 %v1199, %v1235
      %v1268 = vadd.f32 %v1200, %v1236
      %v1269 = vadd.f32 %v1201, %v1237
      %v1270 = vadd.f32 %v1202, %v1238
      %v1271 = vadd.f32 %v1203, %v1239
      %v1272 = vadd.f32 %v1204, %v1240
      %v1273 = vadd.f32 %v1205, %v1241
      %v1274 = vadd.f32 %v1206, %v1242
      %v1275 = vadd.f32 %v1207, %v1243
      %v1276 = vadd.f32 %v1208, %v1244
      %v1277 = vld [vmem:[%s2] sm:$0x1]
      %v1278 = vlaneseq
      %v1279 = vshrl.u32 %v1278, 7
      %v1280 = vsub.s32 0, %v1279
      %v1281 = vrot.slane %v1277, %v1280
      %v1282 = vadd.f32 %v1245, %v1281
      %v1283 = vadd.f32 %v1246, %v1281
      %v1284 = vadd.f32 %v1247, %v1281
      %v1285 = vadd.f32 %v1248, %v1281
      %v1286 = vadd.f32 %v1249, %v1281
      %v1287 = vadd.f32 %v1250, %v1281
      %v1288 = vadd.f32 %v1251, %v1281
      %v1289 = vadd.f32 %v1252, %v1281
      %v1290 = vadd.f32 %v1253, %v1281
      %v1291 = vadd.f32 %v1254, %v1281
      %v1292 = vadd.f32 %v1255, %v1281
      %v1293 = vadd.f32 %v1256, %v1281
      %v1294 = vadd.f32 %v1257, %v1281
      %v1295 = vadd.f32 %v1258, %v1281
      %v1296 = vadd.f32 %v1259, %v1281
      %v1297 = vadd.f32 %v1260, %v1281
      %v1298 = vadd.f32 %v1261, %v1281
      %v1299 = vadd.f32 %v1262, %v1281
      %v1300 = vadd.f32 %v1263, %v1281
      %v1301 = vadd.f32 %v1264, %v1281
      %v1302 = vadd.f32 %v1265, %v1281
      %v1303 = vadd.f32 %v1266, %v1281
      %v1304 = vadd.f32 %v1267, %v1281
      %v1305 = vadd.f32 %v1268, %v1281
      %v1306 = vadd.f32 %v1269, %v1281
      %v1307 = vadd.f32 %v1270, %v1281
      %v1308 = vadd.f32 %v1271, %v1281
      %v1309 = vadd.f32 %v1272, %v1281
      %v1310 = vadd.f32 %v1273, %v1281
      %v1311 = vadd.f32 %v1274, %v1281
      %v1312 = vadd.f32 %v1275, %v1281
      %v1313 = vadd.f32 %v1276, %v1281
      %v1314 = vmax.f32 %v1282, 0.0
      %v1315 = vmax.f32 %v1283, 0.0
      %v1316 = vmax.f32 %v1284, 0.0
      %v1317 = vmax.f32 %v1285, 0.0
      %v1318 = vmax.f32 %v1286, 0.0
      %v1319 = vmax.f32 %v1287, 0.0
      %v1320 = vmax.f32 %v1288, 0.0
      %v1321 = vmax.f32 %v1289, 0.0
      %v1322 = vmax.f32 %v1290, 0.0
      %v1323 = vmax.f32 %v1291, 0.0
      %v1324 = vmax.f32 %v1292, 0.0
      %v1325 = vmax.f32 %v1293, 0.0
      %v1326 = vmax.f32 %v1294, 0.0
      %v1327 = vmax.f32 %v1295, 0.0
      %v1328 = vmax.f32 %v1296, 0.0
      %v1329 = vmax.f32 %v1297, 0.0
      %v1330 = vmax.f32 %v1298, 0.0
      %v1331 = vmax.f32 %v1299, 0.0
      %v1332 = vmax.f32 %v1300, 0.0
      %v1333 = vmax.f32 %v1301, 0.0
      %v1334 = vmax.f32 %v1302, 0.0
      %v1335 = vmax.f32 %v1303, 0.0
      %v1336 = vmax.f32 %v1304, 0.0
      %v1337 = vmax.f32 %v1305, 0.0
      %v1338 = vmax.f32 %v1306, 0.0
      %v1339 = vmax.f32 %v1307, 0.0
      %v1340 = vmax.f32 %v1308, 0.0
      %v1341 = vmax.f32 %v1309, 0.0
      %v1342 = vmax.f32 %v1310, 0.0
      %v1343 = vmax.f32 %v1311, 0.0
      %v1344 = vmax.f32 %v1312, 0.0
      %v1345 = vmax.f32 %v1313, 0.0
      %v1346 = vld [vmem:[%s3] sm:$0x3]
      %v1347 = vld [vmem:[%s4] sm:$0x1]
      %v1348 = vlaneseq
      %v1349 = vshrl.u32 %v1348, 7
      %v1350 = vsub.s32 0, %v1349
      %v1351 = vrot.slane %v1347, %v1350
      %v1353 = vsel %vm306, %v1314, 0
      %v1356 = vsel %vm306, %v1315, 0
      %v1359 = vsel %vm306, %v1316, 0
      %v1362 = vsel %vm306, %v1317, 0
      %v1365 = vsel %vm306, %v1318, 0
      %v1368 = vsel %vm306, %v1319, 0
      %v1371 = vsel %vm306, %v1320, 0
      %v1374 = vsel %vm306, %v1321, 0
      %v1377 = vsel %vm306, %v1322, 0
      %v1380 = vsel %vm306, %v1323, 0
      %v1383 = vsel %vm306, %v1324, 0
      %v1386 = vsel %vm306, %v1325, 0
      %v1389 = vsel %vm306, %v1326, 0
      %v1392 = vsel %vm306, %v1327, 0
      %v1395 = vsel %vm306, %v1328, 0
      %v1398 = vsel %vm306, %v1329, 0
      %v1401 = vsel %vm306, %v1330, 0
      %v1404 = vsel %vm306, %v1331, 0
      %v1407 = vsel %vm306, %v1332, 0
      %v1410 = vsel %vm306, %v1333, 0
      %v1413 = vsel %vm306, %v1334, 0
      %v1416 = vsel %vm306, %v1335, 0
      %v1419 = vsel %vm306, %v1336, 0
      %v1422 = vsel %vm306, %v1337, 0
      %v1425 = vsel %vm306, %v1338, 0
      %v1428 = vsel %vm306, %v1339, 0
      %v1431 = vsel %vm306, %v1340, 0
      %v1434 = vsel %vm306, %v1341, 0
      %v1437 = vsel %vm306, %v1342, 0
      %v1440 = vsel %vm306, %v1343, 0
      %v1443 = vsel %vm306, %v1344, 0
      %v1446 = vsel %vm306, %v1345, 0
      %vm1448 = vcmask 1041408
      %v1450 = vsel %vm1448, %v1346, 0
      %1452 = vmatprep.subr.mxu0 0.0
      %1453 = vmatpush1.msra.mxu0 0.0
      %1454 = vmatprep.subr.mxu0 0.0
      %1455 = vmatpush1.msra.mxu0 0.0
      %1456 = vmatprep.subr.mxu0 0.0
      %1457 = vmatpush1.msra.mxu0 0.0
      %1458 = vmatprep.subr.mxu0 0.0
      %1459 = vmatpush1.msra.mxu0 0.0
      %1460 = vmatprep.subr.mxu0 0.0
      %1461 = vmatpush1.msra.mxu0 0.0
      %1462 = vmatprep.subr.mxu0 0.0
      %1463 = vmatpush1.msra.mxu0 0.0
      %1464 = vmatprep.subr.mxu0 0.0
      %1465 = vmatpush1.msra.mxu0 0.0
      %1466 = vmatprep.subr.mxu0 0.0
      %1467 = vmatpush1.msra.mxu0 0.0
      %1468 = vmatprep.subr.mxu0 0.0
      %1469 = vmatpush1.msra.mxu0 0.0
      %1470 = vmatprep.subr.mxu0 0.0
      %1471 = vmatpush1.msra.mxu0 0.0
      %1472 = vmatprep.subr.mxu0 0.0
      %1473 = vmatpush1.msra.mxu0 0.0
      %1474 = vmatprep.subr.mxu0 0.0
      %1475 = vmatpush1.msra.mxu0 0.0
      %1476 = vmatprep.subr.mxu0 0.0
      %1477 = vmatpush1.msra.mxu0 0.0
      %1478 = vmatprep.subr.mxu0 0.0
      %1479 = vmatpush1.msra.mxu0 0.0
      %1480 = vmatprep.subr.mxu0 0.0
      %1481 = vmatpush1.msra.mxu0 0.0
      %1482 = vmatprep.subr.mxu0 0.0
      %1483 = vmatpush1.msra.mxu0 %v1450
      %1484 = vmatprep.subr.mxu0 0.0
      %1485 = vmatpush2.msra.mxu0 0.0
      %1486 = vmatprep.subr.mxu0 0.0
      %1487 = vmatpush2.msra.mxu0 0.0
      %1488 = vmatprep.subr.mxu0 0.0
      %1489 = vmatpush2.msra.mxu0 0.0
      %1490 = vmatprep.subr.mxu0 0.0
      %1491 = vmatpush2.msra.mxu0 0.0
      %1492 = vmatprep.subr.mxu0 0.0
      %1493 = vmatpush2.msra.mxu0 0.0
      %1494 = vmatprep.subr.mxu0 0.0
      %1495 = vmatpush2.msra.mxu0 0.0
      %1496 = vmatprep.subr.mxu0 0.0
      %1497 = vmatpush2.msra.mxu0 0.0
      %1498 = vmatprep.subr.mxu0 0.0
      %1499 = vmatpush2.msra.mxu0 0.0
      %1500 = vmatprep.subr.mxu0 0.0
      %1501 = vmatpush2.msra.mxu0 0.0
      %1502 = vmatprep.subr.mxu0 0.0
      %1503 = vmatpush2.msra.mxu0 0.0
      %1504 = vmatprep.subr.mxu0 0.0
      %1505 = vmatpush2.msra.mxu0 0.0
      %1506 = vmatprep.subr.mxu0 0.0
      %1507 = vmatpush2.msra.mxu0 0.0
      %1508 = vmatprep.subr.mxu0 0.0
      %1509 = vmatpush2.msra.mxu0 0.0
      %1510 = vmatprep.subr.mxu0 0.0
      %1511 = vmatpush2.msra.mxu0 0.0
      %1512 = vmatprep.subr.mxu0 0.0
      %1513 = vmatpush2.msra.mxu0 0.0
      %1514 = vmatprep.subr.mxu0 0.0
      %1515 = vmatpush2.msra.mxu0 0.0
      %1516 = vmatprep.mubr.f32.mxu0 0.0
      %1517 = vmatmul.mubr.f32.gmra.mxu0 %v1353
      %v1518 = vpop.f32.mrf.mxu0
      %v1519 = vadd.f32 %v1351, %v1518
      %v1520 = vpop.f32.mrf.mxu0
      %1521 = vmatprep.mubr.f32.mxu0 0.0
      %1522 = vmatmul.mubr.f32.gmra.mxu0 %v1356
      %v1523 = vpop.f32.mrf.mxu0
      %v1524 = vadd.f32 %v1351, %v1523
      %v1525 = vpop.f32.mrf.mxu0
      %1526 = vmatprep.mubr.f32.mxu0 0.0
      %1527 = vmatmul.mubr.f32.gmra.mxu0 %v1359
      %v1528 = vpop.f32.mrf.mxu0
      %v1529 = vadd.f32 %v1351, %v1528
      %v1530 = vpop.f32.mrf.mxu0
      %1531 = vmatprep.mubr.f32.mxu0 0.0
      %1532 = vmatmul.mubr.f32.gmra.mxu0 %v1362
      %v1533 = vpop.f32.mrf.mxu0
      %v1534 = vadd.f32 %v1351, %v1533
      %v1535 = vpop.f32.mrf.mxu0
      %1536 = vmatprep.mubr.f32.mxu0 0.0
      %1537 = vmatmul.mubr.f32.gmra.mxu0 %v1365
      %v1538 = vpop.f32.mrf.mxu0
      %v1539 = vadd.f32 %v1351, %v1538
      %v1540 = vpop.f32.mrf.mxu0
      %1541 = vmatprep.mubr.f32.mxu0 0.0
      %1542 = vmatmul.mubr.f32.gmra.mxu0 %v1368
      %v1543 = vpop.f32.mrf.mxu0
      %v1544 = vadd.f32 %v1351, %v1543
      %v1545 = vpop.f32.mrf.mxu0
      %1546 = vmatprep.mubr.f32.mxu0 0.0
      %1547 = vmatmul.mubr.f32.gmra.mxu0 %v1371
      %v1548 = vpop.f32.mrf.mxu0
      %v1549 = vadd.f32 %v1351, %v1548
      %v1550 = vpop.f32.mrf.mxu0
      %1551 = vmatprep.mubr.f32.mxu0 0.0
      %1552 = vmatmul.mubr.f32.gmra.mxu0 %v1374
      %v1553 = vpop.f32.mrf.mxu0
      %v1554 = vadd.f32 %v1351, %v1553
      %v1555 = vpop.f32.mrf.mxu0
      %1556 = vmatprep.mubr.f32.mxu0 0.0
      %1557 = vmatmul.mubr.f32.gmra.mxu0 %v1377
      %v1558 = vpop.f32.mrf.mxu0
      %v1559 = vadd.f32 %v1351, %v1558
      %v1560 = vpop.f32.mrf.mxu0
      %1561 = vmatprep.mubr.f32.mxu0 0.0
      %1562 = vmatmul.mubr.f32.gmra.mxu0 %v1380
      %v1563 = vpop.f32.mrf.mxu0
      %v1564 = vadd.f32 %v1351, %v1563
      %v1565 = vpop.f32.mrf.mxu0
      %1566 = vmatprep.mubr.f32.mxu0 0.0
      %1567 = vmatmul.mubr.f32.gmra.mxu0 %v1383
      %v1568 = vpop.f32.mrf.mxu0
      %v1569 = vadd.f32 %v1351, %v1568
      %v1570 = vpop.f32.mrf.mxu0
      %1571 = vmatprep.mubr.f32.mxu0 0.0
      %1572 = vmatmul.mubr.f32.gmra.mxu0 %v1386
      %v1573 = vpop.f32.mrf.mxu0
      %v1574 = vadd.f32 %v1351, %v1573
      %v1575 = vpop.f32.mrf.mxu0
      %1576 = vmatprep.mubr.f32.mxu0 0.0
      %1577 = vmatmul.mubr.f32.gmra.mxu0 %v1389
      %v1578 = vpop.f32.mrf.mxu0
      %v1579 = vadd.f32 %v1351, %v1578
      %v1580 = vpop.f32.mrf.mxu0
      %1581 = vmatprep.mubr.f32.mxu0 0.0
      %1582 = vmatmul.mubr.f32.gmra.mxu0 %v1392
      %v1583 = vpop.f32.mrf.mxu0
      %v1584 = vadd.f32 %v1351, %v1583
      %v1585 = vpop.f32.mrf.mxu0
      %1586 = vmatprep.mubr.f32.mxu0 0.0
      %1587 = vmatmul.mubr.f32.gmra.mxu0 %v1395
      %v1588 = vpop.f32.mrf.mxu0
      %v1589 = vadd.f32 %v1351, %v1588
      %v1590 = vpop.f32.mrf.mxu0
      %1591 = vmatprep.mubr.f32.mxu0 0.0
      %1592 = vmatmul.mubr.f32.gmra.mxu0 %v1398
      %v1593 = vpop.f32.mrf.mxu0
      %v1594 = vadd.f32 %v1351, %v1593
      %v1595 = vpop.f32.mrf.mxu0
      %1596 = vmatprep.mubr.f32.mxu0 0.0
      %1597 = vmatmul.mubr.f32.gmra.mxu0 %v1401
      %v1598 = vpop.f32.mrf.mxu0
      %v1599 = vadd.f32 %v1351, %v1598
      %v1600 = vpop.f32.mrf.mxu0
      %1601 = vmatprep.mubr.f32.mxu0 0.0
      %1602 = vmatmul.mubr.f32.gmra.mxu0 %v1404
      %v1603 = vpop.f32.mrf.mxu0
      %v1604 = vadd.f32 %v1351, %v1603
      %v1605 = vpop.f32.mrf.mxu0
      %1606 = vmatprep.mubr.f32.mxu0 0.0
      %1607 = vmatmul.mubr.f32.gmra.mxu0 %v1407
      %v1608 = vpop.f32.mrf.mxu0
      %v1609 = vadd.f32 %v1351, %v1608
      %v1610 = vpop.f32.mrf.mxu0
      %1611 = vmatprep.mubr.f32.mxu0 0.0
      %1612 = vmatmul.mubr.f32.gmra.mxu0 %v1410
      %v1613 = vpop.f32.mrf.mxu0
      %v1614 = vadd.f32 %v1351, %v1613
      %v1615 = vpop.f32.mrf.mxu0
      %1616 = vmatprep.mubr.f32.mxu0 0.0
      %1617 = vmatmul.mubr.f32.gmra.mxu0 %v1413
      %v1618 = vpop.f32.mrf.mxu0
      %v1619 = vadd.f32 %v1351, %v1618
      %v1620 = vpop.f32.mrf.mxu0
      %1621 = vmatprep.mubr.f32.mxu0 0.0
      %1622 = vmatmul.mubr.f32.gmra.mxu0 %v1416
      %v1623 = vpop.f32.mrf.mxu0
      %v1624 = vadd.f32 %v1351, %v1623
      %v1625 = vpop.f32.mrf.mxu0
      %1626 = vmatprep.mubr.f32.mxu0 0.0
      %1627 = vmatmul.mubr.f32.gmra.mxu0 %v1419
      %v1628 = vpop.f32.mrf.mxu0
      %v1629 = vadd.f32 %v1351, %v1628
      %v1630 = vpop.f32.mrf.mxu0
      %1631 = vmatprep.mubr.f32.mxu0 0.0
      %1632 = vmatmul.mubr.f32.gmra.mxu0 %v1422
      %v1633 = vpop.f32.mrf.mxu0
      %v1634 = vadd.f32 %v1351, %v1633
      %v1635 = vpop.f32.mrf.mxu0
      %1636 = vmatprep.mubr.f32.mxu0 0.0
      %1637 = vmatmul.mubr.f32.gmra.mxu0 %v1425
      %v1638 = vpop.f32.mrf.mxu0
      %v1639 = vadd.f32 %v1351, %v1638
      %v1640 = vpop.f32.mrf.mxu0
      %1641 = vmatprep.mubr.f32.mxu0 0.0
      %1642 = vmatmul.mubr.f32.gmra.mxu0 %v1428
      %v1643 = vpop.f32.mrf.mxu0
      %v1644 = vadd.f32 %v1351, %v1643
      %v1645 = vpop.f32.mrf.mxu0
      %1646 = vmatprep.mubr.f32.mxu0 0.0
      %1647 = vmatmul.mubr.f32.gmra.mxu0 %v1431
      %v1648 = vpop.f32.mrf.mxu0
      %v1649 = vadd.f32 %v1351, %v1648
      %v1650 = vpop.f32.mrf.mxu0
      %1651 = vmatprep.mubr.f32.mxu0 0.0
      %1652 = vmatmul.mubr.f32.gmra.mxu0 %v1434
      %v1653 = vpop.f32.mrf.mxu0
      %v1654 = vadd.f32 %v1351, %v1653
      %v1655 = vpop.f32.mrf.mxu0
      %1656 = vmatprep.mubr.f32.mxu0 0.0
      %1657 = vmatmul.mubr.f32.gmra.mxu0 %v1437
      %v1658 = vpop.f32.mrf.mxu0
      %v1659 = vadd.f32 %v1351, %v1658
      %v1660 = vpop.f32.mrf.mxu0
      %1661 = vmatprep.mubr.f32.mxu0 0.0
      %1662 = vmatmul.mubr.f32.gmra.mxu0 %v1440
      %v1663 = vpop.f32.mrf.mxu0
      %v1664 = vadd.f32 %v1351, %v1663
      %v1665 = vpop.f32.mrf.mxu0
      %1666 = vmatprep.mubr.f32.mxu0 0.0
      %1667 = vmatmul.mubr.f32.gmra.mxu0 %v1443
      %v1668 = vpop.f32.mrf.mxu0
      %v1669 = vadd.f32 %v1351, %v1668
      %v1670 = vpop.f32.mrf.mxu0
      %1671 = vmatprep.mubr.f32.mxu0 0.0
      %1672 = vmatmul.mubr.f32.gmra.mxu0 %v1446
      %v1673 = vpop.f32.mrf.mxu0
      %v1674 = vadd.f32 %v1351, %v1673
      %v1675 = vpop.f32.mrf.mxu0
      %1676 = vdwg.mxu0
      %v1677 = vmax.f32 %v1519, 0.0
      %v1678 = vmax.f32 %v1524, 0.0
      %v1679 = vmax.f32 %v1529, 0.0
      %v1680 = vmax.f32 %v1534, 0.0
      %v1681 = vmax.f32 %v1539, 0.0
      %v1682 = vmax.f32 %v1544, 0.0
      %v1683 = vmax.f32 %v1549, 0.0
      %v1684 = vmax.f32 %v1554, 0.0
      %v1685 = vmax.f32 %v1559, 0.0
      %v1686 = vmax.f32 %v1564, 0.0
      %v1687 = vmax.f32 %v1569, 0.0
      %v1688 = vmax.f32 %v1574, 0.0
      %v1689 = vmax.f32 %v1579, 0.0
      %v1690 = vmax.f32 %v1584, 0.0
      %v1691 = vmax.f32 %v1589, 0.0
      %v1692 = vmax.f32 %v1594, 0.0
      %v1693 = vmax.f32 %v1599, 0.0
      %v1694 = vmax.f32 %v1604, 0.0
      %v1695 = vmax.f32 %v1609, 0.0
      %v1696 = vmax.f32 %v1614, 0.0
      %v1697 = vmax.f32 %v1619, 0.0
      %v1698 = vmax.f32 %v1624, 0.0
      %v1699 = vmax.f32 %v1629, 0.0
      %v1700 = vmax.f32 %v1634, 0.0
      %v1701 = vmax.f32 %v1639, 0.0
      %v1702 = vmax.f32 %v1644, 0.0
      %v1703 = vmax.f32 %v1649, 0.0
      %v1704 = vmax.f32 %v1654, 0.0
      %v1705 = vmax.f32 %v1659, 0.0
      %v1706 = vmax.f32 %v1664, 0.0
      %v1707 = vmax.f32 %v1669, 0.0
      %v1708 = vmax.f32 %v1674, 0.0
      %v1709 = vld [vmem:[%s5] sm:$0x3]
      %v1710 = vld [vmem:[%s6] sm:$0x3]
      %v1712 = vsel %vm306, %v1677, 0
      %v1715 = vsel %vm306, %v1678, 0
      %v1718 = vsel %vm306, %v1679, 0
      %v1721 = vsel %vm306, %v1680, 0
      %v1724 = vsel %vm306, %v1681, 0
      %v1727 = vsel %vm306, %v1682, 0
      %v1730 = vsel %vm306, %v1683, 0
      %v1733 = vsel %vm306, %v1684, 0
      %v1736 = vsel %vm306, %v1685, 0
      %v1739 = vsel %vm306, %v1686, 0
      %v1742 = vsel %vm306, %v1687, 0
      %v1745 = vsel %vm306, %v1688, 0
      %v1748 = vsel %vm306, %v1689, 0
      %v1751 = vsel %vm306, %v1690, 0
      %v1754 = vsel %vm306, %v1691, 0
      %v1757 = vsel %vm306, %v1692, 0
      %v1760 = vsel %vm306, %v1693, 0
      %v1763 = vsel %vm306, %v1694, 0
      %v1766 = vsel %vm306, %v1695, 0
      %v1769 = vsel %vm306, %v1696, 0
      %v1772 = vsel %vm306, %v1697, 0
      %v1775 = vsel %vm306, %v1698, 0
      %v1778 = vsel %vm306, %v1699, 0
      %v1781 = vsel %vm306, %v1700, 0
      %v1784 = vsel %vm306, %v1701, 0
      %v1787 = vsel %vm306, %v1702, 0
      %v1790 = vsel %vm306, %v1703, 0
      %v1793 = vsel %vm306, %v1704, 0
      %v1796 = vsel %vm306, %v1705, 0
      %v1799 = vsel %vm306, %v1706, 0
      %v1802 = vsel %vm306, %v1707, 0
      %v1805 = vsel %vm306, %v1708, 0
      %v1808 = vsel %vm1448, %v1710, 0
      %1810 = vmatprep.subr.mxu0 0.0
      %1811 = vmatpush1.msra.mxu0 0.0
      %1812 = vmatprep.subr.mxu0 0.0
      %1813 = vmatpush1.msra.mxu0 0.0
      %1814 = vmatprep.subr.mxu0 0.0
      %1815 = vmatpush1.msra.mxu0 0.0
      %1816 = vmatprep.subr.mxu0 0.0
      %1817 = vmatpush1.msra.mxu0 0.0
      %1818 = vmatprep.subr.mxu0 0.0
      %1819 = vmatpush1.msra.mxu0 0.0
      %1820 = vmatprep.subr.mxu0 0.0
      %1821 = vmatpush1.msra.mxu0 0.0
      %1822 = vmatprep.subr.mxu0 0.0
      %1823 = vmatpush1.msra.mxu0 0.0
      %1824 = vmatprep.subr.mxu0 0.0
      %1825 = vmatpush1.msra.mxu0 0.0
      %1826 = vmatprep.subr.mxu0 0.0
      %1827 = vmatpush1.msra.mxu0 0.0
      %1828 = vmatprep.subr.mxu0 0.0
      %1829 = vmatpush1.msra.mxu0 0.0
      %1830 = vmatprep.subr.mxu0 0.0
      %1831 = vmatpush1.msra.mxu0 0.0
      %1832 = vmatprep.subr.mxu0 0.0
      %1833 = vmatpush1.msra.mxu0 0.0
      %1834 = vmatprep.subr.mxu0 0.0
      %1835 = vmatpush1.msra.mxu0 0.0
      %1836 = vmatprep.subr.mxu0 0.0
      %1837 = vmatpush1.msra.mxu0 0.0
      %1838 = vmatprep.subr.mxu0 0.0
      %1839 = vmatpush1.msra.mxu0 0.0
      %1840 = vmatprep.subr.mxu0 0.0
      %1841 = vmatpush1.msra.mxu0 %v1808
      %1842 = vmatprep.subr.mxu0 0.0
      %1843 = vmatpush2.msra.mxu0 0.0
      %1844 = vmatprep.subr.mxu0 0.0
      %1845 = vmatpush2.msra.mxu0 0.0
      %1846 = vmatprep.subr.mxu0 0.0
      %1847 = vmatpush2.msra.mxu0 0.0
      %1848 = vmatprep.subr.mxu0 0.0
      %1849 = vmatpush2.msra.mxu0 0.0
      %1850 = vmatprep.subr.mxu0 0.0
      %1851 = vmatpush2.msra.mxu0 0.0
      %1852 = vmatprep.subr.mxu0 0.0
      %1853 = vmatpush2.msra.mxu0 0.0
      %1854 = vmatprep.subr.mxu0 0.0
      %1855 = vmatpush2.msra.mxu0 0.0
      %1856 = vmatprep.subr.mxu0 0.0
      %1857 = vmatpush2.msra.mxu0 0.0
      %1858 = vmatprep.subr.mxu0 0.0
      %1859 = vmatpush2.msra.mxu0 0.0
      %1860 = vmatprep.subr.mxu0 0.0
      %1861 = vmatpush2.msra.mxu0 0.0
      %1862 = vmatprep.subr.mxu0 0.0
      %1863 = vmatpush2.msra.mxu0 0.0
      %1864 = vmatprep.subr.mxu0 0.0
      %1865 = vmatpush2.msra.mxu0 0.0
      %1866 = vmatprep.subr.mxu0 0.0
      %1867 = vmatpush2.msra.mxu0 0.0
      %1868 = vmatprep.subr.mxu0 0.0
      %1869 = vmatpush2.msra.mxu0 0.0
      %1870 = vmatprep.subr.mxu0 0.0
      %1871 = vmatpush2.msra.mxu0 0.0
      %1872 = vmatprep.subr.mxu0 0.0
      %1873 = vmatpush2.msra.mxu0 0.0
      %1874 = vmatprep.mubr.f32.mxu0 0.0
      %1875 = vmatmul.mubr.f32.gmra.mxu0 %v1712
      %v1876 = vpop.f32.mrf.mxu0
      %v1877 = vadd.f32 0.0, %v1876
      %v1878 = vpop.f32.mrf.mxu0
      %1879 = vmatprep.mubr.f32.mxu0 0.0
      %1880 = vmatmul.mubr.f32.gmra.mxu0 %v1715
      %v1881 = vpop.f32.mrf.mxu0
      %v1882 = vadd.f32 0.0, %v1881
      %v1883 = vpop.f32.mrf.mxu0
      %1884 = vmatprep.mubr.f32.mxu0 0.0
      %1885 = vmatmul.mubr.f32.gmra.mxu0 %v1718
      %v1886 = vpop.f32.mrf.mxu0
      %v1887 = vadd.f32 0.0, %v1886
      %v1888 = vpop.f32.mrf.mxu0
      %1889 = vmatprep.mubr.f32.mxu0 0.0
      %1890 = vmatmul.mubr.f32.gmra.mxu0 %v1721
      %v1891 = vpop.f32.mrf.mxu0
      %v1892 = vadd.f32 0.0, %v1891
      %v1893 = vpop.f32.mrf.mxu0
      %1894 = vmatprep.mubr.f32.mxu0 0.0
      %1895 = vmatmul.mubr.f32.gmra.mxu0 %v1724
      %v1896 = vpop.f32.mrf.mxu0
      %v1897 = vadd.f32 0.0, %v1896
      %v1898 = vpop.f32.mrf.mxu0
      %1899 = vmatprep.mubr.f32.mxu0 0.0
      %1900 = vmatmul.mubr.f32.gmra.mxu0 %v1727
      %v1901 = vpop.f32.mrf.mxu0
      %v1902 = vadd.f32 0.0, %v1901
      %v1903 = vpop.f32.mrf.mxu0
      %1904 = vmatprep.mubr.f32.mxu0 0.0
      %1905 = vmatmul.mubr.f32.gmra.mxu0 %v1730
      %v1906 = vpop.f32.mrf.mxu0
      %v1907 = vadd.f32 0.0, %v1906
      %v1908 = vpop.f32.mrf.mxu0
      %1909 = vmatprep.mubr.f32.mxu0 0.0
      %1910 = vmatmul.mubr.f32.gmra.mxu0 %v1733
      %v1911 = vpop.f32.mrf.mxu0
      %v1912 = vadd.f32 0.0, %v1911
      %v1913 = vpop.f32.mrf.mxu0
      %1914 = vmatprep.mubr.f32.mxu0 0.0
      %1915 = vmatmul.mubr.f32.gmra.mxu0 %v1736
      %v1916 = vpop.f32.mrf.mxu0
      %v1917 = vadd.f32 0.0, %v1916
      %v1918 = vpop.f32.mrf.mxu0
      %1919 = vmatprep.mubr.f32.mxu0 0.0
      %1920 = vmatmul.mubr.f32.gmra.mxu0 %v1739
      %v1921 = vpop.f32.mrf.mxu0
      %v1922 = vadd.f32 0.0, %v1921
      %v1923 = vpop.f32.mrf.mxu0
      %1924 = vmatprep.mubr.f32.mxu0 0.0
      %1925 = vmatmul.mubr.f32.gmra.mxu0 %v1742
      %v1926 = vpop.f32.mrf.mxu0
      %v1927 = vadd.f32 0.0, %v1926
      %v1928 = vpop.f32.mrf.mxu0
      %1929 = vmatprep.mubr.f32.mxu0 0.0
      %1930 = vmatmul.mubr.f32.gmra.mxu0 %v1745
      %v1931 = vpop.f32.mrf.mxu0
      %v1932 = vadd.f32 0.0, %v1931
      %v1933 = vpop.f32.mrf.mxu0
      %1934 = vmatprep.mubr.f32.mxu0 0.0
      %1935 = vmatmul.mubr.f32.gmra.mxu0 %v1748
      %v1936 = vpop.f32.mrf.mxu0
      %v1937 = vadd.f32 0.0, %v1936
      %v1938 = vpop.f32.mrf.mxu0
      %1939 = vmatprep.mubr.f32.mxu0 0.0
      %1940 = vmatmul.mubr.f32.gmra.mxu0 %v1751
      %v1941 = vpop.f32.mrf.mxu0
      %v1942 = vadd.f32 0.0, %v1941
      %v1943 = vpop.f32.mrf.mxu0
      %1944 = vmatprep.mubr.f32.mxu0 0.0
      %1945 = vmatmul.mubr.f32.gmra.mxu0 %v1754
      %v1946 = vpop.f32.mrf.mxu0
      %v1947 = vadd.f32 0.0, %v1946
      %v1948 = vpop.f32.mrf.mxu0
      %1949 = vmatprep.mubr.f32.mxu0 0.0
      %1950 = vmatmul.mubr.f32.gmra.mxu0 %v1757
      %v1951 = vpop.f32.mrf.mxu0
      %v1952 = vadd.f32 0.0, %v1951
      %v1953 = vpop.f32.mrf.mxu0
      %1954 = vmatprep.mubr.f32.mxu0 0.0
      %1955 = vmatmul.mubr.f32.gmra.mxu0 %v1760
      %v1956 = vpop.f32.mrf.mxu0
      %v1957 = vadd.f32 0.0, %v1956
      %v1958 = vpop.f32.mrf.mxu0
      %1959 = vmatprep.mubr.f32.mxu0 0.0
      %1960 = vmatmul.mubr.f32.gmra.mxu0 %v1763
      %v1961 = vpop.f32.mrf.mxu0
      %v1962 = vadd.f32 0.0, %v1961
      %v1963 = vpop.f32.mrf.mxu0
      %1964 = vmatprep.mubr.f32.mxu0 0.0
      %1965 = vmatmul.mubr.f32.gmra.mxu0 %v1766
      %v1966 = vpop.f32.mrf.mxu0
      %v1967 = vadd.f32 0.0, %v1966
      %v1968 = vpop.f32.mrf.mxu0
      %1969 = vmatprep.mubr.f32.mxu0 0.0
      %1970 = vmatmul.mubr.f32.gmra.mxu0 %v1769
      %v1971 = vpop.f32.mrf.mxu0
      %v1972 = vadd.f32 0.0, %v1971
      %v1973 = vpop.f32.mrf.mxu0
      %1974 = vmatprep.mubr.f32.mxu0 0.0
      %1975 = vmatmul.mubr.f32.gmra.mxu0 %v1772
      %v1976 = vpop.f32.mrf.mxu0
      %v1977 = vadd.f32 0.0, %v1976
      %v1978 = vpop.f32.mrf.mxu0
      %1979 = vmatprep.mubr.f32.mxu0 0.0
      %1980 = vmatmul.mubr.f32.gmra.mxu0 %v1775
      %v1981 = vpop.f32.mrf.mxu0
      %v1982 = vadd.f32 0.0, %v1981
      %v1983 = vpop.f32.mrf.mxu0
      %1984 = vmatprep.mubr.f32.mxu0 0.0
      %1985 = vmatmul.mubr.f32.gmra.mxu0 %v1778
      %v1986 = vpop.f32.mrf.mxu0
      %v1987 = vadd.f32 0.0, %v1986
      %v1988 = vpop.f32.mrf.mxu0
      %1989 = vmatprep.mubr.f32.mxu0 0.0
      %1990 = vmatmul.mubr.f32.gmra.mxu0 %v1781
      %v1991 = vpop.f32.mrf.mxu0
      %v1992 = vadd.f32 0.0, %v1991
      %v1993 = vpop.f32.mrf.mxu0
      %1994 = vmatprep.mubr.f32.mxu0 0.0
      %1995 = vmatmul.mubr.f32.gmra.mxu0 %v1784
      %v1996 = vpop.f32.mrf.mxu0
      %v1997 = vadd.f32 0.0, %v1996
      %v1998 = vpop.f32.mrf.mxu0
      %1999 = vmatprep.mubr.f32.mxu0 0.0
      %2000 = vmatmul.mubr.f32.gmra.mxu0 %v1787
      %v2001 = vpop.f32.mrf.mxu0
      %v2002 = vadd.f32 0.0, %v2001
      %v2003 = vpop.f32.mrf.mxu0
      %2004 = vmatprep.mubr.f32.mxu0 0.0
      %2005 = vmatmul.mubr.f32.gmra.mxu0 %v1790
      %v2006 = vpop.f32.mrf.mxu0
      %v2007 = vadd.f32 0.0, %v2006
      %v2008 = vpop.f32.mrf.mxu0
      %2009 = vmatprep.mubr.f32.mxu0 0.0
      %2010 = vmatmul.mubr.f32.gmra.mxu0 %v1793
      %v2011 = vpop.f32.mrf.mxu0
      %v2012 = vadd.f32 0.0, %v2011
      %v2013 = vpop.f32.mrf.mxu0
      %2014 = vmatprep.mubr.f32.mxu0 0.0
      %2015 = vmatmul.mubr.f32.gmra.mxu0 %v1796
      %v2016 = vpop.f32.mrf.mxu0
      %v2017 = vadd.f32 0.0, %v2016
      %v2018 = vpop.f32.mrf.mxu0
      %2019 = vmatprep.mubr.f32.mxu0 0.0
      %2020 = vmatmul.mubr.f32.gmra.mxu0 %v1799
      %v2021 = vpop.f32.mrf.mxu0
      %v2022 = vadd.f32 0.0, %v2021
      %v2023 = vpop.f32.mrf.mxu0
      %2024 = vmatprep.mubr.f32.mxu0 0.0
      %2025 = vmatmul.mubr.f32.gmra.mxu0 %v1802
      %v2026 = vpop.f32.mrf.mxu0
      %v2027 = vadd.f32 0.0, %v2026
      %v2028 = vpop.f32.mrf.mxu0
      %2029 = vmatprep.mubr.f32.mxu0 0.0
      %2030 = vmatmul.mubr.f32.gmra.mxu0 %v1805
      %v2031 = vpop.f32.mrf.mxu0
      %v2032 = vadd.f32 0.0, %v2031
      %v2033 = vpop.f32.mrf.mxu0
      %2034 = vdwg.mxu0
      %v2035 = vsel %vm306, %v362, 0
      %v2037 = vsel %vm306, %v363, 0
      %v2039 = vsel %vm306, %v364, 0
      %v2041 = vsel %vm306, %v365, 0
      %v2043 = vsel %vm306, %v366, 0
      %v2045 = vsel %vm306, %v367, 0
      %v2047 = vsel %vm306, %v368, 0
      %v2049 = vsel %vm306, %v369, 0
      %v2051 = vsel %vm306, %v370, 0
      %v2053 = vsel %vm306, %v371, 0
      %v2055 = vsel %vm306, %v372, 0
      %v2057 = vsel %vm306, %v373, 0
      %v2059 = vsel %vm306, %v374, 0
      %v2061 = vsel %vm306, %v375, 0
      %v2063 = vsel %vm306, %v376, 0
      %v2065 = vsel %vm306, %v377, 0
      %v2067 = vsel %vm306, %v378, 0
      %v2069 = vsel %vm306, %v379, 0
      %v2071 = vsel %vm306, %v380, 0
      %v2073 = vsel %vm306, %v381, 0
      %v2075 = vsel %vm306, %v382, 0
      %v2077 = vsel %vm306, %v383, 0
      %v2079 = vsel %vm306, %v384, 0
      %v2081 = vsel %vm306, %v385, 0
      %v2083 = vsel %vm306, %v386, 0
      %v2085 = vsel %vm306, %v387, 0
      %v2087 = vsel %vm306, %v388, 0
      %v2089 = vsel %vm306, %v389, 0
      %v2091 = vsel %vm306, %v390, 0
      %v2093 = vsel %vm306, %v391, 0
      %v2095 = vsel %vm306, %v392, 0
      %v2097 = vsel %vm306, %v393, 0
      %v2100 = vsel %vm1448, %v1709, 0
      %2102 = vmatprep.subr.mxu0 0.0
      %2103 = vmatpush1.msra.mxu0 0.0
      %2104 = vmatprep.subr.mxu0 0.0
      %2105 = vmatpush1.msra.mxu0 0.0
      %2106 = vmatprep.subr.mxu0 0.0
      %2107 = vmatpush1.msra.mxu0 0.0
      %2108 = vmatprep.subr.mxu0 0.0
      %2109 = vmatpush1.msra.mxu0 0.0
      %2110 = vmatprep.subr.mxu0 0.0
      %2111 = vmatpush1.msra.mxu0 0.0
      %2112 = vmatprep.subr.mxu0 0.0
      %2113 = vmatpush1.msra.mxu0 0.0
      %2114 = vmatprep.subr.mxu0 0.0
      %2115 = vmatpush1.msra.mxu0 0.0
      %2116 = vmatprep.subr.mxu0 0.0
      %2117 = vmatpush1.msra.mxu0 0.0
      %2118 = vmatprep.subr.mxu0 0.0
      %2119 = vmatpush1.msra.mxu0 0.0
      %2120 = vmatprep.subr.mxu0 0.0
      %2121 = vmatpush1.msra.mxu0 0.0
      %2122 = vmatprep.subr.mxu0 0.0
      %2123 = vmatpush1.msra.mxu0 0.0
      %2124 = vmatprep.subr.mxu0 0.0
      %2125 = vmatpush1.msra.mxu0 0.0
      %2126 = vmatprep.subr.mxu0 0.0
      %2127 = vmatpush1.msra.mxu0 0.0
      %2128 = vmatprep.subr.mxu0 0.0
      %2129 = vmatpush1.msra.mxu0 0.0
      %2130 = vmatprep.subr.mxu0 0.0
      %2131 = vmatpush1.msra.mxu0 0.0
      %2132 = vmatprep.subr.mxu0 0.0
      %2133 = vmatpush1.msra.mxu0 %v2100
      %2134 = vmatprep.subr.mxu0 0.0
      %2135 = vmatpush2.msra.mxu0 0.0
      %2136 = vmatprep.subr.mxu0 0.0
      %2137 = vmatpush2.msra.mxu0 0.0
      %2138 = vmatprep.subr.mxu0 0.0
      %2139 = vmatpush2.msra.mxu0 0.0
      %2140 = vmatprep.subr.mxu0 0.0
      %2141 = vmatpush2.msra.mxu0 0.0
      %2142 = vmatprep.subr.mxu0 0.0
      %2143 = vmatpush2.msra.mxu0 0.0
      %2144 = vmatprep.subr.mxu0 0.0
      %2145 = vmatpush2.msra.mxu0 0.0
      %2146 = vmatprep.subr.mxu0 0.0
      %2147 = vmatpush2.msra.mxu0 0.0
      %2148 = vmatprep.subr.mxu0 0.0
      %2149 = vmatpush2.msra.mxu0 0.0
      %2150 = vmatprep.subr.mxu0 0.0
      %2151 = vmatpush2.msra.mxu0 0.0
      %2152 = vmatprep.subr.mxu0 0.0
      %2153 = vmatpush2.msra.mxu0 0.0
      %2154 = vmatprep.subr.mxu0 0.0
      %2155 = vmatpush2.msra.mxu0 0.0
      %2156 = vmatprep.subr.mxu0 0.0
      %2157 = vmatpush2.msra.mxu0 0.0
      %2158 = vmatprep.subr.mxu0 0.0
      %2159 = vmatpush2.msra.mxu0 0.0
      %2160 = vmatprep.subr.mxu0 0.0
      %2161 = vmatpush2.msra.mxu0 0.0
      %2162 = vmatprep.subr.mxu0 0.0
      %2163 = vmatpush2.msra.mxu0 0.0
      %2164 = vmatprep.subr.mxu0 0.0
      %2165 = vmatpush2.msra.mxu0 0.0
      %2166 = vmatprep.mubr.f32.mxu0 0.0
      %2167 = vmatmul.mubr.f32.gmra.mxu0 %v2035
      %v2168 = vpop.f32.mrf.mxu0
      %v2169 = vadd.f32 %v1877, %v2168
      %v2170 = vpop.f32.mrf.mxu0
      %2171 = vmatprep.mubr.f32.mxu0 0.0
      %2172 = vmatmul.mubr.f32.gmra.mxu0 %v2037
      %v2173 = vpop.f32.mrf.mxu0
      %v2174 = vadd.f32 %v1882, %v2173
      %v2175 = vpop.f32.mrf.mxu0
      %2176 = vmatprep.mubr.f32.mxu0 0.0
      %2177 = vmatmul.mubr.f32.gmra.mxu0 %v2039
      %v2178 = vpop.f32.mrf.mxu0
      %v2179 = vadd.f32 %v1887, %v2178
      %v2180 = vpop.f32.mrf.mxu0
      %2181 = vmatprep.mubr.f32.mxu0 0.0
      %2182 = vmatmul.mubr.f32.gmra.mxu0 %v2041
      %v2183 = vpop.f32.mrf.mxu0
      %v2184 = vadd.f32 %v1892, %v2183
      %v2185 = vpop.f32.mrf.mxu0
      %2186 = vmatprep.mubr.f32.mxu0 0.0
      %2187 = vmatmul.mubr.f32.gmra.mxu0 %v2043
      %v2188 = vpop.f32.mrf.mxu0
      %v2189 = vadd.f32 %v1897, %v2188
      %v2190 = vpop.f32.mrf.mxu0
      %2191 = vmatprep.mubr.f32.mxu0 0.0
      %2192 = vmatmul.mubr.f32.gmra.mxu0 %v2045
      %v2193 = vpop.f32.mrf.mxu0
      %v2194 = vadd.f32 %v1902, %v2193
      %v2195 = vpop.f32.mrf.mxu0
      %2196 = vmatprep.mubr.f32.mxu0 0.0
      %2197 = vmatmul.mubr.f32.gmra.mxu0 %v2047
      %v2198 = vpop.f32.mrf.mxu0
      %v2199 = vadd.f32 %v1907, %v2198
      %v2200 = vpop.f32.mrf.mxu0
      %2201 = vmatprep.mubr.f32.mxu0 0.0
      %2202 = vmatmul.mubr.f32.gmra.mxu0 %v2049
      %v2203 = vpop.f32.mrf.mxu0
      %v2204 = vadd.f32 %v1912, %v2203
      %v2205 = vpop.f32.mrf.mxu0
      %2206 = vmatprep.mubr.f32.mxu0 0.0
      %2207 = vmatmul.mubr.f32.gmra.mxu0 %v2051
      %v2208 = vpop.f32.mrf.mxu0
      %v2209 = vadd.f32 %v1917, %v2208
      %v2210 = vpop.f32.mrf.mxu0
      %2211 = vmatprep.mubr.f32.mxu0 0.0
      %2212 = vmatmul.mubr.f32.gmra.mxu0 %v2053
      %v2213 = vpop.f32.mrf.mxu0
      %v2214 = vadd.f32 %v1922, %v2213
      %v2215 = vpop.f32.mrf.mxu0
      %2216 = vmatprep.mubr.f32.mxu0 0.0
      %2217 = vmatmul.mubr.f32.gmra.mxu0 %v2055
      %v2218 = vpop.f32.mrf.mxu0
      %v2219 = vadd.f32 %v1927, %v2218
      %v2220 = vpop.f32.mrf.mxu0
      %2221 = vmatprep.mubr.f32.mxu0 0.0
      %2222 = vmatmul.mubr.f32.gmra.mxu0 %v2057
      %v2223 = vpop.f32.mrf.mxu0
      %v2224 = vadd.f32 %v1932, %v2223
      %v2225 = vpop.f32.mrf.mxu0
      %2226 = vmatprep.mubr.f32.mxu0 0.0
      %2227 = vmatmul.mubr.f32.gmra.mxu0 %v2059
      %v2228 = vpop.f32.mrf.mxu0
      %v2229 = vadd.f32 %v1937, %v2228
      %v2230 = vpop.f32.mrf.mxu0
      %2231 = vmatprep.mubr.f32.mxu0 0.0
      %2232 = vmatmul.mubr.f32.gmra.mxu0 %v2061
      %v2233 = vpop.f32.mrf.mxu0
      %v2234 = vadd.f32 %v1942, %v2233
      %v2235 = vpop.f32.mrf.mxu0
      %2236 = vmatprep.mubr.f32.mxu0 0.0
      %2237 = vmatmul.mubr.f32.gmra.mxu0 %v2063
      %v2238 = vpop.f32.mrf.mxu0
      %v2239 = vadd.f32 %v1947, %v2238
      %v2240 = vpop.f32.mrf.mxu0
      %2241 = vmatprep.mubr.f32.mxu0 0.0
      %2242 = vmatmul.mubr.f32.gmra.mxu0 %v2065
      %v2243 = vpop.f32.mrf.mxu0
      %v2244 = vadd.f32 %v1952, %v2243
      %v2245 = vpop.f32.mrf.mxu0
      %2246 = vmatprep.mubr.f32.mxu0 0.0
      %2247 = vmatmul.mubr.f32.gmra.mxu0 %v2067
      %v2248 = vpop.f32.mrf.mxu0
      %v2249 = vadd.f32 %v1957, %v2248
      %v2250 = vpop.f32.mrf.mxu0
      %2251 = vmatprep.mubr.f32.mxu0 0.0
      %2252 = vmatmul.mubr.f32.gmra.mxu0 %v2069
      %v2253 = vpop.f32.mrf.mxu0
      %v2254 = vadd.f32 %v1962, %v2253
      %v2255 = vpop.f32.mrf.mxu0
      %2256 = vmatprep.mubr.f32.mxu0 0.0
      %2257 = vmatmul.mubr.f32.gmra.mxu0 %v2071
      %v2258 = vpop.f32.mrf.mxu0
      %v2259 = vadd.f32 %v1967, %v2258
      %v2260 = vpop.f32.mrf.mxu0
      %2261 = vmatprep.mubr.f32.mxu0 0.0
      %2262 = vmatmul.mubr.f32.gmra.mxu0 %v2073
      %v2263 = vpop.f32.mrf.mxu0
      %v2264 = vadd.f32 %v1972, %v2263
      %v2265 = vpop.f32.mrf.mxu0
      %2266 = vmatprep.mubr.f32.mxu0 0.0
      %2267 = vmatmul.mubr.f32.gmra.mxu0 %v2075
      %v2268 = vpop.f32.mrf.mxu0
      %v2269 = vadd.f32 %v1977, %v2268
      %v2270 = vpop.f32.mrf.mxu0
      %2271 = vmatprep.mubr.f32.mxu0 0.0
      %2272 = vmatmul.mubr.f32.gmra.mxu0 %v2077
      %v2273 = vpop.f32.mrf.mxu0
      %v2274 = vadd.f32 %v1982, %v2273
      %v2275 = vpop.f32.mrf.mxu0
      %2276 = vmatprep.mubr.f32.mxu0 0.0
      %2277 = vmatmul.mubr.f32.gmra.mxu0 %v2079
      %v2278 = vpop.f32.mrf.mxu0
      %v2279 = vadd.f32 %v1987, %v2278
      %v2280 = vpop.f32.mrf.mxu0
      %2281 = vmatprep.mubr.f32.mxu0 0.0
      %2282 = vmatmul.mubr.f32.gmra.mxu0 %v2081
      %v2283 = vpop.f32.mrf.mxu0
      %v2284 = vadd.f32 %v1992, %v2283
      %v2285 = vpop.f32.mrf.mxu0
      %2286 = vmatprep.mubr.f32.mxu0 0.0
      %2287 = vmatmul.mubr.f32.gmra.mxu0 %v2083
      %v2288 = vpop.f32.mrf.mxu0
      %v2289 = vadd.f32 %v1997, %v2288
      %v2290 = vpop.f32.mrf.mxu0
      %2291 = vmatprep.mubr.f32.mxu0 0.0
      %2292 = vmatmul.mubr.f32.gmra.mxu0 %v2085
      %v2293 = vpop.f32.mrf.mxu0
      %v2294 = vadd.f32 %v2002, %v2293
      %v2295 = vpop.f32.mrf.mxu0
      %2296 = vmatprep.mubr.f32.mxu0 0.0
      %2297 = vmatmul.mubr.f32.gmra.mxu0 %v2087
      %v2298 = vpop.f32.mrf.mxu0
      %v2299 = vadd.f32 %v2007, %v2298
      %v2300 = vpop.f32.mrf.mxu0
      %2301 = vmatprep.mubr.f32.mxu0 0.0
      %2302 = vmatmul.mubr.f32.gmra.mxu0 %v2089
      %v2303 = vpop.f32.mrf.mxu0
      %v2304 = vadd.f32 %v2012, %v2303
      %v2305 = vpop.f32.mrf.mxu0
      %2306 = vmatprep.mubr.f32.mxu0 0.0
      %2307 = vmatmul.mubr.f32.gmra.mxu0 %v2091
      %v2308 = vpop.f32.mrf.mxu0
      %v2309 = vadd.f32 %v2017, %v2308
      %v2310 = vpop.f32.mrf.mxu0
      %2311 = vmatprep.mubr.f32.mxu0 0.0
      %2312 = vmatmul.mubr.f32.gmra.mxu0 %v2093
      %v2313 = vpop.f32.mrf.mxu0
      %v2314 = vadd.f32 %v2022, %v2313
      %v2315 = vpop.f32.mrf.mxu0
      %2316 = vmatprep.mubr.f32.mxu0 0.0
      %2317 = vmatmul.mubr.f32.gmra.mxu0 %v2095
      %v2318 = vpop.f32.mrf.mxu0
      %v2319 = vadd.f32 %v2027, %v2318
      %v2320 = vpop.f32.mrf.mxu0
      %2321 = vmatprep.mubr.f32.mxu0 0.0
      %2322 = vmatmul.mubr.f32.gmra.mxu0 %v2097
      %v2323 = vpop.f32.mrf.mxu0
      %v2324 = vadd.f32 %v2032, %v2323
      %v2325 = vpop.f32.mrf.mxu0
      %2326 = vdwg.mxu0
      %v2327 = vld [vmem:[%s7] sm:$0x1]
      %v2328 = vlaneseq
      %v2329 = vshrl.u32 %v2328, 7
      %v2330 = vsub.s32 0, %v2329
      %v2331 = vrot.slane %v2327, %v2330
      %v2332 = vadd.f32 %v2169, %v2331
      %v2333 = vadd.f32 %v2174, %v2331
      %v2334 = vadd.f32 %v2179, %v2331
      %v2335 = vadd.f32 %v2184, %v2331
      %v2336 = vadd.f32 %v2189, %v2331
      %v2337 = vadd.f32 %v2194, %v2331
      %v2338 = vadd.f32 %v2199, %v2331
      %v2339 = vadd.f32 %v2204, %v2331
      %v2340 = vadd.f32 %v2209, %v2331
      %v2341 = vadd.f32 %v2214, %v2331
      %v2342 = vadd.f32 %v2219, %v2331
      %v2343 = vadd.f32 %v2224, %v2331
      %v2344 = vadd.f32 %v2229, %v2331
      %v2345 = vadd.f32 %v2234, %v2331
      %v2346 = vadd.f32 %v2239, %v2331
      %v2347 = vadd.f32 %v2244, %v2331
      %v2348 = vadd.f32 %v2249, %v2331
      %v2349 = vadd.f32 %v2254, %v2331
      %v2350 = vadd.f32 %v2259, %v2331
      %v2351 = vadd.f32 %v2264, %v2331
      %v2352 = vadd.f32 %v2269, %v2331
      %v2353 = vadd.f32 %v2274, %v2331
      %v2354 = vadd.f32 %v2279, %v2331
      %v2355 = vadd.f32 %v2284, %v2331
      %v2356 = vadd.f32 %v2289, %v2331
      %v2357 = vadd.f32 %v2294, %v2331
      %v2358 = vadd.f32 %v2299, %v2331
      %v2359 = vadd.f32 %v2304, %v2331
      %v2360 = vadd.f32 %v2309, %v2331
      %v2361 = vadd.f32 %v2314, %v2331
      %v2362 = vadd.f32 %v2319, %v2331
      %v2363 = vadd.f32 %v2324, %v2331
      %v2364 = vmax.f32 %v2332, 0.0
      %v2365 = vmax.f32 %v2333, 0.0
      %v2366 = vmax.f32 %v2334, 0.0
      %v2367 = vmax.f32 %v2335, 0.0
      %v2368 = vmax.f32 %v2336, 0.0
      %v2369 = vmax.f32 %v2337, 0.0
      %v2370 = vmax.f32 %v2338, 0.0
      %v2371 = vmax.f32 %v2339, 0.0
      %v2372 = vmax.f32 %v2340, 0.0
      %v2373 = vmax.f32 %v2341, 0.0
      %v2374 = vmax.f32 %v2342, 0.0
      %v2375 = vmax.f32 %v2343, 0.0
      %v2376 = vmax.f32 %v2344, 0.0
      %v2377 = vmax.f32 %v2345, 0.0
      %v2378 = vmax.f32 %v2346, 0.0
      %v2379 = vmax.f32 %v2347, 0.0
      %v2380 = vmax.f32 %v2348, 0.0
      %v2381 = vmax.f32 %v2349, 0.0
      %v2382 = vmax.f32 %v2350, 0.0
      %v2383 = vmax.f32 %v2351, 0.0
      %v2384 = vmax.f32 %v2352, 0.0
      %v2385 = vmax.f32 %v2353, 0.0
      %v2386 = vmax.f32 %v2354, 0.0
      %v2387 = vmax.f32 %v2355, 0.0
      %v2388 = vmax.f32 %v2356, 0.0
      %v2389 = vmax.f32 %v2357, 0.0
      %v2390 = vmax.f32 %v2358, 0.0
      %v2391 = vmax.f32 %v2359, 0.0
      %v2392 = vmax.f32 %v2360, 0.0
      %v2393 = vmax.f32 %v2361, 0.0
      %v2394 = vmax.f32 %v2362, 0.0
      %v2395 = vmax.f32 %v2363, 0.0
      %2428 = vrot.lane.b32.xlu0 %v2364, 126
      %v2429 = vpop.permute.xlu0 %2428
      %2430 = vrot.lane.b32.xlu0 %v2365, 126
      %v2431 = vpop.permute.xlu0 %2430
      %2432 = vrot.lane.b32.xlu0 %v2366, 126
      %v2433 = vpop.permute.xlu0 %2432
      %2434 = vrot.lane.b32.xlu0 %v2367, 126
      %v2435 = vpop.permute.xlu0 %2434
      %2436 = vrot.lane.b32.xlu0 %v2368, 126
      %v2437 = vpop.permute.xlu0 %2436
      %2438 = vrot.lane.b32.xlu0 %v2369, 126
      %v2439 = vpop.permute.xlu0 %2438
      %2440 = vrot.lane.b32.xlu0 %v2370, 126
      %v2441 = vpop.permute.xlu0 %2440
      %2442 = vrot.lane.b32.xlu0 %v2371, 126
      %v2443 = vpop.permute.xlu0 %2442
      %2444 = vrot.lane.b32.xlu0 %v2372, 126
      %v2445 = vpop.permute.xlu0 %2444
      %2446 = vrot.lane.b32.xlu0 %v2373, 126
      %v2447 = vpop.permute.xlu0 %2446
      %2448 = vrot.lane.b32.xlu0 %v2374, 126
      %v2449 = vpop.permute.xlu0 %2448
      %2450 = vrot.lane.b32.xlu0 %v2375, 126
      %v2451 = vpop.permute.xlu0 %2450
      %2452 = vrot.lane.b32.xlu0 %v2376, 126
      %v2453 = vpop.permute.xlu0 %2452
      %2454 = vrot.lane.b32.xlu0 %v2377, 126
      %v2455 = vpop.permute.xlu0 %2454
      %2456 = vrot.lane.b32.xlu0 %v2378, 126
      %v2457 = vpop.permute.xlu0 %2456
      %2458 = vrot.lane.b32.xlu0 %v2379, 126
      %v2459 = vpop.permute.xlu0 %2458
      %2460 = vrot.lane.b32.xlu0 %v2380, 126
      %v2461 = vpop.permute.xlu0 %2460
      %2462 = vrot.lane.b32.xlu0 %v2381, 126
      %v2463 = vpop.permute.xlu0 %2462
      %2464 = vrot.lane.b32.xlu0 %v2382, 126
      %v2465 = vpop.permute.xlu0 %2464
      %2466 = vrot.lane.b32.xlu0 %v2383, 126
      %v2467 = vpop.permute.xlu0 %2466
      %2468 = vrot.lane.b32.xlu0 %v2384, 126
      %v2469 = vpop.permute.xlu0 %2468
      %2470 = vrot.lane.b32.xlu0 %v2385, 126
      %v2471 = vpop.permute.xlu0 %2470
      %2472 = vrot.lane.b32.xlu0 %v2386, 126
      %v2473 = vpop.permute.xlu0 %2472
      %2474 = vrot.lane.b32.xlu0 %v2387, 126
      %v2475 = vpop.permute.xlu0 %2474
      %2476 = vrot.lane.b32.xlu0 %v2388, 126
      %v2477 = vpop.permute.xlu0 %2476
      %2478 = vrot.lane.b32.xlu0 %v2389, 126
      %v2479 = vpop.permute.xlu0 %2478
      %2480 = vrot.lane.b32.xlu0 %v2390, 126
      %v2481 = vpop.permute.xlu0 %2480
      %2482 = vrot.lane.b32.xlu0 %v2391, 126
      %v2483 = vpop.permute.xlu0 %2482
      %2484 = vrot.lane.b32.xlu0 %v2392, 126
      %v2485 = vpop.permute.xlu0 %2484
      %2486 = vrot.lane.b32.xlu0 %v2393, 126
      %v2487 = vpop.permute.xlu0 %2486
      %2488 = vrot.lane.b32.xlu0 %v2394, 126
      %v2489 = vpop.permute.xlu0 %2488
      %2490 = vrot.lane.b32.xlu0 %v2395, 126
      %v2491 = vpop.permute.xlu0 %2490
      %2524 = vst.msk [vmem:[%s522 + $0x1] sm:$0xff] %vm306, %v2429
      %2525 = vst.msk [vmem:[%s522 + $0x9] sm:$0xff] %vm306, %v2431
      %2526 = vst.msk [vmem:[%s522 + $0x19] sm:$0xff] %vm306, %v2433
      %2527 = vst.msk [vmem:[%s522 + $0x21] sm:$0xff] %vm306, %v2435
      %2528 = vst.msk [vmem:[%s522 + $0x31] sm:$0xff] %vm306, %v2437
      %2529 = vst.msk [vmem:[%s522 + $0x39] sm:$0xff] %vm306, %v2439
      %2530 = vst.msk [vmem:[%s522 + $0x49] sm:$0xff] %vm306, %v2441
      %2531 = vst.msk [vmem:[%s522 + $0x51] sm:$0xff] %vm306, %v2443
      %2532 = vst.msk [vmem:[%s522 + $0x61] sm:$0xff] %vm306, %v2445
      %2533 = vst.msk [vmem:[%s522 + $0x69] sm:$0xff] %vm306, %v2447
      %2534 = vst.msk [vmem:[%s522 + $0x79] sm:$0xff] %vm306, %v2449
      %2535 = vst.msk [vmem:[%s522 + $0x81] sm:$0xff] %vm306, %v2451
      %2536 = vst.msk [vmem:[%s522 + $0x91] sm:$0xff] %vm306, %v2453
      %2537 = vst.msk [vmem:[%s522 + $0x99] sm:$0xff] %vm306, %v2455
      %2538 = vst.msk [vmem:[%s522 + $0xa9] sm:$0xff] %vm306, %v2457
      %2539 = vst.msk [vmem:[%s522 + $0xb1] sm:$0xff] %vm306, %v2459
      %2540 = vst.msk [vmem:[%s522 + $0xc1] sm:$0xff] %vm306, %v2461
      %2541 = vst.msk [vmem:[%s522 + $0xc9] sm:$0xff] %vm306, %v2463
      %2542 = vst.msk [vmem:[%s522 + $0xd9] sm:$0xff] %vm306, %v2465
      %2543 = vst.msk [vmem:[%s522 + $0xe1] sm:$0xff] %vm306, %v2467
      %2544 = vst.msk [vmem:[%s522 + $0xf1] sm:$0xff] %vm306, %v2469
      %2545 = vst.msk [vmem:[%s522 + $0xf9] sm:$0xff] %vm306, %v2471
      %2546 = vst.msk [vmem:[%s522 + $0x109] sm:$0xff] %vm306, %v2473
      %2547 = vst.msk [vmem:[%s522 + $0x111] sm:$0xff] %vm306, %v2475
      %2548 = vst.msk [vmem:[%s522 + $0x121] sm:$0xff] %vm306, %v2477
      %2549 = vst.msk [vmem:[%s522 + $0x129] sm:$0xff] %vm306, %v2479
      %2550 = vst.msk [vmem:[%s522 + $0x139] sm:$0xff] %vm306, %v2481
      %2551 = vst.msk [vmem:[%s522 + $0x141] sm:$0xff] %vm306, %v2483
      %2552 = vst.msk [vmem:[%s522 + $0x151] sm:$0xff] %vm306, %v2485
      %2553 = vst.msk [vmem:[%s522 + $0x159] sm:$0xff] %vm306, %v2487
      %2554 = vst.msk [vmem:[%s522 + $0x169] sm:$0xff] %vm306, %v2489
      %2555 = vst.msk [vmem:[%s522 + $0x171] sm:$0xff] %vm306, %v2491
      %s2556 = scalar_lea.vmem %s1, 16
      %v2557 = vld [vmem:[%s2556] sm:$0xff]
      %v2558 = vld [vmem:[%s2556 + $0x8] sm:$0x1]
      %v2559 = vld [vmem:[#allocation2] sm:$0xff]
      %v2560 = vld [vmem:[#allocation2 + $0x8] sm:$0xff]
      %v2561 = vld [vmem:[#allocation2 + $0x18] sm:$0xff]
      %v2562 = vld [vmem:[#allocation2 + $0x20] sm:$0xff]
      %v2563 = vld [vmem:[#allocation2 + $0x30] sm:$0xff]
      %v2564 = vld [vmem:[#allocation2 + $0x38] sm:$0xff]
      %v2565 = vld [vmem:[#allocation2 + $0x48] sm:$0xff]
      %v2566 = vld [vmem:[#allocation2 + $0x50] sm:$0xff]
      %v2567 = vld [vmem:[#allocation2 + $0x60] sm:$0xff]
      %v2568 = vld [vmem:[#allocation2 + $0x68] sm:$0xff]
      %v2569 = vld [vmem:[#allocation2 + $0x78] sm:$0xff]
      %v2570 = vld [vmem:[#allocation2 + $0x80] sm:$0xff]
      %v2571 = vld [vmem:[#allocation2 + $0x90] sm:$0xff]
      %v2572 = vld [vmem:[#allocation2 + $0x98] sm:$0xff]
      %v2573 = vld [vmem:[#allocation2 + $0xa8] sm:$0xff]
      %v2574 = vld [vmem:[#allocation2 + $0xb0] sm:$0xff]
      %v2575 = vld [vmem:[#allocation2 + $0xc0] sm:$0xff]
      %v2576 = vld [vmem:[#allocation2 + $0xc8] sm:$0xff]
      %v2577 = vld [vmem:[#allocation2 + $0xd8] sm:$0xff]
      %v2578 = vld [vmem:[#allocation2 + $0xe0] sm:$0xff]
      %v2579 = vld [vmem:[#allocation2 + $0xf0] sm:$0xff]
      %v2580 = vld [vmem:[#allocation2 + $0xf8] sm:$0xff]
      %v2581 = vld [vmem:[#allocation2 + $0x108] sm:$0xff]
      %v2582 = vld [vmem:[#allocation2 + $0x110] sm:$0xff]
      %v2583 = vld [vmem:[#allocation2 + $0x120] sm:$0xff]
      %v2584 = vld [vmem:[#allocation2 + $0x128] sm:$0xff]
      %v2585 = vld [vmem:[#allocation2 + $0x138] sm:$0xff]
      %v2586 = vld [vmem:[#allocation2 + $0x140] sm:$0xff]
      %v2587 = vld [vmem:[#allocation2 + $0x150] sm:$0xff]
      %v2588 = vld [vmem:[#allocation2 + $0x158] sm:$0xff]
      %v2589 = vld [vmem:[#allocation2 + $0x168] sm:$0xff]
      %v2590 = vld [vmem:[#allocation2 + $0x170] sm:$0xff]
      %v2591 = vld [vmem:[#allocation2 + $0x180] sm:$0xff]
      %v2592 = vld [vmem:[#allocation2 + $0x188] sm:$0xff]
      %v2593 = vld [vmem:[#allocation2 + $0x198] sm:$0xff]
      %v2594 = vld [vmem:[#allocation2 + $0x1a0] sm:$0xff]
      %v2595 = vlaneseq
      %v2596 = vshrl.u32 %v2595, 7
      %v2597 = vsub.s32 0, %v2596
      %v2598 = vrot.slane %v2557, %v2597
      %v2599 = vmul.f32 %v2559, %v2598
      %v2600 = vmul.f32 %v2560, %v2598
      %v2601 = vmul.f32 %v2561, %v2598
      %v2602 = vmul.f32 %v2562, %v2598
      %v2603 = vmul.f32 %v2563, %v2598
      %v2604 = vmul.f32 %v2564, %v2598
      %v2605 = vmul.f32 %v2565, %v2598
      %v2606 = vmul.f32 %v2566, %v2598
      %v2607 = vmul.f32 %v2567, %v2598
      %v2608 = vmul.f32 %v2568, %v2598
      %v2609 = vmul.f32 %v2569, %v2598
      %v2610 = vmul.f32 %v2570, %v2598
      %v2611 = vmul.f32 %v2571, %v2598
      %v2612 = vmul.f32 %v2572, %v2598
      %v2613 = vmul.f32 %v2573, %v2598
      %v2614 = vmul.f32 %v2574, %v2598
      %v2615 = vmul.f32 %v2575, %v2598
      %v2616 = vmul.f32 %v2576, %v2598
      %v2617 = vmul.f32 %v2577, %v2598
      %v2618 = vmul.f32 %v2578, %v2598
      %v2619 = vmul.f32 %v2579, %v2598
      %v2620 = vmul.f32 %v2580, %v2598
      %v2621 = vmul.f32 %v2581, %v2598
      %v2622 = vmul.f32 %v2582, %v2598
      %v2623 = vmul.f32 %v2583, %v2598
      %v2624 = vmul.f32 %v2584, %v2598
      %v2625 = vmul.f32 %v2585, %v2598
      %v2626 = vmul.f32 %v2586, %v2598
      %v2627 = vmul.f32 %v2587, %v2598
      %v2628 = vmul.f32 %v2588, %v2598
      %v2629 = vmul.f32 %v2589, %v2598
      %v2630 = vmul.f32 %v2590, %v2598
      %v2631 = vadd.f32 %v2599, 0.0
      %v2632 = vadd.f32 %v2600, 0.0
      %v2633 = vadd.f32 %v2601, 0.0
      %v2634 = vadd.f32 %v2602, 0.0
      %v2635 = vadd.f32 %v2603, 0.0
      %v2636 = vadd.f32 %v2604, 0.0
      %v2637 = vadd.f32 %v2605, 0.0
      %v2638 = vadd.f32 %v2606, 0.0
      %v2639 = vadd.f32 %v2607, 0.0
      %v2640 = vadd.f32 %v2608, 0.0
      %v2641 = vadd.f32 %v2609, 0.0
      %v2642 = vadd.f32 %v2610, 0.0
      %v2643 = vadd.f32 %v2611, 0.0
      %v2644 = vadd.f32 %v2612, 0.0
      %v2645 = vadd.f32 %v2613, 0.0
      %v2646 = vadd.f32 %v2614, 0.0
      %v2647 = vadd.f32 %v2615, 0.0
      %v2648 = vadd.f32 %v2616, 0.0
      %v2649 = vadd.f32 %v2617, 0.0
      %v2650 = vadd.f32 %v2618, 0.0
      %v2651 = vadd.f32 %v2619, 0.0
      %v2652 = vadd.f32 %v2620, 0.0
      %v2653 = vadd.f32 %v2621, 0.0
      %v2654 = vadd.f32 %v2622, 0.0
      %v2655 = vadd.f32 %v2623, 0.0
      %v2656 = vadd.f32 %v2624, 0.0
      %v2657 = vadd.f32 %v2625, 0.0
      %v2658 = vadd.f32 %v2626, 0.0
      %v2659 = vadd.f32 %v2627, 0.0
      %v2660 = vadd.f32 %v2628, 0.0
      %v2661 = vadd.f32 %v2629, 0.0
      %v2662 = vadd.f32 %v2630, 0.0
      %v2663 = vlaneseq
      %v2664 = vshrl.u32 %v2663, 7
      %v2665 = vsub.s32 3, %v2664
      %v2666 = vrot.slane %v2557, %v2665
      %v2667 = vmul.f32 %v2561, %v2666
      %v2668 = vmul.f32 %v2562, %v2666
      %v2669 = vmul.f32 %v2563, %v2666
      %v2670 = vmul.f32 %v2564, %v2666
      %v2671 = vmul.f32 %v2565, %v2666
      %v2672 = vmul.f32 %v2566, %v2666
      %v2673 = vmul.f32 %v2567, %v2666
      %v2674 = vmul.f32 %v2568, %v2666
      %v2675 = vmul.f32 %v2569, %v2666
      %v2676 = vmul.f32 %v2570, %v2666
      %v2677 = vmul.f32 %v2571, %v2666
      %v2678 = vmul.f32 %v2572, %v2666
      %v2679 = vmul.f32 %v2573, %v2666
      %v2680 = vmul.f32 %v2574, %v2666
      %v2681 = vmul.f32 %v2575, %v2666
      %v2682 = vmul.f32 %v2576, %v2666
      %v2683 = vmul.f32 %v2577, %v2666
      %v2684 = vmul.f32 %v2578, %v2666
      %v2685 = vmul.f32 %v2579, %v2666
      %v2686 = vmul.f32 %v2580, %v2666
      %v2687 = vmul.f32 %v2581, %v2666
      %v2688 = vmul.f32 %v2582, %v2666
      %v2689 = vmul.f32 %v2583, %v2666
      %v2690 = vmul.f32 %v2584, %v2666
      %v2691 = vmul.f32 %v2585, %v2666
      %v2692 = vmul.f32 %v2586, %v2666
      %v2693 = vmul.f32 %v2587, %v2666
      %v2694 = vmul.f32 %v2588, %v2666
      %v2695 = vmul.f32 %v2589, %v2666
      %v2696 = vmul.f32 %v2590, %v2666
      %v2697 = vmul.f32 %v2591, %v2666
      %v2698 = vmul.f32 %v2592, %v2666
      %v2699 = vadd.f32 %v2631, %v2667
      %v2700 = vadd.f32 %v2632, %v2668
      %v2701 = vadd.f32 %v2633, %v2669
      %v2702 = vadd.f32 %v2634, %v2670
      %v2703 = vadd.f32 %v2635, %v2671
      %v2704 = vadd.f32 %v2636, %v2672
      %v2705 = vadd.f32 %v2637, %v2673
      %v2706 = vadd.f32 %v2638, %v2674
      %v2707 = vadd.f32 %v2639, %v2675
      %v2708 = vadd.f32 %v2640, %v2676
      %v2709 = vadd.f32 %v2641, %v2677
      %v2710 = vadd.f32 %v2642, %v2678
      %v2711 = vadd.f32 %v2643, %v2679
      %v2712 = vadd.f32 %v2644, %v2680
      %v2713 = vadd.f32 %v2645, %v2681
      %v2714 = vadd.f32 %v2646, %v2682
      %v2715 = vadd.f32 %v2647, %v2683
      %v2716 = vadd.f32 %v2648, %v2684
      %v2717 = vadd.f32 %v2649, %v2685
      %v2718 = vadd.f32 %v2650, %v2686
      %v2719 = vadd.f32 %v2651, %v2687
      %v2720 = vadd.f32 %v2652, %v2688
      %v2721 = vadd.f32 %v2653, %v2689
      %v2722 = vadd.f32 %v2654, %v2690
      %v2723 = vadd.f32 %v2655, %v2691
      %v2724 = vadd.f32 %v2656, %v2692
      %v2725 = vadd.f32 %v2657, %v2693
      %v2726 = vadd.f32 %v2658, %v2694
      %v2727 = vadd.f32 %v2659, %v2695
      %v2728 = vadd.f32 %v2660, %v2696
      %v2729 = vadd.f32 %v2661, %v2697
      %v2730 = vadd.f32 %v2662, %v2698
      %v2731 = vlaneseq
      %v2732 = vshrl.u32 %v2731, 7
      %v2733 = vsub.s32 6, %v2732
      %v2734 = vrot.slane %v2557, %v2733
      %v2735 = vmul.f32 %v2563, %v2734
      %v2736 = vmul.f32 %v2564, %v2734
      %v2737 = vmul.f32 %v2565, %v2734
      %v2738 = vmul.f32 %v2566, %v2734
      %v2739 = vmul.f32 %v2567, %v2734
      %v2740 = vmul.f32 %v2568, %v2734
      %v2741 = vmul.f32 %v2569, %v2734
      %v2742 = vmul.f32 %v2570, %v2734
      %v2743 = vmul.f32 %v2571, %v2734
      %v2744 = vmul.f32 %v2572, %v2734
      %v2745 = vmul.f32 %v2573, %v2734
      %v2746 = vmul.f32 %v2574, %v2734
      %v2747 = vmul.f32 %v2575, %v2734
      %v2748 = vmul.f32 %v2576, %v2734
      %v2749 = vmul.f32 %v2577, %v2734
      %v2750 = vmul.f32 %v2578, %v2734
      %v2751 = vmul.f32 %v2579, %v2734
      %v2752 = vmul.f32 %v2580, %v2734
      %v2753 = vmul.f32 %v2581, %v2734
      %v2754 = vmul.f32 %v2582, %v2734
      %v2755 = vmul.f32 %v2583, %v2734
      %v2756 = vmul.f32 %v2584, %v2734
      %v2757 = vmul.f32 %v2585, %v2734
      %v2758 = vmul.f32 %v2586, %v2734
      %v2759 = vmul.f32 %v2587, %v2734
      %v2760 = vmul.f32 %v2588, %v2734
      %v2761 = vmul.f32 %v2589, %v2734
      %v2762 = vmul.f32 %v2590, %v2734
      %v2763 = vmul.f32 %v2591, %v2734
      %v2764 = vmul.f32 %v2592, %v2734
      %v2765 = vmul.f32 %v2593, %v2734
      %v2766 = vmul.f32 %v2594, %v2734
      %v2767 = vadd.f32 %v2699, %v2735
      %v2768 = vadd.f32 %v2700, %v2736
      %v2769 = vadd.f32 %v2701, %v2737
      %v2770 = vadd.f32 %v2702, %v2738
      %v2771 = vadd.f32 %v2703, %v2739
      %v2772 = vadd.f32 %v2704, %v2740
      %v2773 = vadd.f32 %v2705, %v2741
      %v2774 = vadd.f32 %v2706, %v2742
      %v2775 = vadd.f32 %v2707, %v2743
      %v2776 = vadd.f32 %v2708, %v2744
      %v2777 = vadd.f32 %v2709, %v2745
      %v2778 = vadd.f32 %v2710, %v2746
      %v2779 = vadd.f32 %v2711, %v2747
      %v2780 = vadd.f32 %v2712, %v2748
      %v2781 = vadd.f32 %v2713, %v2749
      %v2782 = vadd.f32 %v2714, %v2750
      %v2783 = vadd.f32 %v2715, %v2751
      %v2784 = vadd.f32 %v2716, %v2752
      %v2785 = vadd.f32 %v2717, %v2753
      %v2786 = vadd.f32 %v2718, %v2754
      %v2787 = vadd.f32 %v2719, %v2755
      %v2788 = vadd.f32 %v2720, %v2756
      %v2789 = vadd.f32 %v2721, %v2757
      %v2790 = vadd.f32 %v2722, %v2758
      %v2791 = vadd.f32 %v2723, %v2759
      %v2792 = vadd.f32 %v2724, %v2760
      %v2793 = vadd.f32 %v2725, %v2761
      %v2794 = vadd.f32 %v2726, %v2762
      %v2795 = vadd.f32 %v2727, %v2763
      %v2796 = vadd.f32 %v2728, %v2764
      %v2797 = vadd.f32 %v2729, %v2765
      %v2798 = vadd.f32 %v2730, %v2766
      %v2799 = vld [vmem:[#allocation2 + $0x1] sm:$0xff]
      %v2800 = vld [vmem:[#allocation2 + $0x9] sm:$0xff]
      %v2801 = vld [vmem:[#allocation2 + $0x19] sm:$0xff]
      %v2802 = vld [vmem:[#allocation2 + $0x21] sm:$0xff]
      %v2803 = vld [vmem:[#allocation2 + $0x31] sm:$0xff]
      %v2804 = vld [vmem:[#allocation2 + $0x39] sm:$0xff]
      %v2805 = vld [vmem:[#allocation2 + $0x49] sm:$0xff]
      %v2806 = vld [vmem:[#allocation2 + $0x51] sm:$0xff]
      %v2807 = vld [vmem:[#allocation2 + $0x61] sm:$0xff]
      %v2808 = vld [vmem:[#allocation2 + $0x69] sm:$0xff]
      %v2809 = vld [vmem:[#allocation2 + $0x79] sm:$0xff]
      %v2810 = vld [vmem:[#allocation2 + $0x81] sm:$0xff]
      %v2811 = vld [vmem:[#allocation2 + $0x91] sm:$0xff]
      %v2812 = vld [vmem:[#allocation2 + $0x99] sm:$0xff]
      %v2813 = vld [vmem:[#allocation2 + $0xa9] sm:$0xff]
      %v2814 = vld [vmem:[#allocation2 + $0xb1] sm:$0xff]
      %v2815 = vld [vmem:[#allocation2 + $0xc1] sm:$0xff]
      %v2816 = vld [vmem:[#allocation2 + $0xc9] sm:$0xff]
      %v2817 = vld [vmem:[#allocation2 + $0xd9] sm:$0xff]
      %v2818 = vld [vmem:[#allocation2 + $0xe1] sm:$0xff]
      %v2819 = vld [vmem:[#allocation2 + $0xf1] sm:$0xff]
      %v2820 = vld [vmem:[#allocation2 + $0xf9] sm:$0xff]
      %v2821 = vld [vmem:[#allocation2 + $0x109] sm:$0xff]
      %v2822 = vld [vmem:[#allocation2 + $0x111] sm:$0xff]
      %v2823 = vld [vmem:[#allocation2 + $0x121] sm:$0xff]
      %v2824 = vld [vmem:[#allocation2 + $0x129] sm:$0xff]
      %v2825 = vld [vmem:[#allocation2 + $0x139] sm:$0xff]
      %v2826 = vld [vmem:[#allocation2 + $0x141] sm:$0xff]
      %v2827 = vld [vmem:[#allocation2 + $0x151] sm:$0xff]
      %v2828 = vld [vmem:[#allocation2 + $0x159] sm:$0xff]
      %v2829 = vld [vmem:[#allocation2 + $0x169] sm:$0xff]
      %v2830 = vld [vmem:[#allocation2 + $0x171] sm:$0xff]
      %v2831 = vld [vmem:[#allocation2 + $0x181] sm:$0xff]
      %v2832 = vld [vmem:[#allocation2 + $0x189] sm:$0xff]
      %v2833 = vld [vmem:[#allocation2 + $0x199] sm:$0xff]
      %v2834 = vld [vmem:[#allocation2 + $0x1a1] sm:$0xff]
      %v2835 = vlaneseq
      %v2836 = vshrl.u32 %v2835, 7
      %v2837 = vsub.s32 1, %v2836
      %v2838 = vrot.slane %v2557, %v2837
      %v2839 = vmul.f32 %v2799, %v2838
      %v2840 = vmul.f32 %v2800, %v2838
      %v2841 = vmul.f32 %v2801, %v2838
      %v2842 = vmul.f32 %v2802, %v2838
      %v2843 = vmul.f32 %v2803, %v2838
      %v2844 = vmul.f32 %v2804, %v2838
      %v2845 = vmul.f32 %v2805, %v2838
      %v2846 = vmul.f32 %v2806, %v2838
      %v2847 = vmul.f32 %v2807, %v2838
      %v2848 = vmul.f32 %v2808, %v2838
      %v2849 = vmul.f32 %v2809, %v2838
      %v2850 = vmul.f32 %v2810, %v2838
      %v2851 = vmul.f32 %v2811, %v2838
      %v2852 = vmul.f32 %v2812, %v2838
      %v2853 = vmul.f32 %v2813, %v2838
      %v2854 = vmul.f32 %v2814, %v2838
      %v2855 = vmul.f32 %v2815, %v2838
      %v2856 = vmul.f32 %v2816, %v2838
      %v2857 = vmul.f32 %v2817, %v2838
      %v2858 = vmul.f32 %v2818, %v2838
      %v2859 = vmul.f32 %v2819, %v2838
      %v2860 = vmul.f32 %v2820, %v2838
      %v2861 = vmul.f32 %v2821, %v2838
      %v2862 = vmul.f32 %v2822, %v2838
      %v2863 = vmul.f32 %v2823, %v2838
      %v2864 = vmul.f32 %v2824, %v2838
      %v2865 = vmul.f32 %v2825, %v2838
      %v2866 = vmul.f32 %v2826, %v2838
      %v2867 = vmul.f32 %v2827, %v2838
      %v2868 = vmul.f32 %v2828, %v2838
      %v2869 = vmul.f32 %v2829, %v2838
      %v2870 = vmul.f32 %v2830, %v2838
      %v2871 = vadd.f32 %v2767, %v2839
      %v2872 = vadd.f32 %v2768, %v2840
      %v2873 = vadd.f32 %v2769, %v2841
      %v2874 = vadd.f32 %v2770, %v2842
      %v2875 = vadd.f32 %v2771, %v2843
      %v2876 = vadd.f32 %v2772, %v2844
      %v2877 = vadd.f32 %v2773, %v2845
      %v2878 = vadd.f32 %v2774, %v2846
      %v2879 = vadd.f32 %v2775, %v2847
      %v2880 = vadd.f32 %v2776, %v2848
      %v2881 = vadd.f32 %v2777, %v2849
      %v2882 = vadd.f32 %v2778, %v2850
      %v2883 = vadd.f32 %v2779, %v2851
      %v2884 = vadd.f32 %v2780, %v2852
      %v2885 = vadd.f32 %v2781, %v2853
      %v2886 = vadd.f32 %v2782, %v2854
      %v2887 = vadd.f32 %v2783, %v2855
      %v2888 = vadd.f32 %v2784, %v2856
      %v2889 = vadd.f32 %v2785, %v2857
      %v2890 = vadd.f32 %v2786, %v2858
      %v2891 = vadd.f32 %v2787, %v2859
      %v2892 = vadd.f32 %v2788, %v2860
      %v2893 = vadd.f32 %v2789, %v2861
      %v2894 = vadd.f32 %v2790, %v2862
      %v2895 = vadd.f32 %v2791, %v2863
      %v2896 = vadd.f32 %v2792, %v2864
      %v2897 = vadd.f32 %v2793, %v2865
      %v2898 = vadd.f32 %v2794, %v2866
      %v2899 = vadd.f32 %v2795, %v2867
      %v2900 = vadd.f32 %v2796, %v2868
      %v2901 = vadd.f32 %v2797, %v2869
      %v2902 = vadd.f32 %v2798, %v2870
      %v2903 = vlaneseq
      %v2904 = vshrl.u32 %v2903, 7
      %v2905 = vsub.s32 4, %v2904
      %v2906 = vrot.slane %v2557, %v2905
      %v2907 = vmul.f32 %v2801, %v2906
      %v2908 = vmul.f32 %v2802, %v2906
      %v2909 = vmul.f32 %v2803, %v2906
      %v2910 = vmul.f32 %v2804, %v2906
      %v2911 = vmul.f32 %v2805, %v2906
      %v2912 = vmul.f32 %v2806, %v2906
      %v2913 = vmul.f32 %v2807, %v2906
      %v2914 = vmul.f32 %v2808, %v2906
      %v2915 = vmul.f32 %v2809, %v2906
      %v2916 = vmul.f32 %v2810, %v2906
      %v2917 = vmul.f32 %v2811, %v2906
      %v2918 = vmul.f32 %v2812, %v2906
      %v2919 = vmul.f32 %v2813, %v2906
      %v2920 = vmul.f32 %v2814, %v2906
      %v2921 = vmul.f32 %v2815, %v2906
      %v2922 = vmul.f32 %v2816, %v2906
      %v2923 = vmul.f32 %v2817, %v2906
      %v2924 = vmul.f32 %v2818, %v2906
      %v2925 = vmul.f32 %v2819, %v2906
      %v2926 = vmul.f32 %v2820, %v2906
      %v2927 = vmul.f32 %v2821, %v2906
      %v2928 = vmul.f32 %v2822, %v2906
      %v2929 = vmul.f32 %v2823, %v2906
      %v2930 = vmul.f32 %v2824, %v2906
      %v2931 = vmul.f32 %v2825, %v2906
      %v2932 = vmul.f32 %v2826, %v2906
      %v2933 = vmul.f32 %v2827, %v2906
      %v2934 = vmul.f32 %v2828, %v2906
      %v2935 = vmul.f32 %v2829, %v2906
      %v2936 = vmul.f32 %v2830, %v2906
      %v2937 = vmul.f32 %v2831, %v2906
      %v2938 = vmul.f32 %v2832, %v2906
      %v2939 = vadd.f32 %v2871, %v2907
      %v2940 = vadd.f32 %v2872, %v2908
      %v2941 = vadd.f32 %v2873, %v2909
      %v2942 = vadd.f32 %v2874, %v2910
      %v2943 = vadd.f32 %v2875, %v2911
      %v2944 = vadd.f32 %v2876, %v2912
      %v2945 = vadd.f32 %v2877, %v2913
      %v2946 = vadd.f32 %v2878, %v2914
      %v2947 = vadd.f32 %v2879, %v2915
      %v2948 = vadd.f32 %v2880, %v2916
      %v2949 = vadd.f32 %v2881, %v2917
      %v2950 = vadd.f32 %v2882, %v2918
      %v2951 = vadd.f32 %v2883, %v2919
      %v2952 = vadd.f32 %v2884, %v2920
      %v2953 = vadd.f32 %v2885, %v2921
      %v2954 = vadd.f32 %v2886, %v2922
      %v2955 = vadd.f32 %v2887, %v2923
      %v2956 = vadd.f32 %v2888, %v2924
      %v2957 = vadd.f32 %v2889, %v2925
      %v2958 = vadd.f32 %v2890, %v2926
      %v2959 = vadd.f32 %v2891, %v2927
      %v2960 = vadd.f32 %v2892, %v2928
      %v2961 = vadd.f32 %v2893, %v2929
      %v2962 = vadd.f32 %v2894, %v2930
      %v2963 = vadd.f32 %v2895, %v2931
      %v2964 = vadd.f32 %v2896, %v2932
      %v2965 = vadd.f32 %v2897, %v2933
      %v2966 = vadd.f32 %v2898, %v2934
      %v2967 = vadd.f32 %v2899, %v2935
      %v2968 = vadd.f32 %v2900, %v2936
      %v2969 = vadd.f32 %v2901, %v2937
      %v2970 = vadd.f32 %v2902, %v2938
      %v2971 = vlaneseq
      %v2972 = vshrl.u32 %v2971, 7
      %v2973 = vsub.s32 7, %v2972
      %v2974 = vrot.slane %v2557, %v2973
      %v2975 = vmul.f32 %v2803, %v2974
      %v2976 = vmul.f32 %v2804, %v2974
      %v2977 = vmul.f32 %v2805, %v2974
      %v2978 = vmul.f32 %v2806, %v2974
      %v2979 = vmul.f32 %v2807, %v2974
      %v2980 = vmul.f32 %v2808, %v2974
      %v2981 = vmul.f32 %v2809, %v2974
      %v2982 = vmul.f32 %v2810, %v2974
      %v2983 = vmul.f32 %v2811, %v2974
      %v2984 = vmul.f32 %v2812, %v2974
      %v2985 = vmul.f32 %v2813, %v2974
      %v2986 = vmul.f32 %v2814, %v2974
      %v2987 = vmul.f32 %v2815, %v2974
      %v2988 = vmul.f32 %v2816, %v2974
      %v2989 = vmul.f32 %v2817, %v2974
      %v2990 = vmul.f32 %v2818, %v2974
      %v2991 = vmul.f32 %v2819, %v2974
      %v2992 = vmul.f32 %v2820, %v2974
      %v2993 = vmul.f32 %v2821, %v2974
      %v2994 = vmul.f32 %v2822, %v2974
      %v2995 = vmul.f32 %v2823, %v2974
      %v2996 = vmul.f32 %v2824, %v2974
      %v2997 = vmul.f32 %v2825, %v2974
      %v2998 = vmul.f32 %v2826, %v2974
      %v2999 = vmul.f32 %v2827, %v2974
      %v3000 = vmul.f32 %v2828, %v2974
      %v3001 = vmul.f32 %v2829, %v2974
      %v3002 = vmul.f32 %v2830, %v2974
      %v3003 = vmul.f32 %v2831, %v2974
      %v3004 = vmul.f32 %v2832, %v2974
      %v3005 = vmul.f32 %v2833, %v2974
      %v3006 = vmul.f32 %v2834, %v2974
      %v3007 = vadd.f32 %v2939, %v2975
      %v3008 = vadd.f32 %v2940, %v2976
      %v3009 = vadd.f32 %v2941, %v2977
      %v3010 = vadd.f32 %v2942, %v2978
      %v3011 = vadd.f32 %v2943, %v2979
      %v3012 = vadd.f32 %v2944, %v2980
      %v3013 = vadd.f32 %v2945, %v2981
      %v3014 = vadd.f32 %v2946, %v2982
      %v3015 = vadd.f32 %v2947, %v2983
      %v3016 = vadd.f32 %v2948, %v2984
      %v3017 = vadd.f32 %v2949, %v2985
      %v3018 = vadd.f32 %v2950, %v2986
      %v3019 = vadd.f32 %v2951, %v2987
      %v3020 = vadd.f32 %v2952, %v2988
      %v3021 = vadd.f32 %v2953, %v2989
      %v3022 = vadd.f32 %v2954, %v2990
      %v3023 = vadd.f32 %v2955, %v2991
      %v3024 = vadd.f32 %v2956, %v2992
      %v3025 = vadd.f32 %v2957, %v2993
      %v3026 = vadd.f32 %v2958, %v2994
      %v3027 = vadd.f32 %v2959, %v2995
      %v3028 = vadd.f32 %v2960, %v2996
      %v3029 = vadd.f32 %v2961, %v2997
      %v3030 = vadd.f32 %v2962, %v2998
      %v3031 = vadd.f32 %v2963, %v2999
      %v3032 = vadd.f32 %v2964, %v3000
      %v3033 = vadd.f32 %v2965, %v3001
      %v3034 = vadd.f32 %v2966, %v3002
      %v3035 = vadd.f32 %v2967, %v3003
      %v3036 = vadd.f32 %v2968, %v3004
      %v3037 = vadd.f32 %v2969, %v3005
      %v3038 = vadd.f32 %v2970, %v3006
      %v3039 = vld [vmem:[#allocation2 + $0x2] sm:$0xff]
      %v3040 = vld [vmem:[#allocation2 + $0xa] sm:$0xff]
      %v3041 = vld [vmem:[#allocation2 + $0x1a] sm:$0xff]
      %v3042 = vld [vmem:[#allocation2 + $0x22] sm:$0xff]
      %v3043 = vld [vmem:[#allocation2 + $0x32] sm:$0xff]
      %v3044 = vld [vmem:[#allocation2 + $0x3a] sm:$0xff]
      %v3045 = vld [vmem:[#allocation2 + $0x4a] sm:$0xff]
      %v3046 = vld [vmem:[#allocation2 + $0x52] sm:$0xff]
      %v3047 = vld [vmem:[#allocation2 + $0x62] sm:$0xff]
      %v3048 = vld [vmem:[#allocation2 + $0x6a] sm:$0xff]
      %v3049 = vld [vmem:[#allocation2 + $0x7a] sm:$0xff]
      %v3050 = vld [vmem:[#allocation2 + $0x82] sm:$0xff]
      %v3051 = vld [vmem:[#allocation2 + $0x92] sm:$0xff]
      %v3052 = vld [vmem:[#allocation2 + $0x9a] sm:$0xff]
      %v3053 = vld [vmem:[#allocation2 + $0xaa] sm:$0xff]
      %v3054 = vld [vmem:[#allocation2 + $0xb2] sm:$0xff]
      %v3055 = vld [vmem:[#allocation2 + $0xc2] sm:$0xff]
      %v3056 = vld [vmem:[#allocation2 + $0xca] sm:$0xff]
      %v3057 = vld [vmem:[#allocation2 + $0xda] sm:$0xff]
      %v3058 = vld [vmem:[#allocation2 + $0xe2] sm:$0xff]
      %v3059 = vld [vmem:[#allocation2 + $0xf2] sm:$0xff]
      %v3060 = vld [vmem:[#allocation2 + $0xfa] sm:$0xff]
      %v3061 = vld [vmem:[#allocation2 + $0x10a] sm:$0xff]
      %v3062 = vld [vmem:[#allocation2 + $0x112] sm:$0xff]
      %v3063 = vld [vmem:[#allocation2 + $0x122] sm:$0xff]
      %v3064 = vld [vmem:[#allocation2 + $0x12a] sm:$0xff]
      %v3065 = vld [vmem:[#allocation2 + $0x13a] sm:$0xff]
      %v3066 = vld [vmem:[#allocation2 + $0x142] sm:$0xff]
      %v3067 = vld [vmem:[#allocation2 + $0x152] sm:$0xff]
      %v3068 = vld [vmem:[#allocation2 + $0x15a] sm:$0xff]
      %v3069 = vld [vmem:[#allocation2 + $0x16a] sm:$0xff]
      %v3070 = vld [vmem:[#allocation2 + $0x172] sm:$0xff]
      %v3071 = vld [vmem:[#allocation2 + $0x182] sm:$0xff]
      %v3072 = vld [vmem:[#allocation2 + $0x18a] sm:$0xff]
      %v3073 = vld [vmem:[#allocation2 + $0x19a] sm:$0xff]
      %v3074 = vld [vmem:[#allocation2 + $0x1a2] sm:$0xff]
      %v3075 = vlaneseq
      %v3076 = vshrl.u32 %v3075, 7
      %v3077 = vsub.s32 2, %v3076
      %v3078 = vrot.slane %v2557, %v3077
      %v3079 = vmul.f32 %v3039, %v3078
      %v3080 = vmul.f32 %v3040, %v3078
      %v3081 = vmul.f32 %v3041, %v3078
      %v3082 = vmul.f32 %v3042, %v3078
      %v3083 = vmul.f32 %v3043, %v3078
      %v3084 = vmul.f32 %v3044, %v3078
      %v3085 = vmul.f32 %v3045, %v3078
      %v3086 = vmul.f32 %v3046, %v3078
      %v3087 = vmul.f32 %v3047, %v3078
      %v3088 = vmul.f32 %v3048, %v3078
      %v3089 = vmul.f32 %v3049, %v3078
      %v3090 = vmul.f32 %v3050, %v3078
      %v3091 = vmul.f32 %v3051, %v3078
      %v3092 = vmul.f32 %v3052, %v3078
      %v3093 = vmul.f32 %v3053, %v3078
      %v3094 = vmul.f32 %v3054, %v3078
      %v3095 = vmul.f32 %v3055, %v3078
      %v3096 = vmul.f32 %v3056, %v3078
      %v3097 = vmul.f32 %v3057, %v3078
      %v3098 = vmul.f32 %v3058, %v3078
      %v3099 = vmul.f32 %v3059, %v3078
      %v3100 = vmul.f32 %v3060, %v3078
      %v3101 = vmul.f32 %v3061, %v3078
      %v3102 = vmul.f32 %v3062, %v3078
      %v3103 = vmul.f32 %v3063, %v3078
      %v3104 = vmul.f32 %v3064, %v3078
      %v3105 = vmul.f32 %v3065, %v3078
      %v3106 = vmul.f32 %v3066, %v3078
      %v3107 = vmul.f32 %v3067, %v3078
      %v3108 = vmul.f32 %v3068, %v3078
      %v3109 = vmul.f32 %v3069, %v3078
      %v3110 = vmul.f32 %v3070, %v3078
      %v3111 = vadd.f32 %v3007, %v3079
      %v3112 = vadd.f32 %v3008, %v3080
      %v3113 = vadd.f32 %v3009, %v3081
      %v3114 = vadd.f32 %v3010, %v3082
      %v3115 = vadd.f32 %v3011, %v3083
      %v3116 = vadd.f32 %v3012, %v3084
      %v3117 = vadd.f32 %v3013, %v3085
      %v3118 = vadd.f32 %v3014, %v3086
      %v3119 = vadd.f32 %v3015, %v3087
      %v3120 = vadd.f32 %v3016, %v3088
      %v3121 = vadd.f32 %v3017, %v3089
      %v3122 = vadd.f32 %v3018, %v3090
      %v3123 = vadd.f32 %v3019, %v3091
      %v3124 = vadd.f32 %v3020, %v3092
      %v3125 = vadd.f32 %v3021, %v3093
      %v3126 = vadd.f32 %v3022, %v3094
      %v3127 = vadd.f32 %v3023, %v3095
      %v3128 = vadd.f32 %v3024, %v3096
      %v3129 = vadd.f32 %v3025, %v3097
      %v3130 = vadd.f32 %v3026, %v3098
      %v3131 = vadd.f32 %v3027, %v3099
      %v3132 = vadd.f32 %v3028, %v3100
      %v3133 = vadd.f32 %v3029, %v3101
      %v3134 = vadd.f32 %v3030, %v3102
      %v3135 = vadd.f32 %v3031, %v3103
      %v3136 = vadd.f32 %v3032, %v3104
      %v3137 = vadd.f32 %v3033, %v3105
      %v3138 = vadd.f32 %v3034, %v3106
      %v3139 = vadd.f32 %v3035, %v3107
      %v3140 = vadd.f32 %v3036, %v3108
      %v3141 = vadd.f32 %v3037, %v3109
      %v3142 = vadd.f32 %v3038, %v3110
      %v3143 = vlaneseq
      %v3144 = vshrl.u32 %v3143, 7
      %v3145 = vsub.s32 5, %v3144
      %v3146 = vrot.slane %v2557, %v3145
      %v3147 = vmul.f32 %v3041, %v3146
      %v3148 = vmul.f32 %v3042, %v3146
      %v3149 = vmul.f32 %v3043, %v3146
      %v3150 = vmul.f32 %v3044, %v3146
      %v3151 = vmul.f32 %v3045, %v3146
      %v3152 = vmul.f32 %v3046, %v3146
      %v3153 = vmul.f32 %v3047, %v3146
      %v3154 = vmul.f32 %v3048, %v3146
      %v3155 = vmul.f32 %v3049, %v3146
      %v3156 = vmul.f32 %v3050, %v3146
      %v3157 = vmul.f32 %v3051, %v3146
      %v3158 = vmul.f32 %v3052, %v3146
      %v3159 = vmul.f32 %v3053, %v3146
      %v3160 = vmul.f32 %v3054, %v3146
      %v3161 = vmul.f32 %v3055, %v3146
      %v3162 = vmul.f32 %v3056, %v3146
      %v3163 = vmul.f32 %v3057, %v3146
      %v3164 = vmul.f32 %v3058, %v3146
      %v3165 = vmul.f32 %v3059, %v3146
      %v3166 = vmul.f32 %v3060, %v3146
      %v3167 = vmul.f32 %v3061, %v3146
      %v3168 = vmul.f32 %v3062, %v3146
      %v3169 = vmul.f32 %v3063, %v3146
      %v3170 = vmul.f32 %v3064, %v3146
      %v3171 = vmul.f32 %v3065, %v3146
      %v3172 = vmul.f32 %v3066, %v3146
      %v3173 = vmul.f32 %v3067, %v3146
      %v3174 = vmul.f32 %v3068, %v3146
      %v3175 = vmul.f32 %v3069, %v3146
      %v3176 = vmul.f32 %v3070, %v3146
      %v3177 = vmul.f32 %v3071, %v3146
      %v3178 = vmul.f32 %v3072, %v3146
      %v3179 = vadd.f32 %v3111, %v3147
      %v3180 = vadd.f32 %v3112, %v3148
      %v3181 = vadd.f32 %v3113, %v3149
      %v3182 = vadd.f32 %v3114, %v3150
      %v3183 = vadd.f32 %v3115, %v3151
      %v3184 = vadd.f32 %v3116, %v3152
      %v3185 = vadd.f32 %v3117, %v3153
      %v3186 = vadd.f32 %v3118, %v3154
      %v3187 = vadd.f32 %v3119, %v3155
      %v3188 = vadd.f32 %v3120, %v3156
      %v3189 = vadd.f32 %v3121, %v3157
      %v3190 = vadd.f32 %v3122, %v3158
      %v3191 = vadd.f32 %v3123, %v3159
      %v3192 = vadd.f32 %v3124, %v3160
      %v3193 = vadd.f32 %v3125, %v3161
      %v3194 = vadd.f32 %v3126, %v3162
      %v3195 = vadd.f32 %v3127, %v3163
      %v3196 = vadd.f32 %v3128, %v3164
      %v3197 = vadd.f32 %v3129, %v3165
      %v3198 = vadd.f32 %v3130, %v3166
      %v3199 = vadd.f32 %v3131, %v3167
      %v3200 = vadd.f32 %v3132, %v3168
      %v3201 = vadd.f32 %v3133, %v3169
      %v3202 = vadd.f32 %v3134, %v3170
      %v3203 = vadd.f32 %v3135, %v3171
      %v3204 = vadd.f32 %v3136, %v3172
      %v3205 = vadd.f32 %v3137, %v3173
      %v3206 = vadd.f32 %v3138, %v3174
      %v3207 = vadd.f32 %v3139, %v3175
      %v3208 = vadd.f32 %v3140, %v3176
      %v3209 = vadd.f32 %v3141, %v3177
      %v3210 = vadd.f32 %v3142, %v3178
      %v3211 = vlaneseq
      %v3212 = vshrl.u32 %v3211, 7
      %v3213 = vsub.s32 0, %v3212
      %v3214 = vrot.slane %v2558, %v3213
      %v3215 = vmul.f32 %v3043, %v3214
      %v3216 = vmul.f32 %v3044, %v3214
      %v3217 = vmul.f32 %v3045, %v3214
      %v3218 = vmul.f32 %v3046, %v3214
      %v3219 = vmul.f32 %v3047, %v3214
      %v3220 = vmul.f32 %v3048, %v3214
      %v3221 = vmul.f32 %v3049, %v3214
      %v3222 = vmul.f32 %v3050, %v3214
      %v3223 = vmul.f32 %v3051, %v3214
      %v3224 = vmul.f32 %v3052, %v3214
      %v3225 = vmul.f32 %v3053, %v3214
      %v3226 = vmul.f32 %v3054, %v3214
      %v3227 = vmul.f32 %v3055, %v3214
      %v3228 = vmul.f32 %v3056, %v3214
      %v3229 = vmul.f32 %v3057, %v3214
      %v3230 = vmul.f32 %v3058, %v3214
      %v3231 = vmul.f32 %v3059, %v3214
      %v3232 = vmul.f32 %v3060, %v3214
      %v3233 = vmul.f32 %v3061, %v3214
      %v3234 = vmul.f32 %v3062, %v3214
      %v3235 = vmul.f32 %v3063, %v3214
      %v3236 = vmul.f32 %v3064, %v3214
      %v3237 = vmul.f32 %v3065, %v3214
      %v3238 = vmul.f32 %v3066, %v3214
      %v3239 = vmul.f32 %v3067, %v3214
      %v3240 = vmul.f32 %v3068, %v3214
      %v3241 = vmul.f32 %v3069, %v3214
      %v3242 = vmul.f32 %v3070, %v3214
      %v3243 = vmul.f32 %v3071, %v3214
      %v3244 = vmul.f32 %v3072, %v3214
      %v3245 = vmul.f32 %v3073, %v3214
      %v3246 = vmul.f32 %v3074, %v3214
      %v3247 = vadd.f32 %v3179, %v3215
      %v3248 = vadd.f32 %v3180, %v3216
      %v3249 = vadd.f32 %v3181, %v3217
      %v3250 = vadd.f32 %v3182, %v3218
      %v3251 = vadd.f32 %v3183, %v3219
      %v3252 = vadd.f32 %v3184, %v3220
      %v3253 = vadd.f32 %v3185, %v3221
      %v3254 = vadd.f32 %v3186, %v3222
      %v3255 = vadd.f32 %v3187, %v3223
      %v3256 = vadd.f32 %v3188, %v3224
      %v3257 = vadd.f32 %v3189, %v3225
      %v3258 = vadd.f32 %v3190, %v3226
      %v3259 = vadd.f32 %v3191, %v3227
      %v3260 = vadd.f32 %v3192, %v3228
      %v3261 = vadd.f32 %v3193, %v3229
      %v3262 = vadd.f32 %v3194, %v3230
      %v3263 = vadd.f32 %v3195, %v3231
      %v3264 = vadd.f32 %v3196, %v3232
      %v3265 = vadd.f32 %v3197, %v3233
      %v3266 = vadd.f32 %v3198, %v3234
      %v3267 = vadd.f32 %v3199, %v3235
      %v3268 = vadd.f32 %v3200, %v3236
      %v3269 = vadd.f32 %v3201, %v3237
      %v3270 = vadd.f32 %v3202, %v3238
      %v3271 = vadd.f32 %v3203, %v3239
      %v3272 = vadd.f32 %v3204, %v3240
      %v3273 = vadd.f32 %v3205, %v3241
      %v3274 = vadd.f32 %v3206, %v3242
      %v3275 = vadd.f32 %v3207, %v3243
      %v3276 = vadd.f32 %v3208, %v3244
      %v3277 = vadd.f32 %v3209, %v3245
      %v3278 = vadd.f32 %v3210, %v3246
      %v3279 = vld [vmem:[%s2 + $0x1] sm:$0x1]
      %v3280 = vlaneseq
      %v3281 = vshrl.u32 %v3280, 7
      %v3282 = vsub.s32 0, %v3281
      %v3283 = vrot.slane %v3279, %v3282
      %v3284 = vadd.f32 %v3247, %v3283
      %v3285 = vadd.f32 %v3248, %v3283
      %v3286 = vadd.f32 %v3249, %v3283
      %v3287 = vadd.f32 %v3250, %v3283
      %v3288 = vadd.f32 %v3251, %v3283
      %v3289 = vadd.f32 %v3252, %v3283
      %v3290 = vadd.f32 %v3253, %v3283
      %v3291 = vadd.f32 %v3254, %v3283
      %v3292 = vadd.f32 %v3255, %v3283
      %v3293 = vadd.f32 %v3256, %v3283
      %v3294 = vadd.f32 %v3257, %v3283
      %v3295 = vadd.f32 %v3258, %v3283
      %v3296 = vadd.f32 %v3259, %v3283
      %v3297 = vadd.f32 %v3260, %v3283
      %v3298 = vadd.f32 %v3261, %v3283
      %v3299 = vadd.f32 %v3262, %v3283
      %v3300 = vadd.f32 %v3263, %v3283
      %v3301 = vadd.f32 %v3264, %v3283
      %v3302 = vadd.f32 %v3265, %v3283
      %v3303 = vadd.f32 %v3266, %v3283
      %v3304 = vadd.f32 %v3267, %v3283
      %v3305 = vadd.f32 %v3268, %v3283
      %v3306 = vadd.f32 %v3269, %v3283
      %v3307 = vadd.f32 %v3270, %v3283
      %v3308 = vadd.f32 %v3271, %v3283
      %v3309 = vadd.f32 %v3272, %v3283
      %v3310 = vadd.f32 %v3273, %v3283
      %v3311 = vadd.f32 %v3274, %v3283
      %v3312 = vadd.f32 %v3275, %v3283
      %v3313 = vadd.f32 %v3276, %v3283
      %v3314 = vadd.f32 %v3277, %v3283
      %v3315 = vadd.f32 %v3278, %v3283
      %v3316 = vmax.f32 %v3284, 0.0
      %v3317 = vmax.f32 %v3285, 0.0
      %v3318 = vmax.f32 %v3286, 0.0
      %v3319 = vmax.f32 %v3287, 0.0
      %v3320 = vmax.f32 %v3288, 0.0
      %v3321 = vmax.f32 %v3289, 0.0
      %v3322 = vmax.f32 %v3290, 0.0
      %v3323 = vmax.f32 %v3291, 0.0
      %v3324 = vmax.f32 %v3292, 0.0
      %v3325 = vmax.f32 %v3293, 0.0
      %v3326 = vmax.f32 %v3294, 0.0
      %v3327 = vmax.f32 %v3295, 0.0
      %v3328 = vmax.f32 %v3296, 0.0
      %v3329 = vmax.f32 %v3297, 0.0
      %v3330 = vmax.f32 %v3298, 0.0
      %v3331 = vmax.f32 %v3299, 0.0
      %v3332 = vmax.f32 %v3300, 0.0
      %v3333 = vmax.f32 %v3301, 0.0
      %v3334 = vmax.f32 %v3302, 0.0
      %v3335 = vmax.f32 %v3303, 0.0
      %v3336 = vmax.f32 %v3304, 0.0
      %v3337 = vmax.f32 %v3305, 0.0
      %v3338 = vmax.f32 %v3306, 0.0
      %v3339 = vmax.f32 %v3307, 0.0
      %v3340 = vmax.f32 %v3308, 0.0
      %v3341 = vmax.f32 %v3309, 0.0
      %v3342 = vmax.f32 %v3310, 0.0
      %v3343 = vmax.f32 %v3311, 0.0
      %v3344 = vmax.f32 %v3312, 0.0
      %v3345 = vmax.f32 %v3313, 0.0
      %v3346 = vmax.f32 %v3314, 0.0
      %v3347 = vmax.f32 %v3315, 0.0
      %s3348 = scalar_lea.vmem %s3, 2
      %v3349 = vld [vmem:[%s3348] sm:$0x3]
      %v3350 = vld [vmem:[%s4 + $0x1] sm:$0x1]
      %v3351 = vlaneseq
      %v3352 = vshrl.u32 %v3351, 7
      %v3353 = vsub.s32 0, %v3352
      %v3354 = vrot.slane %v3350, %v3353
      %v3356 = vsel %vm306, %v3316, 0
      %v3359 = vsel %vm306, %v3317, 0
      %v3362 = vsel %vm306, %v3318, 0
      %v3365 = vsel %vm306, %v3319, 0
      %v3368 = vsel %vm306, %v3320, 0
      %v3371 = vsel %vm306, %v3321, 0
      %v3374 = vsel %vm306, %v3322, 0
      %v3377 = vsel %vm306, %v3323, 0
      %v3380 = vsel %vm306, %v3324, 0
      %v3383 = vsel %vm306, %v3325, 0
      %v3386 = vsel %vm306, %v3326, 0
      %v3389 = vsel %vm306, %v3327, 0
      %v3392 = vsel %vm306, %v3328, 0
      %v3395 = vsel %vm306, %v3329, 0
      %v3398 = vsel %vm306, %v3330, 0
      %v3401 = vsel %vm306, %v3331, 0
      %v3404 = vsel %vm306, %v3332, 0
      %v3407 = vsel %vm306, %v3333, 0
      %v3410 = vsel %vm306, %v3334, 0
      %v3413 = vsel %vm306, %v3335, 0
      %v3416 = vsel %vm306, %v3336, 0
      %v3419 = vsel %vm306, %v3337, 0
      %v3422 = vsel %vm306, %v3338, 0
      %v3425 = vsel %vm306, %v3339, 0
      %v3428 = vsel %vm306, %v3340, 0
      %v3431 = vsel %vm306, %v3341, 0
      %v3434 = vsel %vm306, %v3342, 0
      %v3437 = vsel %vm306, %v3343, 0
      %v3440 = vsel %vm306, %v3344, 0
      %v3443 = vsel %vm306, %v3345, 0
      %v3446 = vsel %vm306, %v3346, 0
      %v3449 = vsel %vm306, %v3347, 0
      %v3452 = vsel %vm1448, %v3349, 0
      %3454 = vmatprep.subr.mxu0 0.0
      %3455 = vmatpush1.msra.mxu0 0.0
      %3456 = vmatprep.subr.mxu0 0.0
      %3457 = vmatpush1.msra.mxu0 0.0
      %3458 = vmatprep.subr.mxu0 0.0
      %3459 = vmatpush1.msra.mxu0 0.0
      %3460 = vmatprep.subr.mxu0 0.0
      %3461 = vmatpush1.msra.mxu0 0.0
      %3462 = vmatprep.subr.mxu0 0.0
      %3463 = vmatpush1.msra.mxu0 0.0
      %3464 = vmatprep.subr.mxu0 0.0
      %3465 = vmatpush1.msra.mxu0 0.0
      %3466 = vmatprep.subr.mxu0 0.0
      %3467 = vmatpush1.msra.mxu0 0.0
      %3468 = vmatprep.subr.mxu0 0.0
      %3469 = vmatpush1.msra.mxu0 0.0
      %3470 = vmatprep.subr.mxu0 0.0
      %3471 = vmatpush1.msra.mxu0 0.0
      %3472 = vmatprep.subr.mxu0 0.0
      %3473 = vmatpush1.msra.mxu0 0.0
      %3474 = vmatprep.subr.mxu0 0.0
      %3475 = vmatpush1.msra.mxu0 0.0
      %3476 = vmatprep.subr.mxu0 0.0
      %3477 = vmatpush1.msra.mxu0 0.0
      %3478 = vmatprep.subr.mxu0 0.0
      %3479 = vmatpush1.msra.mxu0 0.0
      %3480 = vmatprep.subr.mxu0 0.0
      %3481 = vmatpush1.msra.mxu0 0.0
      %3482 = vmatprep.subr.mxu0 0.0
      %3483 = vmatpush1.msra.mxu0 0.0
      %3484 = vmatprep.subr.mxu0 0.0
      %3485 = vmatpush1.msra.mxu0 %v3452
      %3486 = vmatprep.subr.mxu0 0.0
      %3487 = vmatpush2.msra.mxu0 0.0
      %3488 = vmatprep.subr.mxu0 0.0
      %3489 = vmatpush2.msra.mxu0 0.0
      %3490 = vmatprep.subr.mxu0 0.0
      %3491 = vmatpush2.msra.mxu0 0.0
      %3492 = vmatprep.subr.mxu0 0.0
      %3493 = vmatpush2.msra.mxu0 0.0
      %3494 = vmatprep.subr.mxu0 0.0
      %3495 = vmatpush2.msra.mxu0 0.0
      %3496 = vmatprep.subr.mxu0 0.0
      %3497 = vmatpush2.msra.mxu0 0.0
      %3498 = vmatprep.subr.mxu0 0.0
      %3499 = vmatpush2.msra.mxu0 0.0
      %3500 = vmatprep.subr.mxu0 0.0
      %3501 = vmatpush2.msra.mxu0 0.0
      %3502 = vmatprep.subr.mxu0 0.0
      %3503 = vmatpush2.msra.mxu0 0.0
      %3504 = vmatprep.subr.mxu0 0.0
      %3505 = vmatpush2.msra.mxu0 0.0
      %3506 = vmatprep.subr.mxu0 0.0
      %3507 = vmatpush2.msra.mxu0 0.0
      %3508 = vmatprep.subr.mxu0 0.0
      %3509 = vmatpush2.msra.mxu0 0.0
      %3510 = vmatprep.subr.mxu0 0.0
      %3511 = vmatpush2.msra.mxu0 0.0
      %3512 = vmatprep.subr.mxu0 0.0
      %3513 = vmatpush2.msra.mxu0 0.0
      %3514 = vmatprep.subr.mxu0 0.0
      %3515 = vmatpush2.msra.mxu0 0.0
      %3516 = vmatprep.subr.mxu0 0.0
      %3517 = vmatpush2.msra.mxu0 0.0
      %3518 = vmatprep.mubr.f32.mxu0 0.0
      %3519 = vmatmul.mubr.f32.gmra.mxu0 %v3356
      %v3520 = vpop.f32.mrf.mxu0
      %v3521 = vadd.f32 %v3354, %v3520
      %v3522 = vpop.f32.mrf.mxu0
      %3523 = vmatprep.mubr.f32.mxu0 0.0
      %3524 = vmatmul.mubr.f32.gmra.mxu0 %v3359
      %v3525 = vpop.f32.mrf.mxu0
      %v3526 = vadd.f32 %v3354, %v3525
      %v3527 = vpop.f32.mrf.mxu0
      %3528 = vmatprep.mubr.f32.mxu0 0.0
      %3529 = vmatmul.mubr.f32.gmra.mxu0 %v3362
      %v3530 = vpop.f32.mrf.mxu0
      %v3531 = vadd.f32 %v3354, %v3530
      %v3532 = vpop.f32.mrf.mxu0
      %3533 = vmatprep.mubr.f32.mxu0 0.0
      %3534 = vmatmul.mubr.f32.gmra.mxu0 %v3365
      %v3535 = vpop.f32.mrf.mxu0
      %v3536 = vadd.f32 %v3354, %v3535
      %v3537 = vpop.f32.mrf.mxu0
      %3538 = vmatprep.mubr.f32.mxu0 0.0
      %3539 = vmatmul.mubr.f32.gmra.mxu0 %v3368
      %v3540 = vpop.f32.mrf.mxu0
      %v3541 = vadd.f32 %v3354, %v3540
      %v3542 = vpop.f32.mrf.mxu0
      %3543 = vmatprep.mubr.f32.mxu0 0.0
      %3544 = vmatmul.mubr.f32.gmra.mxu0 %v3371
      %v3545 = vpop.f32.mrf.mxu0
      %v3546 = vadd.f32 %v3354, %v3545
      %v3547 = vpop.f32.mrf.mxu0
      %3548 = vmatprep.mubr.f32.mxu0 0.0
      %3549 = vmatmul.mubr.f32.gmra.mxu0 %v3374
      %v3550 = vpop.f32.mrf.mxu0
      %v3551 = vadd.f32 %v3354, %v3550
      %v3552 = vpop.f32.mrf.mxu0
      %3553 = vmatprep.mubr.f32.mxu0 0.0
      %3554 = vmatmul.mubr.f32.gmra.mxu0 %v3377
      %v3555 = vpop.f32.mrf.mxu0
      %v3556 = vadd.f32 %v3354, %v3555
      %v3557 = vpop.f32.mrf.mxu0
      %3558 = vmatprep.mubr.f32.mxu0 0.0
      %3559 = vmatmul.mubr.f32.gmra.mxu0 %v3380
      %v3560 = vpop.f32.mrf.mxu0
      %v3561 = vadd.f32 %v3354, %v3560
      %v3562 = vpop.f32.mrf.mxu0
      %3563 = vmatprep.mubr.f32.mxu0 0.0
      %3564 = vmatmul.mubr.f32.gmra.mxu0 %v3383
      %v3565 = vpop.f32.mrf.mxu0
      %v3566 = vadd.f32 %v3354, %v3565
      %v3567 = vpop.f32.mrf.mxu0
      %3568 = vmatprep.mubr.f32.mxu0 0.0
      %3569 = vmatmul.mubr.f32.gmra.mxu0 %v3386
      %v3570 = vpop.f32.mrf.mxu0
      %v3571 = vadd.f32 %v3354, %v3570
      %v3572 = vpop.f32.mrf.mxu0
      %3573 = vmatprep.mubr.f32.mxu0 0.0
      %3574 = vmatmul.mubr.f32.gmra.mxu0 %v3389
      %v3575 = vpop.f32.mrf.mxu0
      %v3576 = vadd.f32 %v3354, %v3575
      %v3577 = vpop.f32.mrf.mxu0
      %3578 = vmatprep.mubr.f32.mxu0 0.0
      %3579 = vmatmul.mubr.f32.gmra.mxu0 %v3392
      %v3580 = vpop.f32.mrf.mxu0
      %v3581 = vadd.f32 %v3354, %v3580
      %v3582 = vpop.f32.mrf.mxu0
      %3583 = vmatprep.mubr.f32.mxu0 0.0
      %3584 = vmatmul.mubr.f32.gmra.mxu0 %v3395
      %v3585 = vpop.f32.mrf.mxu0
      %v3586 = vadd.f32 %v3354, %v3585
      %v3587 = vpop.f32.mrf.mxu0
      %3588 = vmatprep.mubr.f32.mxu0 0.0
      %3589 = vmatmul.mubr.f32.gmra.mxu0 %v3398
      %v3590 = vpop.f32.mrf.mxu0
      %v3591 = vadd.f32 %v3354, %v3590
      %v3592 = vpop.f32.mrf.mxu0
      %3593 = vmatprep.mubr.f32.mxu0 0.0
      %3594 = vmatmul.mubr.f32.gmra.mxu0 %v3401
      %v3595 = vpop.f32.mrf.mxu0
      %v3596 = vadd.f32 %v3354, %v3595
      %v3597 = vpop.f32.mrf.mxu0
      %3598 = vmatprep.mubr.f32.mxu0 0.0
      %3599 = vmatmul.mubr.f32.gmra.mxu0 %v3404
      %v3600 = vpop.f32.mrf.mxu0
      %v3601 = vadd.f32 %v3354, %v3600
      %v3602 = vpop.f32.mrf.mxu0
      %3603 = vmatprep.mubr.f32.mxu0 0.0
      %3604 = vmatmul.mubr.f32.gmra.mxu0 %v3407
      %v3605 = vpop.f32.mrf.mxu0
      %v3606 = vadd.f32 %v3354, %v3605
      %v3607 = vpop.f32.mrf.mxu0
      %3608 = vmatprep.mubr.f32.mxu0 0.0
      %3609 = vmatmul.mubr.f32.gmra.mxu0 %v3410
      %v3610 = vpop.f32.mrf.mxu0
      %v3611 = vadd.f32 %v3354, %v3610
      %v3612 = vpop.f32.mrf.mxu0
      %3613 = vmatprep.mubr.f32.mxu0 0.0
      %3614 = vmatmul.mubr.f32.gmra.mxu0 %v3413
      %v3615 = vpop.f32.mrf.mxu0
      %v3616 = vadd.f32 %v3354, %v3615
      %v3617 = vpop.f32.mrf.mxu0
      %3618 = vmatprep.mubr.f32.mxu0 0.0
      %3619 = vmatmul.mubr.f32.gmra.mxu0 %v3416
      %v3620 = vpop.f32.mrf.mxu0
      %v3621 = vadd.f32 %v3354, %v3620
      %v3622 = vpop.f32.mrf.mxu0
      %3623 = vmatprep.mubr.f32.mxu0 0.0
      %3624 = vmatmul.mubr.f32.gmra.mxu0 %v3419
      %v3625 = vpop.f32.mrf.mxu0
      %v3626 = vadd.f32 %v3354, %v3625
      %v3627 = vpop.f32.mrf.mxu0
      %3628 = vmatprep.mubr.f32.mxu0 0.0
      %3629 = vmatmul.mubr.f32.gmra.mxu0 %v3422
      %v3630 = vpop.f32.mrf.mxu0
      %v3631 = vadd.f32 %v3354, %v3630
      %v3632 = vpop.f32.mrf.mxu0
      %3633 = vmatprep.mubr.f32.mxu0 0.0
      %3634 = vmatmul.mubr.f32.gmra.mxu0 %v3425
      %v3635 = vpop.f32.mrf.mxu0
      %v3636 = vadd.f32 %v3354, %v3635
      %v3637 = vpop.f32.mrf.mxu0
      %3638 = vmatprep.mubr.f32.mxu0 0.0
      %3639 = vmatmul.mubr.f32.gmra.mxu0 %v3428
      %v3640 = vpop.f32.mrf.mxu0
      %v3641 = vadd.f32 %v3354, %v3640
      %v3642 = vpop.f32.mrf.mxu0
      %3643 = vmatprep.mubr.f32.mxu0 0.0
      %3644 = vmatmul.mubr.f32.gmra.mxu0 %v3431
      %v3645 = vpop.f32.mrf.mxu0
      %v3646 = vadd.f32 %v3354, %v3645
      %v3647 = vpop.f32.mrf.mxu0
      %3648 = vmatprep.mubr.f32.mxu0 0.0
      %3649 = vmatmul.mubr.f32.gmra.mxu0 %v3434
      %v3650 = vpop.f32.mrf.mxu0
      %v3651 = vadd.f32 %v3354, %v3650
      %v3652 = vpop.f32.mrf.mxu0
      %3653 = vmatprep.mubr.f32.mxu0 0.0
      %3654 = vmatmul.mubr.f32.gmra.mxu0 %v3437
      %v3655 = vpop.f32.mrf.mxu0
      %v3656 = vadd.f32 %v3354, %v3655
      %v3657 = vpop.f32.mrf.mxu0
      %3658 = vmatprep.mubr.f32.mxu0 0.0
      %3659 = vmatmul.mubr.f32.gmra.mxu0 %v3440
      %v3660 = vpop.f32.mrf.mxu0
      %v3661 = vadd.f32 %v3354, %v3660
      %v3662 = vpop.f32.mrf.mxu0
      %3663 = vmatprep.mubr.f32.mxu0 0.0
      %3664 = vmatmul.mubr.f32.gmra.mxu0 %v3443
      %v3665 = vpop.f32.mrf.mxu0
      %v3666 = vadd.f32 %v3354, %v3665
      %v3667 = vpop.f32.mrf.mxu0
      %3668 = vmatprep.mubr.f32.mxu0 0.0
      %3669 = vmatmul.mubr.f32.gmra.mxu0 %v3446
      %v3670 = vpop.f32.mrf.mxu0
      %v3671 = vadd.f32 %v3354, %v3670
      %v3672 = vpop.f32.mrf.mxu0
      %3673 = vmatprep.mubr.f32.mxu0 0.0
      %3674 = vmatmul.mubr.f32.gmra.mxu0 %v3449
      %v3675 = vpop.f32.mrf.mxu0
      %v3676 = vadd.f32 %v3354, %v3675
      %v3677 = vpop.f32.mrf.mxu0
      %3678 = vdwg.mxu0
      %v3679 = vmax.f32 %v3521, 0.0
      %v3680 = vmax.f32 %v3526, 0.0
      %v3681 = vmax.f32 %v3531, 0.0
      %v3682 = vmax.f32 %v3536, 0.0
      %v3683 = vmax.f32 %v3541, 0.0
      %v3684 = vmax.f32 %v3546, 0.0
      %v3685 = vmax.f32 %v3551, 0.0
      %v3686 = vmax.f32 %v3556, 0.0
      %v3687 = vmax.f32 %v3561, 0.0
      %v3688 = vmax.f32 %v3566, 0.0
      %v3689 = vmax.f32 %v3571, 0.0
      %v3690 = vmax.f32 %v3576, 0.0
      %v3691 = vmax.f32 %v3581, 0.0
      %v3692 = vmax.f32 %v3586, 0.0
      %v3693 = vmax.f32 %v3591, 0.0
      %v3694 = vmax.f32 %v3596, 0.0
      %v3695 = vmax.f32 %v3601, 0.0
      %v3696 = vmax.f32 %v3606, 0.0
      %v3697 = vmax.f32 %v3611, 0.0
      %v3698 = vmax.f32 %v3616, 0.0
      %v3699 = vmax.f32 %v3621, 0.0
      %v3700 = vmax.f32 %v3626, 0.0
      %v3701 = vmax.f32 %v3631, 0.0
      %v3702 = vmax.f32 %v3636, 0.0
      %v3703 = vmax.f32 %v3641, 0.0
      %v3704 = vmax.f32 %v3646, 0.0
      %v3705 = vmax.f32 %v3651, 0.0
      %v3706 = vmax.f32 %v3656, 0.0
      %v3707 = vmax.f32 %v3661, 0.0
      %v3708 = vmax.f32 %v3666, 0.0
      %v3709 = vmax.f32 %v3671, 0.0
      %v3710 = vmax.f32 %v3676, 0.0
      %s3711 = scalar_lea.vmem %s5, 2
      %v3712 = vld [vmem:[%s3711] sm:$0x3]
      %s3713 = scalar_lea.vmem %s6, 2
      %v3714 = vld [vmem:[%s3713] sm:$0x3]
      %v3716 = vsel %vm306, %v3679, 0
      %v3719 = vsel %vm306, %v3680, 0
      %v3722 = vsel %vm306, %v3681, 0
      %v3725 = vsel %vm306, %v3682, 0
      %v3728 = vsel %vm306, %v3683, 0
      %v3731 = vsel %vm306, %v3684, 0
      %v3734 = vsel %vm306, %v3685, 0
      %v3737 = vsel %vm306, %v3686, 0
      %v3740 = vsel %vm306, %v3687, 0
      %v3743 = vsel %vm306, %v3688, 0
      %v3746 = vsel %vm306, %v3689, 0
      %v3749 = vsel %vm306, %v3690, 0
      %v3752 = vsel %vm306, %v3691, 0
      %v3755 = vsel %vm306, %v3692, 0
      %v3758 = vsel %vm306, %v3693, 0
      %v3761 = vsel %vm306, %v3694, 0
      %v3764 = vsel %vm306, %v3695, 0
      %v3767 = vsel %vm306, %v3696, 0
      %v3770 = vsel %vm306, %v3697, 0
      %v3773 = vsel %vm306, %v3698, 0
      %v3776 = vsel %vm306, %v3699, 0
      %v3779 = vsel %vm306, %v3700, 0
      %v3782 = vsel %vm306, %v3701, 0
      %v3785 = vsel %vm306, %v3702, 0
      %v3788 = vsel %vm306, %v3703, 0
      %v3791 = vsel %vm306, %v3704, 0
      %v3794 = vsel %vm306, %v3705, 0
      %v3797 = vsel %vm306, %v3706, 0
      %v3800 = vsel %vm306, %v3707, 0
      %v3803 = vsel %vm306, %v3708, 0
      %v3806 = vsel %vm306, %v3709, 0
      %v3809 = vsel %vm306, %v3710, 0
      %v3812 = vsel %vm1448, %v3714, 0
      %3814 = vmatprep.subr.mxu0 0.0
      %3815 = vmatpush1.msra.mxu0 0.0
      %3816 = vmatprep.subr.mxu0 0.0
      %3817 = vmatpush1.msra.mxu0 0.0
      %3818 = vmatprep.subr.mxu0 0.0
      %3819 = vmatpush1.msra.mxu0 0.0
      %3820 = vmatprep.subr.mxu0 0.0
      %3821 = vmatpush1.msra.mxu0 0.0
      %3822 = vmatprep.subr.mxu0 0.0
      %3823 = vmatpush1.msra.mxu0 0.0
      %3824 = vmatprep.subr.mxu0 0.0
      %3825 = vmatpush1.msra.mxu0 0.0
      %3826 = vmatprep.subr.mxu0 0.0
      %3827 = vmatpush1.msra.mxu0 0.0
      %3828 = vmatprep.subr.mxu0 0.0
      %3829 = vmatpush1.msra.mxu0 0.0
      %3830 = vmatprep.subr.mxu0 0.0
      %3831 = vmatpush1.msra.mxu0 0.0
      %3832 = vmatprep.subr.mxu0 0.0
      %3833 = vmatpush1.msra.mxu0 0.0
      %3834 = vmatprep.subr.mxu0 0.0
      %3835 = vmatpush1.msra.mxu0 0.0
      %3836 = vmatprep.subr.mxu0 0.0
      %3837 = vmatpush1.msra.mxu0 0.0
      %3838 = vmatprep.subr.mxu0 0.0
      %3839 = vmatpush1.msra.mxu0 0.0
      %3840 = vmatprep.subr.mxu0 0.0
      %3841 = vmatpush1.msra.mxu0 0.0
      %3842 = vmatprep.subr.mxu0 0.0
      %3843 = vmatpush1.msra.mxu0 0.0
      %3844 = vmatprep.subr.mxu0 0.0
      %3845 = vmatpush1.msra.mxu0 %v3812
      %3846 = vmatprep.subr.mxu0 0.0
      %3847 = vmatpush2.msra.mxu0 0.0
      %3848 = vmatprep.subr.mxu0 0.0
      %3849 = vmatpush2.msra.mxu0 0.0
      %3850 = vmatprep.subr.mxu0 0.0
      %3851 = vmatpush2.msra.mxu0 0.0
      %3852 = vmatprep.subr.mxu0 0.0
      %3853 = vmatpush2.msra.mxu0 0.0
      %3854 = vmatprep.subr.mxu0 0.0
      %3855 = vmatpush2.msra.mxu0 0.0
      %3856 = vmatprep.subr.mxu0 0.0
      %3857 = vmatpush2.msra.mxu0 0.0
      %3858 = vmatprep.subr.mxu0 0.0
      %3859 = vmatpush2.msra.mxu0 0.0
      %3860 = vmatprep.subr.mxu0 0.0
      %3861 = vmatpush2.msra.mxu0 0.0
      %3862 = vmatprep.subr.mxu0 0.0
      %3863 = vmatpush2.msra.mxu0 0.0
      %3864 = vmatprep.subr.mxu0 0.0
      %3865 = vmatpush2.msra.mxu0 0.0
      %3866 = vmatprep.subr.mxu0 0.0
      %3867 = vmatpush2.msra.mxu0 0.0
      %3868 = vmatprep.subr.mxu0 0.0
      %3869 = vmatpush2.msra.mxu0 0.0
      %3870 = vmatprep.subr.mxu0 0.0
      %3871 = vmatpush2.msra.mxu0 0.0
      %3872 = vmatprep.subr.mxu0 0.0
      %3873 = vmatpush2.msra.mxu0 0.0
      %3874 = vmatprep.subr.mxu0 0.0
      %3875 = vmatpush2.msra.mxu0 0.0
      %3876 = vmatprep.subr.mxu0 0.0
      %3877 = vmatpush2.msra.mxu0 0.0
      %3878 = vmatprep.mubr.f32.mxu0 0.0
      %3879 = vmatmul.mubr.f32.gmra.mxu0 %v3716
      %v3880 = vpop.f32.mrf.mxu0
      %v3881 = vadd.f32 0.0, %v3880
      %v3882 = vpop.f32.mrf.mxu0
      %3883 = vmatprep.mubr.f32.mxu0 0.0
      %3884 = vmatmul.mubr.f32.gmra.mxu0 %v3719
      %v3885 = vpop.f32.mrf.mxu0
      %v3886 = vadd.f32 0.0, %v3885
      %v3887 = vpop.f32.mrf.mxu0
      %3888 = vmatprep.mubr.f32.mxu0 0.0
      %3889 = vmatmul.mubr.f32.gmra.mxu0 %v3722
      %v3890 = vpop.f32.mrf.mxu0
      %v3891 = vadd.f32 0.0, %v3890
      %v3892 = vpop.f32.mrf.mxu0
      %3893 = vmatprep.mubr.f32.mxu0 0.0
      %3894 = vmatmul.mubr.f32.gmra.mxu0 %v3725
      %v3895 = vpop.f32.mrf.mxu0
      %v3896 = vadd.f32 0.0, %v3895
      %v3897 = vpop.f32.mrf.mxu0
      %3898 = vmatprep.mubr.f32.mxu0 0.0
      %3899 = vmatmul.mubr.f32.gmra.mxu0 %v3728
      %v3900 = vpop.f32.mrf.mxu0
      %v3901 = vadd.f32 0.0, %v3900
      %v3902 = vpop.f32.mrf.mxu0
      %3903 = vmatprep.mubr.f32.mxu0 0.0
      %3904 = vmatmul.mubr.f32.gmra.mxu0 %v3731
      %v3905 = vpop.f32.mrf.mxu0
      %v3906 = vadd.f32 0.0, %v3905
      %v3907 = vpop.f32.mrf.mxu0
      %3908 = vmatprep.mubr.f32.mxu0 0.0
      %3909 = vmatmul.mubr.f32.gmra.mxu0 %v3734
      %v3910 = vpop.f32.mrf.mxu0
      %v3911 = vadd.f32 0.0, %v3910
      %v3912 = vpop.f32.mrf.mxu0
      %3913 = vmatprep.mubr.f32.mxu0 0.0
      %3914 = vmatmul.mubr.f32.gmra.mxu0 %v3737
      %v3915 = vpop.f32.mrf.mxu0
      %v3916 = vadd.f32 0.0, %v3915
      %v3917 = vpop.f32.mrf.mxu0
      %3918 = vmatprep.mubr.f32.mxu0 0.0
      %3919 = vmatmul.mubr.f32.gmra.mxu0 %v3740
      %v3920 = vpop.f32.mrf.mxu0
      %v3921 = vadd.f32 0.0, %v3920
      %v3922 = vpop.f32.mrf.mxu0
      %3923 = vmatprep.mubr.f32.mxu0 0.0
      %3924 = vmatmul.mubr.f32.gmra.mxu0 %v3743
      %v3925 = vpop.f32.mrf.mxu0
      %v3926 = vadd.f32 0.0, %v3925
      %v3927 = vpop.f32.mrf.mxu0
      %3928 = vmatprep.mubr.f32.mxu0 0.0
      %3929 = vmatmul.mubr.f32.gmra.mxu0 %v3746
      %v3930 = vpop.f32.mrf.mxu0
      %v3931 = vadd.f32 0.0, %v3930
      %v3932 = vpop.f32.mrf.mxu0
      %3933 = vmatprep.mubr.f32.mxu0 0.0
      %3934 = vmatmul.mubr.f32.gmra.mxu0 %v3749
      %v3935 = vpop.f32.mrf.mxu0
      %v3936 = vadd.f32 0.0, %v3935
      %v3937 = vpop.f32.mrf.mxu0
      %3938 = vmatprep.mubr.f32.mxu0 0.0
      %3939 = vmatmul.mubr.f32.gmra.mxu0 %v3752
      %v3940 = vpop.f32.mrf.mxu0
      %v3941 = vadd.f32 0.0, %v3940
      %v3942 = vpop.f32.mrf.mxu0
      %3943 = vmatprep.mubr.f32.mxu0 0.0
      %3944 = vmatmul.mubr.f32.gmra.mxu0 %v3755
      %v3945 = vpop.f32.mrf.mxu0
      %v3946 = vadd.f32 0.0, %v3945
      %v3947 = vpop.f32.mrf.mxu0
      %3948 = vmatprep.mubr.f32.mxu0 0.0
      %3949 = vmatmul.mubr.f32.gmra.mxu0 %v3758
      %v3950 = vpop.f32.mrf.mxu0
      %v3951 = vadd.f32 0.0, %v3950
      %v3952 = vpop.f32.mrf.mxu0
      %3953 = vmatprep.mubr.f32.mxu0 0.0
      %3954 = vmatmul.mubr.f32.gmra.mxu0 %v3761
      %v3955 = vpop.f32.mrf.mxu0
      %v3956 = vadd.f32 0.0, %v3955
      %v3957 = vpop.f32.mrf.mxu0
      %3958 = vmatprep.mubr.f32.mxu0 0.0
      %3959 = vmatmul.mubr.f32.gmra.mxu0 %v3764
      %v3960 = vpop.f32.mrf.mxu0
      %v3961 = vadd.f32 0.0, %v3960
      %v3962 = vpop.f32.mrf.mxu0
      %3963 = vmatprep.mubr.f32.mxu0 0.0
      %3964 = vmatmul.mubr.f32.gmra.mxu0 %v3767
      %v3965 = vpop.f32.mrf.mxu0
      %v3966 = vadd.f32 0.0, %v3965
      %v3967 = vpop.f32.mrf.mxu0
      %3968 = vmatprep.mubr.f32.mxu0 0.0
      %3969 = vmatmul.mubr.f32.gmra.mxu0 %v3770
      %v3970 = vpop.f32.mrf.mxu0
      %v3971 = vadd.f32 0.0, %v3970
      %v3972 = vpop.f32.mrf.mxu0
      %3973 = vmatprep.mubr.f32.mxu0 0.0
      %3974 = vmatmul.mubr.f32.gmra.mxu0 %v3773
      %v3975 = vpop.f32.mrf.mxu0
      %v3976 = vadd.f32 0.0, %v3975
      %v3977 = vpop.f32.mrf.mxu0
      %3978 = vmatprep.mubr.f32.mxu0 0.0
      %3979 = vmatmul.mubr.f32.gmra.mxu0 %v3776
      %v3980 = vpop.f32.mrf.mxu0
      %v3981 = vadd.f32 0.0, %v3980
      %v3982 = vpop.f32.mrf.mxu0
      %3983 = vmatprep.mubr.f32.mxu0 0.0
      %3984 = vmatmul.mubr.f32.gmra.mxu0 %v3779
      %v3985 = vpop.f32.mrf.mxu0
      %v3986 = vadd.f32 0.0, %v3985
      %v3987 = vpop.f32.mrf.mxu0
      %3988 = vmatprep.mubr.f32.mxu0 0.0
      %3989 = vmatmul.mubr.f32.gmra.mxu0 %v3782
      %v3990 = vpop.f32.mrf.mxu0
      %v3991 = vadd.f32 0.0, %v3990
      %v3992 = vpop.f32.mrf.mxu0
      %3993 = vmatprep.mubr.f32.mxu0 0.0
      %3994 = vmatmul.mubr.f32.gmra.mxu0 %v3785
      %v3995 = vpop.f32.mrf.mxu0
      %v3996 = vadd.f32 0.0, %v3995
      %v3997 = vpop.f32.mrf.mxu0
      %3998 = vmatprep.mubr.f32.mxu0 0.0
      %3999 = vmatmul.mubr.f32.gmra.mxu0 %v3788
      %v4000 = vpop.f32.mrf.mxu0
      %v4001 = vadd.f32 0.0, %v4000
      %v4002 = vpop.f32.mrf.mxu0
      %4003 = vmatprep.mubr.f32.mxu0 0.0
      %4004 = vmatmul.mubr.f32.gmra.mxu0 %v3791
      %v4005 = vpop.f32.mrf.mxu0
      %v4006 = vadd.f32 0.0, %v4005
      %v4007 = vpop.f32.mrf.mxu0
      %4008 = vmatprep.mubr.f32.mxu0 0.0
      %4009 = vmatmul.mubr.f32.gmra.mxu0 %v3794
      %v4010 = vpop.f32.mrf.mxu0
      %v4011 = vadd.f32 0.0, %v4010
      %v4012 = vpop.f32.mrf.mxu0
      %4013 = vmatprep.mubr.f32.mxu0 0.0
      %4014 = vmatmul.mubr.f32.gmra.mxu0 %v3797
      %v4015 = vpop.f32.mrf.mxu0
      %v4016 = vadd.f32 0.0, %v4015
      %v4017 = vpop.f32.mrf.mxu0
      %4018 = vmatprep.mubr.f32.mxu0 0.0
      %4019 = vmatmul.mubr.f32.gmra.mxu0 %v3800
      %v4020 = vpop.f32.mrf.mxu0
      %v4021 = vadd.f32 0.0, %v4020
      %v4022 = vpop.f32.mrf.mxu0
      %4023 = vmatprep.mubr.f32.mxu0 0.0
      %4024 = vmatmul.mubr.f32.gmra.mxu0 %v3803
      %v4025 = vpop.f32.mrf.mxu0
      %v4026 = vadd.f32 0.0, %v4025
      %v4027 = vpop.f32.mrf.mxu0
      %4028 = vmatprep.mubr.f32.mxu0 0.0
      %4029 = vmatmul.mubr.f32.gmra.mxu0 %v3806
      %v4030 = vpop.f32.mrf.mxu0
      %v4031 = vadd.f32 0.0, %v4030
      %v4032 = vpop.f32.mrf.mxu0
      %4033 = vmatprep.mubr.f32.mxu0 0.0
      %4034 = vmatmul.mubr.f32.gmra.mxu0 %v3809
      %v4035 = vpop.f32.mrf.mxu0
      %v4036 = vadd.f32 0.0, %v4035
      %v4037 = vpop.f32.mrf.mxu0
      %4038 = vdwg.mxu0
      %v4039 = vsel %vm306, %v2364, 0
      %v4041 = vsel %vm306, %v2365, 0
      %v4043 = vsel %vm306, %v2366, 0
      %v4045 = vsel %vm306, %v2367, 0
      %v4047 = vsel %vm306, %v2368, 0
      %v4049 = vsel %vm306, %v2369, 0
      %v4051 = vsel %vm306, %v2370, 0
      %v4053 = vsel %vm306, %v2371, 0
      %v4055 = vsel %vm306, %v2372, 0
      %v4057 = vsel %vm306, %v2373, 0
      %v4059 = vsel %vm306, %v2374, 0
      %v4061 = vsel %vm306, %v2375, 0
      %v4063 = vsel %vm306, %v2376, 0
      %v4065 = vsel %vm306, %v2377, 0
      %v4067 = vsel %vm306, %v2378, 0
      %v4069 = vsel %vm306, %v2379, 0
      %v4071 = vsel %vm306, %v2380, 0
      %v4073 = vsel %vm306, %v2381, 0
      %v4075 = vsel %vm306, %v2382, 0
      %v4077 = vsel %vm306, %v2383, 0
      %v4079 = vsel %vm306, %v2384, 0
      %v4081 = vsel %vm306, %v2385, 0
      %v4083 = vsel %vm306, %v2386, 0
      %v4085 = vsel %vm306, %v2387, 0
      %v4087 = vsel %vm306, %v2388, 0
      %v4089 = vsel %vm306, %v2389, 0
      %v4091 = vsel %vm306, %v2390, 0
      %v4093 = vsel %vm306, %v2391, 0
      %v4095 = vsel %vm306, %v2392, 0
      %v4097 = vsel %vm306, %v2393, 0
      %v4099 = vsel %vm306, %v2394, 0
      %v4101 = vsel %vm306, %v2395, 0
      %v4104 = vsel %vm1448, %v3712, 0
      %4106 = vmatprep.subr.mxu0 0.0
      %4107 = vmatpush1.msra.mxu0 0.0
      %4108 = vmatprep.subr.mxu0 0.0
      %4109 = vmatpush1.msra.mxu0 0.0
      %4110 = vmatprep.subr.mxu0 0.0
      %4111 = vmatpush1.msra.mxu0 0.0
      %4112 = vmatprep.subr.mxu0 0.0
      %4113 = vmatpush1.msra.mxu0 0.0
      %4114 = vmatprep.subr.mxu0 0.0
      %4115 = vmatpush1.msra.mxu0 0.0
      %4116 = vmatprep.subr.mxu0 0.0
      %4117 = vmatpush1.msra.mxu0 0.0
      %4118 = vmatprep.subr.mxu0 0.0
      %4119 = vmatpush1.msra.mxu0 0.0
      %4120 = vmatprep.subr.mxu0 0.0
      %4121 = vmatpush1.msra.mxu0 0.0
      %4122 = vmatprep.subr.mxu0 0.0
      %4123 = vmatpush1.msra.mxu0 0.0
      %4124 = vmatprep.subr.mxu0 0.0
      %4125 = vmatpush1.msra.mxu0 0.0
      %4126 = vmatprep.subr.mxu0 0.0
      %4127 = vmatpush1.msra.mxu0 0.0
      %4128 = vmatprep.subr.mxu0 0.0
      %4129 = vmatpush1.msra.mxu0 0.0
      %4130 = vmatprep.subr.mxu0 0.0
      %4131 = vmatpush1.msra.mxu0 0.0
      %4132 = vmatprep.subr.mxu0 0.0
      %4133 = vmatpush1.msra.mxu0 0.0
      %4134 = vmatprep.subr.mxu0 0.0
      %4135 = vmatpush1.msra.mxu0 0.0
      %4136 = vmatprep.subr.mxu0 0.0
      %4137 = vmatpush1.msra.mxu0 %v4104
      %4138 = vmatprep.subr.mxu0 0.0
      %4139 = vmatpush2.msra.mxu0 0.0
      %4140 = vmatprep.subr.mxu0 0.0
      %4141 = vmatpush2.msra.mxu0 0.0
      %4142 = vmatprep.subr.mxu0 0.0
      %4143 = vmatpush2.msra.mxu0 0.0
      %4144 = vmatprep.subr.mxu0 0.0
      %4145 = vmatpush2.msra.mxu0 0.0
      %4146 = vmatprep.subr.mxu0 0.0
      %4147 = vmatpush2.msra.mxu0 0.0
      %4148 = vmatprep.subr.mxu0 0.0
      %4149 = vmatpush2.msra.mxu0 0.0
      %4150 = vmatprep.subr.mxu0 0.0
      %4151 = vmatpush2.msra.mxu0 0.0
      %4152 = vmatprep.subr.mxu0 0.0
      %4153 = vmatpush2.msra.mxu0 0.0
      %4154 = vmatprep.subr.mxu0 0.0
      %4155 = vmatpush2.msra.mxu0 0.0
      %4156 = vmatprep.subr.mxu0 0.0
      %4157 = vmatpush2.msra.mxu0 0.0
      %4158 = vmatprep.subr.mxu0 0.0
      %4159 = vmatpush2.msra.mxu0 0.0
      %4160 = vmatprep.subr.mxu0 0.0
      %4161 = vmatpush2.msra.mxu0 0.0
      %4162 = vmatprep.subr.mxu0 0.0
      %4163 = vmatpush2.msra.mxu0 0.0
      %4164 = vmatprep.subr.mxu0 0.0
      %4165 = vmatpush2.msra.mxu0 0.0
      %4166 = vmatprep.subr.mxu0 0.0
      %4167 = vmatpush2.msra.mxu0 0.0
      %4168 = vmatprep.subr.mxu0 0.0
      %4169 = vmatpush2.msra.mxu0 0.0
      %4170 = vmatprep.mubr.f32.mxu0 0.0
      %4171 = vmatmul.mubr.f32.gmra.mxu0 %v4039
      %v4172 = vpop.f32.mrf.mxu0
      %v4173 = vadd.f32 %v3881, %v4172
      %v4174 = vpop.f32.mrf.mxu0
      %4175 = vmatprep.mubr.f32.mxu0 0.0
      %4176 = vmatmul.mubr.f32.gmra.mxu0 %v4041
      %v4177 = vpop.f32.mrf.mxu0
      %v4178 = vadd.f32 %v3886, %v4177
      %v4179 = vpop.f32.mrf.mxu0
      %4180 = vmatprep.mubr.f32.mxu0 0.0
      %4181 = vmatmul.mubr.f32.gmra.mxu0 %v4043
      %v4182 = vpop.f32.mrf.mxu0
      %v4183 = vadd.f32 %v3891, %v4182
      %v4184 = vpop.f32.mrf.mxu0
      %4185 = vmatprep.mubr.f32.mxu0 0.0
      %4186 = vmatmul.mubr.f32.gmra.mxu0 %v4045
      %v4187 = vpop.f32.mrf.mxu0
      %v4188 = vadd.f32 %v3896, %v4187
      %v4189 = vpop.f32.mrf.mxu0
      %4190 = vmatprep.mubr.f32.mxu0 0.0
      %4191 = vmatmul.mubr.f32.gmra.mxu0 %v4047
      %v4192 = vpop.f32.mrf.mxu0
      %v4193 = vadd.f32 %v3901, %v4192
      %v4194 = vpop.f32.mrf.mxu0
      %4195 = vmatprep.mubr.f32.mxu0 0.0
      %4196 = vmatmul.mubr.f32.gmra.mxu0 %v4049
      %v4197 = vpop.f32.mrf.mxu0
      %v4198 = vadd.f32 %v3906, %v4197
      %v4199 = vpop.f32.mrf.mxu0
      %4200 = vmatprep.mubr.f32.mxu0 0.0
      %4201 = vmatmul.mubr.f32.gmra.mxu0 %v4051
      %v4202 = vpop.f32.mrf.mxu0
      %v4203 = vadd.f32 %v3911, %v4202
      %v4204 = vpop.f32.mrf.mxu0
      %4205 = vmatprep.mubr.f32.mxu0 0.0
      %4206 = vmatmul.mubr.f32.gmra.mxu0 %v4053
      %v4207 = vpop.f32.mrf.mxu0
      %v4208 = vadd.f32 %v3916, %v4207
      %v4209 = vpop.f32.mrf.mxu0
      %4210 = vmatprep.mubr.f32.mxu0 0.0
      %4211 = vmatmul.mubr.f32.gmra.mxu0 %v4055
      %v4212 = vpop.f32.mrf.mxu0
      %v4213 = vadd.f32 %v3921, %v4212
      %v4214 = vpop.f32.mrf.mxu0
      %4215 = vmatprep.mubr.f32.mxu0 0.0
      %4216 = vmatmul.mubr.f32.gmra.mxu0 %v4057
      %v4217 = vpop.f32.mrf.mxu0
      %v4218 = vadd.f32 %v3926, %v4217
      %v4219 = vpop.f32.mrf.mxu0
      %4220 = vmatprep.mubr.f32.mxu0 0.0
      %4221 = vmatmul.mubr.f32.gmra.mxu0 %v4059
      %v4222 = vpop.f32.mrf.mxu0
      %v4223 = vadd.f32 %v3931, %v4222
      %v4224 = vpop.f32.mrf.mxu0
      %4225 = vmatprep.mubr.f32.mxu0 0.0
      %4226 = vmatmul.mubr.f32.gmra.mxu0 %v4061
      %v4227 = vpop.f32.mrf.mxu0
      %v4228 = vadd.f32 %v3936, %v4227
      %v4229 = vpop.f32.mrf.mxu0
      %4230 = vmatprep.mubr.f32.mxu0 0.0
      %4231 = vmatmul.mubr.f32.gmra.mxu0 %v4063
      %v4232 = vpop.f32.mrf.mxu0
      %v4233 = vadd.f32 %v3941, %v4232
      %v4234 = vpop.f32.mrf.mxu0
      %4235 = vmatprep.mubr.f32.mxu0 0.0
      %4236 = vmatmul.mubr.f32.gmra.mxu0 %v4065
      %v4237 = vpop.f32.mrf.mxu0
      %v4238 = vadd.f32 %v3946, %v4237
      %v4239 = vpop.f32.mrf.mxu0
      %4240 = vmatprep.mubr.f32.mxu0 0.0
      %4241 = vmatmul.mubr.f32.gmra.mxu0 %v4067
      %v4242 = vpop.f32.mrf.mxu0
      %v4243 = vadd.f32 %v3951, %v4242
      %v4244 = vpop.f32.mrf.mxu0
      %4245 = vmatprep.mubr.f32.mxu0 0.0
      %4246 = vmatmul.mubr.f32.gmra.mxu0 %v4069
      %v4247 = vpop.f32.mrf.mxu0
      %v4248 = vadd.f32 %v3956, %v4247
      %v4249 = vpop.f32.mrf.mxu0
      %4250 = vmatprep.mubr.f32.mxu0 0.0
      %4251 = vmatmul.mubr.f32.gmra.mxu0 %v4071
      %v4252 = vpop.f32.mrf.mxu0
      %v4253 = vadd.f32 %v3961, %v4252
      %v4254 = vpop.f32.mrf.mxu0
      %4255 = vmatprep.mubr.f32.mxu0 0.0
      %4256 = vmatmul.mubr.f32.gmra.mxu0 %v4073
      %v4257 = vpop.f32.mrf.mxu0
      %v4258 = vadd.f32 %v3966, %v4257
      %v4259 = vpop.f32.mrf.mxu0
      %4260 = vmatprep.mubr.f32.mxu0 0.0
      %4261 = vmatmul.mubr.f32.gmra.mxu0 %v4075
      %v4262 = vpop.f32.mrf.mxu0
      %v4263 = vadd.f32 %v3971, %v4262
      %v4264 = vpop.f32.mrf.mxu0
      %4265 = vmatprep.mubr.f32.mxu0 0.0
      %4266 = vmatmul.mubr.f32.gmra.mxu0 %v4077
      %v4267 = vpop.f32.mrf.mxu0
      %v4268 = vadd.f32 %v3976, %v4267
      %v4269 = vpop.f32.mrf.mxu0
      %4270 = vmatprep.mubr.f32.mxu0 0.0
      %4271 = vmatmul.mubr.f32.gmra.mxu0 %v4079
      %v4272 = vpop.f32.mrf.mxu0
      %v4273 = vadd.f32 %v3981, %v4272
      %v4274 = vpop.f32.mrf.mxu0
      %4275 = vmatprep.mubr.f32.mxu0 0.0
      %4276 = vmatmul.mubr.f32.gmra.mxu0 %v4081
      %v4277 = vpop.f32.mrf.mxu0
      %v4278 = vadd.f32 %v3986, %v4277
      %v4279 = vpop.f32.mrf.mxu0
      %4280 = vmatprep.mubr.f32.mxu0 0.0
      %4281 = vmatmul.mubr.f32.gmra.mxu0 %v4083
      %v4282 = vpop.f32.mrf.mxu0
      %v4283 = vadd.f32 %v3991, %v4282
      %v4284 = vpop.f32.mrf.mxu0
      %4285 = vmatprep.mubr.f32.mxu0 0.0
      %4286 = vmatmul.mubr.f32.gmra.mxu0 %v4085
      %v4287 = vpop.f32.mrf.mxu0
      %v4288 = vadd.f32 %v3996, %v4287
      %v4289 = vpop.f32.mrf.mxu0
      %4290 = vmatprep.mubr.f32.mxu0 0.0
      %4291 = vmatmul.mubr.f32.gmra.mxu0 %v4087
      %v4292 = vpop.f32.mrf.mxu0
      %v4293 = vadd.f32 %v4001, %v4292
      %v4294 = vpop.f32.mrf.mxu0
      %4295 = vmatprep.mubr.f32.mxu0 0.0
      %4296 = vmatmul.mubr.f32.gmra.mxu0 %v4089
      %v4297 = vpop.f32.mrf.mxu0
      %v4298 = vadd.f32 %v4006, %v4297
      %v4299 = vpop.f32.mrf.mxu0
      %4300 = vmatprep.mubr.f32.mxu0 0.0
      %4301 = vmatmul.mubr.f32.gmra.mxu0 %v4091
      %v4302 = vpop.f32.mrf.mxu0
      %v4303 = vadd.f32 %v4011, %v4302
      %v4304 = vpop.f32.mrf.mxu0
      %4305 = vmatprep.mubr.f32.mxu0 0.0
      %4306 = vmatmul.mubr.f32.gmra.mxu0 %v4093
      %v4307 = vpop.f32.mrf.mxu0
      %v4308 = vadd.f32 %v4016, %v4307
      %v4309 = vpop.f32.mrf.mxu0
      %4310 = vmatprep.mubr.f32.mxu0 0.0
      %4311 = vmatmul.mubr.f32.gmra.mxu0 %v4095
      %v4312 = vpop.f32.mrf.mxu0
      %v4313 = vadd.f32 %v4021, %v4312
      %v4314 = vpop.f32.mrf.mxu0
      %4315 = vmatprep.mubr.f32.mxu0 0.0
      %4316 = vmatmul.mubr.f32.gmra.mxu0 %v4097
      %v4317 = vpop.f32.mrf.mxu0
      %v4318 = vadd.f32 %v4026, %v4317
      %v4319 = vpop.f32.mrf.mxu0
      %4320 = vmatprep.mubr.f32.mxu0 0.0
      %4321 = vmatmul.mubr.f32.gmra.mxu0 %v4099
      %v4322 = vpop.f32.mrf.mxu0
      %v4323 = vadd.f32 %v4031, %v4322
      %v4324 = vpop.f32.mrf.mxu0
      %4325 = vmatprep.mubr.f32.mxu0 0.0
      %4326 = vmatmul.mubr.f32.gmra.mxu0 %v4101
      %v4327 = vpop.f32.mrf.mxu0
      %v4328 = vadd.f32 %v4036, %v4327
      %v4329 = vpop.f32.mrf.mxu0
      %4330 = vdwg.mxu0
      %v4331 = vld [vmem:[%s7 + $0x1] sm:$0x1]
      %v4332 = vlaneseq
      %v4333 = vshrl.u32 %v4332, 7
      %v4334 = vsub.s32 0, %v4333
      %v4335 = vrot.slane %v4331, %v4334
      %v4336 = vadd.f32 %v4173, %v4335
      %v4337 = vadd.f32 %v4178, %v4335
      %v4338 = vadd.f32 %v4183, %v4335
      %v4339 = vadd.f32 %v4188, %v4335
      %v4340 = vadd.f32 %v4193, %v4335
      %v4341 = vadd.f32 %v4198, %v4335
      %v4342 = vadd.f32 %v4203, %v4335
      %v4343 = vadd.f32 %v4208, %v4335
      %v4344 = vadd.f32 %v4213, %v4335
      %v4345 = vadd.f32 %v4218, %v4335
      %v4346 = vadd.f32 %v4223, %v4335
      %v4347 = vadd.f32 %v4228, %v4335
      %v4348 = vadd.f32 %v4233, %v4335
      %v4349 = vadd.f32 %v4238, %v4335
      %v4350 = vadd.f32 %v4243, %v4335
      %v4351 = vadd.f32 %v4248, %v4335
      %v4352 = vadd.f32 %v4253, %v4335
      %v4353 = vadd.f32 %v4258, %v4335
      %v4354 = vadd.f32 %v4263, %v4335
      %v4355 = vadd.f32 %v4268, %v4335
      %v4356 = vadd.f32 %v4273, %v4335
      %v4357 = vadd.f32 %v4278, %v4335
      %v4358 = vadd.f32 %v4283, %v4335
      %v4359 = vadd.f32 %v4288, %v4335
      %v4360 = vadd.f32 %v4293, %v4335
      %v4361 = vadd.f32 %v4298, %v4335
      %v4362 = vadd.f32 %v4303, %v4335
      %v4363 = vadd.f32 %v4308, %v4335
      %v4364 = vadd.f32 %v4313, %v4335
      %v4365 = vadd.f32 %v4318, %v4335
      %v4366 = vadd.f32 %v4323, %v4335
      %v4367 = vadd.f32 %v4328, %v4335
      %v4368 = vmax.f32 %v4336, 0.0
      %v4369 = vmax.f32 %v4337, 0.0
      %v4370 = vmax.f32 %v4338, 0.0
      %v4371 = vmax.f32 %v4339, 0.0
      %v4372 = vmax.f32 %v4340, 0.0
      %v4373 = vmax.f32 %v4341, 0.0
      %v4374 = vmax.f32 %v4342, 0.0
      %v4375 = vmax.f32 %v4343, 0.0
      %v4376 = vmax.f32 %v4344, 0.0
      %v4377 = vmax.f32 %v4345, 0.0
      %v4378 = vmax.f32 %v4346, 0.0
      %v4379 = vmax.f32 %v4347, 0.0
      %v4380 = vmax.f32 %v4348, 0.0
      %v4381 = vmax.f32 %v4349, 0.0
      %v4382 = vmax.f32 %v4350, 0.0
      %v4383 = vmax.f32 %v4351, 0.0
      %v4384 = vmax.f32 %v4352, 0.0
      %v4385 = vmax.f32 %v4353, 0.0
      %v4386 = vmax.f32 %v4354, 0.0
      %v4387 = vmax.f32 %v4355, 0.0
      %v4388 = vmax.f32 %v4356, 0.0
      %v4389 = vmax.f32 %v4357, 0.0
      %v4390 = vmax.f32 %v4358, 0.0
      %v4391 = vmax.f32 %v4359, 0.0
      %v4392 = vmax.f32 %v4360, 0.0
      %v4393 = vmax.f32 %v4361, 0.0
      %v4394 = vmax.f32 %v4362, 0.0
      %v4395 = vmax.f32 %v4363, 0.0
      %v4396 = vmax.f32 %v4364, 0.0
      %v4397 = vmax.f32 %v4365, 0.0
      %v4398 = vmax.f32 %v4366, 0.0
      %v4399 = vmax.f32 %v4367, 0.0
      %vm4400 = vcmask 31744
      %4401 = vst.msk [vmem:[%s305] sm:$0xff] %vm4400, %v4368
      %4402 = vst.msk [vmem:[%s305 + $0x8] sm:$0xff] %vm4400, %v4369
      %4403 = vst.msk [vmem:[%s305 + $0x10] sm:$0xff] %vm4400, %v4370
      %4404 = vst.msk [vmem:[%s305 + $0x18] sm:$0xff] %vm4400, %v4371
      %4405 = vst.msk [vmem:[%s305 + $0x20] sm:$0xff] %vm4400, %v4372
      %4406 = vst.msk [vmem:[%s305 + $0x28] sm:$0xff] %vm4400, %v4373
      %4407 = vst.msk [vmem:[%s305 + $0x30] sm:$0xff] %vm4400, %v4374
      %4408 = vst.msk [vmem:[%s305 + $0x38] sm:$0xff] %vm4400, %v4375
      %4409 = vst.msk [vmem:[%s305 + $0x40] sm:$0xff] %vm4400, %v4376
      %4410 = vst.msk [vmem:[%s305 + $0x48] sm:$0xff] %vm4400, %v4377
      %4411 = vst.msk [vmem:[%s305 + $0x50] sm:$0xff] %vm4400, %v4378
      %4412 = vst.msk [vmem:[%s305 + $0x58] sm:$0xff] %vm4400, %v4379
      %4413 = vst.msk [vmem:[%s305 + $0x60] sm:$0xff] %vm4400, %v4380
      %4414 = vst.msk [vmem:[%s305 + $0x68] sm:$0xff] %vm4400, %v4381
      %4415 = vst.msk [vmem:[%s305 + $0x70] sm:$0xff] %vm4400, %v4382
      %4416 = vst.msk [vmem:[%s305 + $0x78] sm:$0xff] %vm4400, %v4383
      %4417 = vst.msk [vmem:[%s305 + $0x80] sm:$0xff] %vm4400, %v4384
      %4418 = vst.msk [vmem:[%s305 + $0x88] sm:$0xff] %vm4400, %v4385
      %4419 = vst.msk [vmem:[%s305 + $0x90] sm:$0xff] %vm4400, %v4386
      %4420 = vst.msk [vmem:[%s305 + $0x98] sm:$0xff] %vm4400, %v4387
      %4421 = vst.msk [vmem:[%s305 + $0xa0] sm:$0xff] %vm4400, %v4388
      %4422 = vst.msk [vmem:[%s305 + $0xa8] sm:$0xff] %vm4400, %v4389
      %4423 = vst.msk [vmem:[%s305 + $0xb0] sm:$0xff] %vm4400, %v4390
      %4424 = vst.msk [vmem:[%s305 + $0xb8] sm:$0xff] %vm4400, %v4391
      %4425 = vst.msk [vmem:[%s305 + $0xc0] sm:$0xff] %vm4400, %v4392
      %4426 = vst.msk [vmem:[%s305 + $0xc8] sm:$0xff] %vm4400, %v4393
      %4427 = vst.msk [vmem:[%s305 + $0xd0] sm:$0xff] %vm4400, %v4394
      %4428 = vst.msk [vmem:[%s305 + $0xd8] sm:$0xff] %vm4400, %v4395
      %4429 = vst.msk [vmem:[%s305 + $0xe0] sm:$0xff] %vm4400, %v4396
      %4430 = vst.msk [vmem:[%s305 + $0xe8] sm:$0xff] %vm4400, %v4397
      %4431 = vst.msk [vmem:[%s305 + $0xf0] sm:$0xff] %vm4400, %v4398
      %4432 = vst.msk [vmem:[%s305 + $0xf8] sm:$0xff] %vm4400, %v4399
      %p4433 = scmp.lt.s32.totalorder %s19, 1
      %s4434 = scalar_select %p4433, %s19, 1
      %s4435 = smul.addr %s4434, 32
      %s4436 = smul.addr %s4435, 8
      %s4437 = scalar_lea.vmem %s8, %s4436
      // Predicated region
      $region53: #{tpu_custom_call.1} parent=51 // pred_check
        %p4438 = pneg %p210
      $region54: #{tpu_custom_call.1} parent=51 // pred_check_branch
        %4440 = sbr.rel (%p4438) target = $region56
      $region55: #{tpu_custom_call.1} parent=51 // pred_region
        _
      $region56: #{tpu_custom_call.1} parent=51 // pred_fallthru
        _
    $region52: #{tpu_custom_call.1} parent=5 // pred_fallthru
      _
    %p4441 = scmp.le.s32.totalorder 2, %s14
    // Predicated region
    $region57: #{tpu_custom_call.1} parent=5 // pred_check
      %p4442 = pneg %p4441
    $region58: #{tpu_custom_call.1} parent=5 // pred_check_branch
      %4444 = sbr.rel (%p4442) target = $region60
    $region59: #{tpu_custom_call.1} parent=5 // pred_region
      %s4445 = ssub.s32 %s14, 2
      // Predicated region
      $region61: #{tpu_custom_call.1} parent=59 // pred_check
        %p4446 = pneg %p216
      $region62: #{tpu_custom_call.1} parent=59 // pred_check_branch
        %4448 = sbr.rel (%p4446) target = $region64
      $region63: #{tpu_custom_call.1} parent=59 // pred_region
        %p4449 = scmp.lt.s32.totalorder %s20, 1
        %s4450 = scalar_select %p4449, %s20, 1
        %s4451 = smul.addr %s4450, 32
        %s4452 = smul.addr %s4451, 8
        %s4453 = scalar_lea.vmem %s8, %s4452
      $region64: #{tpu_custom_call.1} parent=59 // pred_fallthru
        _
    $region60: #{tpu_custom_call.1} parent=5 // pred_fallthru
      _
  $region6: #{tpu_custom_call.1} parent=0 // loop_footer
    %s18 = sadd.s32 1, %s14
  $region7: #{tpu_custom_call.1} parent=0 // loop_footer_branch
    %13 = sbr.rel target = $region3
  $region8: #{tpu_custom_call.1} parent=0 // loop_exit
    _

</llo_original>
